<compile_context>
chip_gen: v6e
topology: v6e:2x2x1
jax: 0.10.0
libtpu: 0.0.40
codegen_flags: <defaults>
</compile_context>

<pallas_src>
import functools

import numpy as np
import jax
import jax.numpy as jnp
from jax.experimental import pallas as pl
from jax.experimental.pallas import tpu as pltpu

MXU_DTYPE = jnp.bfloat16   # set to jnp.float32 for full-precision matmuls


# ----------------------------------------------------------------------------
# Fused kernel
# ----------------------------------------------------------------------------
def _hourglass_kernel(
    xp_ref, em1p_ref, em2p_ref,
    w1_ref, w2_ref, w3_ref, w4_ref, w5_ref, w6_ref,
    sc5_ref, bi5_ref, sc6_ref, bi6_ref,
    s1_ref, s3_ref, spad2_ref, spad4_ref, su2_ref, su4_ref, s5_ref, s6_ref,
    o_c2_ref, o_c4_ref, o_out_ref,
    p1, p2, p3, p4, p5, rhs_buf,
    *, C, H, W):
  f32 = jnp.float32
  H1, W1 = H // 2, W // 2
  H3, W3 = H // 4, W // 4
  Wp0, Wp1, Wp3 = W + 2, W1 + 2, W3 + 2
  band0, band1, band3 = H * Wp0, H1 * Wp1, H3 * Wp3
  pad1, pad3 = (H1 + 2) * Wp1, (H3 + 2) * Wp3

  # Scratch persists across grid steps: re-zero so padding / slack stays 0.
  for ref in (p1, p2, p3, p4, p5):
    ref[...] = jnp.zeros(ref.shape, ref.dtype)

  def pack_rhs(load, offsets, cin, band):
    # Pack shifted tap windows along the contraction dim -> one big-K dot.
    for t, off in enumerate(offsets):
      rhs_buf[t * cin:(t + 1) * cin, 0:band] = load(off, band)
    return rhs_buf[0:len(offsets) * cin, 0:band].astype(MXU_DTYPE)

  def conv9(load, w_ref, cin, wp, band, relu):
    offs = [kh * wp + kw for kh in range(3) for kw in range(3)]
    y = jnp.dot(w_ref[...], pack_rhs(load, offs, cin, band),
                preferred_element_type=f32)
    return jnp.maximum(y, 0.0) if relu else y

  def deconv4(load, w_ref, sc_ref, bi_ref, cin, wp, band, relu):
    offs = [(1 + dm) * wp + 1 + dn for dm in range(2) for dn in range(2)]
    y = jnp.dot(w_ref[...], pack_rhs(load, offs, cin, band),
                preferred_element_type=f32)
    y = y * sc_ref[...] + bi_ref[...]        # fused eval-mode BatchNorm
    return jnp.maximum(y, 0.0) if relu else y

  ld_x = lambda off, band: xp_ref[0, :, off:off + band]
  ld_p1 = lambda off, band: p1[:, off:off + band]
  ld_p2 = lambda off, band: p2[:, off:off + band]
  ld_p3 = lambda off, band: p3[:, off:off + band]
  ld_p4 = lambda off, band: p4[:, off:off + band]
  ld_p5 = lambda off, band: p5[:, off:off + band]

  # conv1: 3x3 stride 2, C->C, ReLU
  y1 = conv9(ld_x, w1_ref, C, Wp0, band0, relu=True)
  p1[:, 0:pad1] = jnp.dot(y1, s1_ref[...], preferred_element_type=f32)

  # conv2: 3x3 stride 1, C->C, ReLU  (half of the returned x_cat)
  y2 = conv9(ld_p1, w2_ref, C, Wp1, band1, relu=True)
  o_c2_ref[0] = jnp.dot(y2, su2_ref[...], preferred_element_type=f32)
  p2[0:C, 0:pad1] = jnp.dot(y2, spad2_ref[...], preferred_element_type=f32)
  p2[C:2 * C, 0:pad1] = em1p_ref[0]          # torch.cat((x, em1), 1)

  # conv3: 3x3 stride 2, 2C->2C, ReLU
  y3 = conv9(ld_p2, w3_ref, 2 * C, Wp1, band1, relu=True)
  p3[:, 0:pad3] = jnp.dot(y3, s3_ref[...], preferred_element_type=f32)

  # conv4: 3x3 stride 1, 2C->2C, ReLU  (half of the returned x_prime)
  y4 = conv9(ld_p3, w4_ref, 2 * C, Wp3, band3, relu=True)
  o_c4_ref[0] = jnp.dot(y4, su4_ref[...], preferred_element_type=f32)
  p4[0:2 * C, 0:pad3] = jnp.dot(y4, spad4_ref[...], preferred_element_type=f32)
  p4[2 * C:4 * C, 0:pad3] = em2p_ref[0]      # torch.cat((x_prime, em2), 1)

  # conv5: 3x3 ConvTranspose stride 2, 4C->2C, BN, ReLU (4 phases in one dot)
  y5 = deconv4(ld_p4, w5_ref, sc5_ref, bi5_ref, 4 * C, Wp3, band3, relu=True)
  acc5 = None
  for ph in range(4):
    t = jnp.dot(y5[ph * 2 * C:(ph + 1) * 2 * C], s5_ref[ph],
                preferred_element_type=f32)
    acc5 = t if acc5 is None else acc5 + t
  p5[:, 0:pad1] = acc5

  # conv6: 3x3 ConvTranspose stride 2, 2C->C, BN (no ReLU)
  y6 = deconv4(ld_p5, w6_ref, sc6_ref, bi6_ref, 2 * C, Wp1, band1, relu=False)
  acc6 = None
  for ph in range(4):
    t = jnp.dot(y6[ph * C:(ph + 1) * C], s6_ref[ph],
                preferred_element_type=f32)
    acc6 = t if acc6 is None else acc6 + t
  o_out_ref[0] = acc6


# ----------------------------------------------------------------------------
# Weight / constant packing (layout glue, done once per call in XLA / numpy)
# ----------------------------------------------------------------------------
def _pack_conv_w(w):
  # torch Conv2d weight (Cout, Cin, 3, 3) -> (Cout, 9*Cin), tap-major.
  co, ci = w.shape[0], w.shape[1]
  return jnp.transpose(w, (0, 2, 3, 1)).reshape(co, 9 * ci).astype(MXU_DTYPE)


def _pack_deconv_w(w):
  # torch ConvTranspose2d weight (Cin, Cout, 3, 3) -> (4*Cout, 4*Cin):
  # row block = output phase (r, c); col block = input shift (dm, dn).
  ci, co = w.shape[0], w.shape[1]
  out = jnp.zeros((4 * co, 4 * ci), jnp.float32)
  for r in range(2):
    for c in range(2):
      ph = r * 2 + c
      for dm in range(2):
        for dn in range(2):
          if (dm == 1 and r != 1) or (dn == 1 and c != 1):
            continue
          kh, kw = r + 1 - 2 * dm, c + 1 - 2 * dn
          s = dm * 2 + dn
          out = out.at[ph * co:(ph + 1) * co, s * ci:(s + 1) * ci].set(
              jnp.transpose(w[:, :, kh, kw]))
  return out.astype(MXU_DTYPE)


def _build_consts(H, W):
  # 0/1 selection matrices: stride-2 subsample, pad re-insertion, unpad and
  # deconv phase interleave, all expressed as lane-dense matmuls.
  H1, W1, H3, W3 = H // 2, W // 2, H // 4, W // 4
  Wp0, Wp1, Wp3 = W + 2, W1 + 2, W3 + 2

  s1 = np.zeros((H * Wp0, (H1 + 2) * Wp1), np.float32)
  for yo in range(H1):
    for xo in range(W1):
      s1[2 * yo * Wp0 + 2 * xo, (yo + 1) * Wp1 + xo + 1] = 1.0

  s3 = np.zeros((H1 * Wp1, (H3 + 2) * Wp3), np.float32)
  for yo in range(H3):
    for xo in range(W3):
      s3[2 * yo * Wp1 + 2 * xo, (yo + 1) * Wp3 + xo + 1] = 1.0

  spad2 = np.zeros((H1 * Wp1, (H1 + 2) * Wp1), np.float32)
  su2 = np.zeros((H1 * Wp1, H1 * W1), np.float32)
  for y in range(H1):
    for x in range(W1):
      spad2[y * Wp1 + x, (y + 1) * Wp1 + x + 1] = 1.0
      su2[y * Wp1 + x, y * W1 + x] = 1.0

  spad4 = np.zeros((H3 * Wp3, (H3 + 2) * Wp3), np.float32)
  su4 = np.zeros((H3 * Wp3, H3 * W3), np.float32)
  for y in range(H3):
    for x in range(W3):
      spad4[y * Wp3 + x, (y + 1) * Wp3 + x + 1] = 1.0
      su4[y * Wp3 + x, y * W3 + x] = 1.0

  s5 = np.zeros((4, H3 * Wp3, (H1 + 2) * Wp1), np.float32)
  s6 = np.zeros((4, H1 * Wp1, H * W), np.float32)
  for r in range(2):
    for c in range(2):
      ph = r * 2 + c
      for m in range(H3):
        for n in range(W3):
          s5[ph, m * Wp3 + n, (2 * m + r + 1) * Wp1 + 2 * n + c + 1] = 1.0
      for m in range(H1):
        for n in range(W1):
          s6[ph, m * Wp1 + n, (2 * m + r) * W + 2 * n + c] = 1.0
  return s1, s3, spad2, spad4, su2, su4, s5, s6


# ----------------------------------------------------------------------------
# hourglass_1 forward (NCHW in / NCHW out)
# ----------------------------------------------------------------------------
def hourglass_1_forward(params, x, em1, em2):
  B, C, H, W = x.shape
  assert H % 4 == 0 and W % 4 == 0, "spatial dims must be divisible by 4"
  H1, W1, H3, W3 = H // 2, W // 2, H // 4, W // 4
  Wp0, Wp1, Wp3 = W + 2, W1 + 2, W3 + 2
  N0 = (H + 2) * Wp0 + Wp0      # +slack row so tap windows stay in bounds
  N1 = (H1 + 3) * Wp1
  N3 = (H3 + 3) * Wp3
  f32 = jnp.float32

  x = x.astype(f32)
  em1 = em1.astype(f32)
  em2 = em2.astype(f32)

  def pad_flat(t, extra=0):
    b, c, h, w = t.shape
    tp = jnp.pad(t, ((0, 0), (0, 0), (1, 1), (1, 1)))
    tp = tp.reshape(b, c, (h + 2) * (w + 2))
    if extra:
      tp = jnp.pad(tp, ((0, 0), (0, 0), (0, extra)))
    return tp

  xp = pad_flat(x, Wp0)         # (B, C,  N0)
  em1p = pad_flat(em1)          # (B, C,  (H1+2)*Wp1)
  em2p = pad_flat(em2)          # (B, 2C, (H3+2)*Wp3)

  w1 = _pack_conv_w(params["w1"])
  w2 = _pack_conv_w(params["w2"])
  w3 = _pack_conv_w(params["w3"])
  w4 = _pack_conv_w(params["w4"])
  w5 = _pack_deconv_w(params["w5"])
  w6 = _pack_deconv_w(params["w6"])
  sc5 = jnp.tile(params["bn5_scale"], 4)[:, None]
  bi5 = jnp.tile(params["bn5_bias"], 4)[:, None]
  sc6 = jnp.tile(params["bn6_scale"], 4)[:, None]
  bi6 = jnp.tile(params["bn6_bias"], 4)[:, None]

  s1, s3, spad2, spad4, su2, su4, s5, s6 = _build_consts(H, W)

  kern = functools.partial(_hourglass_kernel, C=C, H=H, W=W)
  spec2 = lambda a: pl.BlockSpec(a.shape, lambda b: (0, 0))
  spec3 = lambda a: pl.BlockSpec(a.shape, lambda b: (0, 0, 0))
  specb = lambda a: pl.BlockSpec((1,) + a.shape[1:], lambda b: (b, 0, 0))

  o_c2, o_c4, o_out = pl.pallas_call(
      kern,
      out_shape=(
          jax.ShapeDtypeStruct((B, C, H1 * W1), f32),
          jax.ShapeDtypeStruct((B, 2 * C, H3 * W3), f32),
          jax.ShapeDtypeStruct((B, C, H * W), f32),
      ),
      grid=(B,),
      in_specs=[
          specb(xp), specb(em1p), specb(em2p),
          spec2(w1), spec2(w2), spec2(w3), spec2(w4), spec2(w5), spec2(w6),
          spec2(sc5), spec2(bi5), spec2(sc6), spec2(bi6),
          spec2(s1), spec2(s3), spec2(spad2), spec2(spad4),
          spec2(su2), spec2(su4), spec3(s5), spec3(s6),
      ],
      out_specs=(
          pl.BlockSpec((1, C, H1 * W1), lambda b: (b, 0, 0)),
          pl.BlockSpec((1, 2 * C, H3 * W3), lambda b: (b, 0, 0)),
          pl.BlockSpec((1, C, H * W), lambda b: (b, 0, 0)),
      ),
      scratch_shapes=[
          pltpu.VMEM((C, N1), f32),            # p1: padded conv1 output
          pltpu.VMEM((2 * C, N1), f32),        # p2: padded [conv2 | em1]
          pltpu.VMEM((2 * C, N3), f32),        # p3: padded conv3 output
          pltpu.VMEM((4 * C, N3), f32),        # p4: padded [conv4 | em2]
          pltpu.VMEM((2 * C, N1), f32),        # p5: padded conv5 output
          pltpu.VMEM((18 * C, H * Wp0), f32),  # tap-packing staging buffer
      ],
      compiler_params=pltpu.CompilerParams(
          dimension_semantics=("parallel",)),
  )(xp, em1p, em2p, w1, w2, w3, w4, w5, w6, sc5, bi5, sc6, bi6,
    s1, s3, spad2, spad4, su2, su4, s5, s6)

  out = o_out.reshape(B, C, H, W)
  x_cat = jnp.concatenate([o_c2.reshape(B, C, H1, W1), em1], axis=1)
  x_prime = jnp.concatenate([o_c4.reshape(B, 2 * C, H3, W3), em2], axis=1)
  return out, x_cat, x_prime


# ----------------------------------------------------------------------------
# Deterministic parameter initialization (synthetic, no checkpoint load)
# ----------------------------------------------------------------------------
def init_params(key, C):
  ks = jax.random.split(key, 8)

  def conv_w(k, cin, cout):     # torch Conv2d layout (Cout, Cin, 3, 3)
    w = jax.random.normal(k, (cout, cin, 3, 3), jnp.float32)
    return w * (1.0 / (cin * 9) ** 0.5)

  def convT_w(k, cin, cout):    # torch ConvTranspose2d layout (Cin, Cout, 3, 3)
    w = jax.random.normal(k, (cin, cout, 3, 3), jnp.float32)
    return w * (1.0 / (cin * 9) ** 0.5)

  def bn(k, c):
    k1, k2, k3, k4 = jax.random.split(k, 4)
    gamma = 1.0 + 0.1 * jax.random.normal(k1, (c,), jnp.float32)
    beta = 0.1 * jax.random.normal(k2, (c,), jnp.float32)
    mean = 0.1 * jax.random.normal(k3, (c,), jnp.float32)
    var = 1.0 + 0.1 * jnp.abs(jax.random.normal(k4, (c,), jnp.float32))
    scale = gamma / jnp.sqrt(var + 1e-5)
    bias = beta - mean * scale
    return scale, bias

  p = {
      "w1": conv_w(ks[0], C, C),
      "w2": conv_w(ks[1], C, C),
      "w3": conv_w(ks[2], 2 * C, 2 * C),
      "w4": conv_w(ks[3], 2 * C, 2 * C),
      "w5": convT_w(ks[4], 4 * C, 2 * C),
      "w6": convT_w(ks[5], 2 * C, C),
  }
  p["bn5_scale"], p["bn5_bias"] = bn(ks[6], 2 * C)
  p["bn6_scale"], p["bn6_bias"] = bn(ks[7], C)
  return p


if __name__ == "__main__":
  key = jax.random.PRNGKey(0)
  kx, k1, k2, kp = jax.random.split(key, 4)

  B, C, H, W = 2, 8, 16, 16
  x = jax.random.normal(kx, (B, C, H, W), jnp.float32)
  em1 = jax.random.normal(k1, (B, C, H // 2, W // 2), jnp.float32)
  em2 = jax.random.normal(k2, (B, 2 * C, H // 4, W // 4), jnp.float32)
  params = init_params(kp, C)

  fwd = jax.jit(hourglass_1_forward)
  out, x_cat, x_prime = fwd(params, x, em1, em2)
  jax.block_until_ready((out, x_cat, x_prime))

  assert out.shape == (B, C, H, W)
  assert x_cat.shape == (B, 2 * C, H // 2, W // 2)
  assert x_prime.shape == (B, 4 * C, H // 4, W // 4)
  assert jnp.all(jnp.isfinite(out))
  assert jnp.all(jnp.isfinite(x_cat))
  assert jnp.all(jnp.isfinite(x_prime))
  print("KERNEL_OK")
</pallas_src>

<mosaic_0001>
module attributes {stable_mosaic.version = 11 : i64} {
  func.func @_hourglass_kernel(%arg0: i32, %arg1: memref<1x8x342xf32, #tpu.memory_space<vmem>>, %arg2: memref<1x8x100xf32, #tpu.memory_space<vmem>>, %arg3: memref<1x16x36xf32, #tpu.memory_space<vmem>>, %arg4: memref<8x72xbf16, #tpu.memory_space<vmem>>, %arg5: memref<8x72xbf16, #tpu.memory_space<vmem>>, %arg6: memref<16x144xbf16, #tpu.memory_space<vmem>>, %arg7: memref<16x144xbf16, #tpu.memory_space<vmem>>, %arg8: memref<64x128xbf16, #tpu.memory_space<vmem>>, %arg9: memref<32x64xbf16, #tpu.memory_space<vmem>>, %arg10: memref<64x1xf32, #tpu.memory_space<vmem>>, %arg11: memref<64x1xf32, #tpu.memory_space<vmem>>, %arg12: memref<32x1xf32, #tpu.memory_space<vmem>>, %arg13: memref<32x1xf32, #tpu.memory_space<vmem>>, %arg14: memref<288x100xf32, #tpu.memory_space<vmem>>, %arg15: memref<80x36xf32, #tpu.memory_space<vmem>>, %arg16: memref<80x100xf32, #tpu.memory_space<vmem>>, %arg17: memref<24x36xf32, #tpu.memory_space<vmem>>, %arg18: memref<80x64xf32, #tpu.memory_space<vmem>>, %arg19: memref<24x16xf32, #tpu.memory_space<vmem>>, %arg20: memref<4x24x100xf32, #tpu.memory_space<vmem>>, %arg21: memref<4x80x256xf32, #tpu.memory_space<vmem>>, %arg22: memref<1x8x64xf32, #tpu.memory_space<vmem>>, %arg23: memref<1x16x16xf32, #tpu.memory_space<vmem>>, %arg24: memref<1x8x256xf32, #tpu.memory_space<vmem>>, %arg25: memref<8x110xf32, #tpu.memory_space<vmem>>, %arg26: memref<16x110xf32, #tpu.memory_space<vmem>>, %arg27: memref<16x42xf32, #tpu.memory_space<vmem>>, %arg28: memref<32x42xf32, #tpu.memory_space<vmem>>, %arg29: memref<16x110xf32, #tpu.memory_space<vmem>>, %arg30: memref<144x288xf32, #tpu.memory_space<vmem>>) attributes {dimension_semantics = [#tpu.dimension_semantics<parallel>], iteration_bounds = array<i64: 2>, scalar_prefetch = 0 : i64, scratch_operands = 6 : i64, tpu.core_type = #tpu.core_type<tc>, window_params = [{transform_indices = @transform_0, window_bounds = array<i64: 1, 8, 342>}, {transform_indices = @transform_1, window_bounds = array<i64: 1, 8, 100>}, {transform_indices = @transform_2, window_bounds = array<i64: 1, 16, 36>}, {pipeline_mode = #tpu.pipeline_mode<synchronous>, transform_indices = @transform_3, window_bounds = array<i64: 8, 72>}, {pipeline_mode = #tpu.pipeline_mode<synchronous>, transform_indices = @transform_4, window_bounds = array<i64: 8, 72>}, {pipeline_mode = #tpu.pipeline_mode<synchronous>, transform_indices = @transform_5, window_bounds = array<i64: 16, 144>}, {pipeline_mode = #tpu.pipeline_mode<synchronous>, transform_indices = @transform_6, window_bounds = array<i64: 16, 144>}, {pipeline_mode = #tpu.pipeline_mode<synchronous>, transform_indices = @transform_7, window_bounds = array<i64: 64, 128>}, {pipeline_mode = #tpu.pipeline_mode<synchronous>, transform_indices = @transform_8, window_bounds = array<i64: 32, 64>}, {pipeline_mode = #tpu.pipeline_mode<synchronous>, transform_indices = @transform_9, window_bounds = array<i64: 64, 1>}, {pipeline_mode = #tpu.pipeline_mode<synchronous>, transform_indices = @transform_10, window_bounds = array<i64: 64, 1>}, {pipeline_mode = #tpu.pipeline_mode<synchronous>, transform_indices = @transform_11, window_bounds = array<i64: 32, 1>}, {pipeline_mode = #tpu.pipeline_mode<synchronous>, transform_indices = @transform_12, window_bounds = array<i64: 32, 1>}, {pipeline_mode = #tpu.pipeline_mode<synchronous>, transform_indices = @transform_13, window_bounds = array<i64: 288, 100>}, {pipeline_mode = #tpu.pipeline_mode<synchronous>, transform_indices = @transform_14, window_bounds = array<i64: 80, 36>}, {pipeline_mode = #tpu.pipeline_mode<synchronous>, transform_indices = @transform_15, window_bounds = array<i64: 80, 100>}, {pipeline_mode = #tpu.pipeline_mode<synchronous>, transform_indices = @transform_16, window_bounds = array<i64: 24, 36>}, {pipeline_mode = #tpu.pipeline_mode<synchronous>, transform_indices = @transform_17, window_bounds = array<i64: 80, 64>}, {pipeline_mode = #tpu.pipeline_mode<synchronous>, transform_indices = @transform_18, window_bounds = array<i64: 24, 16>}, {pipeline_mode = #tpu.pipeline_mode<synchronous>, transform_indices = @transform_19, window_bounds = array<i64: 4, 24, 100>}, {pipeline_mode = #tpu.pipeline_mode<synchronous>, transform_indices = @transform_20, window_bounds = array<i64: 4, 80, 256>}, {transform_indices = @transform_21, window_bounds = array<i64: 1, 8, 64>}, {transform_indices = @transform_22, window_bounds = array<i64: 1, 16, 16>}, {transform_indices = @transform_23, window_bounds = array<i64: 1, 8, 256>}]} {
    %cst = arith.constant 0.000000e+00 : f32
    %0 = vector.broadcast %cst : f32 to vector<8x110xf32>
    %c0 = arith.constant 0 : index
    %c0_0 = arith.constant 0 : index
    %1 = vector.load %arg25[%c0, %c0_0] : memref<8x110xf32, #tpu.memory_space<vmem>>, vector<8x110xf32>
    tpu.vector_store %arg25[%c0, %c0_0], %0 {strides = array<i32>} : memref<8x110xf32, #tpu.memory_space<vmem>>, vector<8x110xf32>,
    %cst_1 = arith.constant 0.000000e+00 : f32
    %2 = vector.broadcast %cst_1 : f32 to vector<16x110xf32>
    %c0_2 = arith.constant 0 : index
    %c0_3 = arith.constant 0 : index
    %3 = vector.load %arg26[%c0_2, %c0_3] : memref<16x110xf32, #tpu.memory_space<vmem>>, vector<16x110xf32>
    tpu.vector_store %arg26[%c0_2, %c0_3], %2 {strides = array<i32>} : memref<16x110xf32, #tpu.memory_space<vmem>>, vector<16x110xf32>,
    %cst_4 = arith.constant 0.000000e+00 : f32
    %4 = vector.broadcast %cst_4 : f32 to vector<16x42xf32>
    %c0_5 = arith.constant 0 : index
    %c0_6 = arith.constant 0 : index
    %5 = vector.load %arg27[%c0_5, %c0_6] : memref<16x42xf32, #tpu.memory_space<vmem>>, vector<16x42xf32>
    tpu.vector_store %arg27[%c0_5, %c0_6], %4 {strides = array<i32>} : memref<16x42xf32, #tpu.memory_space<vmem>>, vector<16x42xf32>,
    %cst_7 = arith.constant 0.000000e+00 : f32
    %6 = vector.broadcast %cst_7 : f32 to vector<32x42xf32>
    %c0_8 = arith.constant 0 : index
    %c0_9 = arith.constant 0 : index
    %7 = vector.load %arg28[%c0_8, %c0_9] : memref<32x42xf32, #tpu.memory_space<vmem>>, vector<32x42xf32>
    tpu.vector_store %arg28[%c0_8, %c0_9], %6 {strides = array<i32>} : memref<32x42xf32, #tpu.memory_space<vmem>>, vector<32x42xf32>,
    %cst_10 = arith.constant 0.000000e+00 : f32
    %8 = vector.broadcast %cst_10 : f32 to vector<16x110xf32>
    %c0_11 = arith.constant 0 : index
    %c0_12 = arith.constant 0 : index
    %9 = vector.load %arg29[%c0_11, %c0_12] : memref<16x110xf32, #tpu.memory_space<vmem>>, vector<16x110xf32>
    tpu.vector_store %arg29[%c0_11, %c0_12], %8 {strides = array<i32>} : memref<16x110xf32, #tpu.memory_space<vmem>>, vector<16x110xf32>,
    %c0_13 = arith.constant 0 : index
    %c0_14 = arith.constant 0 : index
    %10 = vector.load %arg4[%c0_13, %c0_14] : memref<8x72xbf16, #tpu.memory_space<vmem>>, vector<8x72xbf16>
    %c0_15 = arith.constant 0 : index
    %c0_16 = arith.constant 0 : index
    %c0_17 = arith.constant 0 : index
    %11 = vector.load %arg1[%c0_15, %c0_16, %c0_17] : memref<1x8x342xf32, #tpu.memory_space<vmem>>, vector<1x8x288xf32>
    %12 = vector.shape_cast %11 : vector<1x8x288xf32> to vector<8x288xf32>
    %c0_18 = arith.constant 0 : index
    %c0_19 = arith.constant 0 : index
    %13 = vector.load %arg30[%c0_18, %c0_19] : memref<144x288xf32, #tpu.memory_space<vmem>>, vector<8x288xf32>
    tpu.vector_store %arg30[%c0_18, %c0_19], %12 {strides = array<i32>} : memref<144x288xf32, #tpu.memory_space<vmem>>, vector<8x288xf32>,
    %c0_20 = arith.constant 0 : index
    %c0_21 = arith.constant 0 : index
    %c1 = arith.constant 1 : index
    %14 = vector.load %arg1[%c0_20, %c0_21, %c1] : memref<1x8x342xf32, #tpu.memory_space<vmem>>, vector<1x8x288xf32>
    %15 = vector.shape_cast %14 : vector<1x8x288xf32> to vector<8x288xf32>
    %c8 = arith.constant 8 : index
    %c0_22 = arith.constant 0 : index
    %16 = vector.load %arg30[%c8, %c0_22] : memref<144x288xf32, #tpu.memory_space<vmem>>, vector<8x288xf32>
    tpu.vector_store %arg30[%c8, %c0_22], %15 {strides = array<i32>} : memref<144x288xf32, #tpu.memory_space<vmem>>, vector<8x288xf32>,
    %c0_23 = arith.constant 0 : index
    %c0_24 = arith.constant 0 : index
    %c2 = arith.constant 2 : index
    %17 = vector.load %arg1[%c0_23, %c0_24, %c2] : memref<1x8x342xf32, #tpu.memory_space<vmem>>, vector<1x8x288xf32>
    %18 = vector.shape_cast %17 : vector<1x8x288xf32> to vector<8x288xf32>
    %c16 = arith.constant 16 : index
    %c0_25 = arith.constant 0 : index
    %19 = vector.load %arg30[%c16, %c0_25] : memref<144x288xf32, #tpu.memory_space<vmem>>, vector<8x288xf32>
    tpu.vector_store %arg30[%c16, %c0_25], %18 {strides = array<i32>} : memref<144x288xf32, #tpu.memory_space<vmem>>, vector<8x288xf32>,
    %c0_26 = arith.constant 0 : index
    %c0_27 = arith.constant 0 : index
    %c18 = arith.constant 18 : index
    %20 = vector.load %arg1[%c0_26, %c0_27, %c18] : memref<1x8x342xf32, #tpu.memory_space<vmem>>, vector<1x8x288xf32>
    %21 = vector.shape_cast %20 : vector<1x8x288xf32> to vector<8x288xf32>
    %c24 = arith.constant 24 : index
    %c0_28 = arith.constant 0 : index
    %22 = vector.load %arg30[%c24, %c0_28] : memref<144x288xf32, #tpu.memory_space<vmem>>, vector<8x288xf32>
    tpu.vector_store %arg30[%c24, %c0_28], %21 {strides = array<i32>} : memref<144x288xf32, #tpu.memory_space<vmem>>, vector<8x288xf32>,
    %c0_29 = arith.constant 0 : index
    %c0_30 = arith.constant 0 : index
    %c19 = arith.constant 19 : index
    %23 = vector.load %arg1[%c0_29, %c0_30, %c19] : memref<1x8x342xf32, #tpu.memory_space<vmem>>, vector<1x8x288xf32>
    %24 = vector.shape_cast %23 : vector<1x8x288xf32> to vector<8x288xf32>
    %c32 = arith.constant 32 : index
    %c0_31 = arith.constant 0 : index
    %25 = vector.load %arg30[%c32, %c0_31] : memref<144x288xf32, #tpu.memory_space<vmem>>, vector<8x288xf32>
    tpu.vector_store %arg30[%c32, %c0_31], %24 {strides = array<i32>} : memref<144x288xf32, #tpu.memory_space<vmem>>, vector<8x288xf32>,
    %c0_32 = arith.constant 0 : index
    %c0_33 = arith.constant 0 : index
    %c20 = arith.constant 20 : index
    %26 = vector.load %arg1[%c0_32, %c0_33, %c20] : memref<1x8x342xf32, #tpu.memory_space<vmem>>, vector<1x8x288xf32>
    %27 = vector.shape_cast %26 : vector<1x8x288xf32> to vector<8x288xf32>
    %c40 = arith.constant 40 : index
    %c0_34 = arith.constant 0 : index
    %28 = vector.load %arg30[%c40, %c0_34] : memref<144x288xf32, #tpu.memory_space<vmem>>, vector<8x288xf32>
    tpu.vector_store %arg30[%c40, %c0_34], %27 {strides = array<i32>} : memref<144x288xf32, #tpu.memory_space<vmem>>, vector<8x288xf32>,
    %c0_35 = arith.constant 0 : index
    %c0_36 = arith.constant 0 : index
    %c36 = arith.constant 36 : index
    %29 = vector.load %arg1[%c0_35, %c0_36, %c36] : memref<1x8x342xf32, #tpu.memory_space<vmem>>, vector<1x8x288xf32>
    %30 = vector.shape_cast %29 : vector<1x8x288xf32> to vector<8x288xf32>
    %c48 = arith.constant 48 : index
    %c0_37 = arith.constant 0 : index
    %31 = vector.load %arg30[%c48, %c0_37] : memref<144x288xf32, #tpu.memory_space<vmem>>, vector<8x288xf32>
    tpu.vector_store %arg30[%c48, %c0_37], %30 {strides = array<i32>} : memref<144x288xf32, #tpu.memory_space<vmem>>, vector<8x288xf32>,
    %c0_38 = arith.constant 0 : index
    %c0_39 = arith.constant 0 : index
    %c37 = arith.constant 37 : index
    %32 = vector.load %arg1[%c0_38, %c0_39, %c37] : memref<1x8x342xf32, #tpu.memory_space<vmem>>, vector<1x8x288xf32>
    %33 = vector.shape_cast %32 : vector<1x8x288xf32> to vector<8x288xf32>
    %c56 = arith.constant 56 : index
    %c0_40 = arith.constant 0 : index
    %34 = vector.load %arg30[%c56, %c0_40] : memref<144x288xf32, #tpu.memory_space<vmem>>, vector<8x288xf32>
    tpu.vector_store %arg30[%c56, %c0_40], %33 {strides = array<i32>} : memref<144x288xf32, #tpu.memory_space<vmem>>, vector<8x288xf32>,
    %c0_41 = arith.constant 0 : index
    %c0_42 = arith.constant 0 : index
    %c38 = arith.constant 38 : index
    %35 = vector.load %arg1[%c0_41, %c0_42, %c38] : memref<1x8x342xf32, #tpu.memory_space<vmem>>, vector<1x8x288xf32>
    %36 = vector.shape_cast %35 : vector<1x8x288xf32> to vector<8x288xf32>
    %c64 = arith.constant 64 : index
    %c0_43 = arith.constant 0 : index
    %37 = vector.load %arg30[%c64, %c0_43] : memref<144x288xf32, #tpu.memory_space<vmem>>, vector<8x288xf32>
    tpu.vector_store %arg30[%c64, %c0_43], %36 {strides = array<i32>} : memref<144x288xf32, #tpu.memory_space<vmem>>, vector<8x288xf32>,
    %c0_44 = arith.constant 0 : index
    %c0_45 = arith.constant 0 : index
    %38 = vector.load %arg30[%c0_44, %c0_45] : memref<144x288xf32, #tpu.memory_space<vmem>>, vector<72x288xf32>
    %39 = arith.truncf %38 : vector<72x288xf32> to vector<72x288xbf16>
    %cst_46 = arith.constant dense<0.000000e+00> : vector<8x288xf32>
    %40 = tpu.matmul %10, %39, %cst_46 {dimension_numbers = #tpu.dot_dimension_numbers<[1], [0], [0], [1], [0, 0, 1, 1], [], []>} : vector<8x72xbf16>, vector<72x288xbf16>, vector<8x288xf32> -> vector<8x288xf32>
    %cst_47 = arith.constant 0.000000e+00 : f32
    %41 = vector.broadcast %cst_47 : f32 to vector<8x288xf32>
    %42 = arith.maximumf %40, %41 : vector<8x288xf32>
    %c0_48 = arith.constant 0 : index
    %c0_49 = arith.constant 0 : index
    %43 = vector.load %arg14[%c0_48, %c0_49] : memref<288x100xf32, #tpu.memory_space<vmem>>, vector<288x100xf32>
    %cst_50 = arith.constant dense<0.000000e+00> : vector<8x100xf32>
    %44 = tpu.matmul %42, %43, %cst_50 {dimension_numbers = #tpu.dot_dimension_numbers<[1], [0], [0], [1], [0, 0, 1, 1], [], []>} : vector<8x288xf32>, vector<288x100xf32>, vector<8x100xf32> -> vector<8x100xf32>
    %c0_51 = arith.constant 0 : index
    %c0_52 = arith.constant 0 : index
    %45 = vector.load %arg25[%c0_51, %c0_52] : memref<8x110xf32, #tpu.memory_space<vmem>>, vector<8x100xf32>
    tpu.vector_store %arg25[%c0_51, %c0_52], %44 {strides = array<i32>} : memref<8x110xf32, #tpu.memory_space<vmem>>, vector<8x100xf32>,
    %c0_53 = arith.constant 0 : index
    %c0_54 = arith.constant 0 : index
    %46 = vector.load %arg5[%c0_53, %c0_54] : memref<8x72xbf16, #tpu.memory_space<vmem>>, vector<8x72xbf16>
    %c0_55 = arith.constant 0 : index
    %c0_56 = arith.constant 0 : index
    %47 = vector.load %arg25[%c0_55, %c0_56] : memref<8x110xf32, #tpu.memory_space<vmem>>, vector<8x80xf32>
    %c0_57 = arith.constant 0 : index
    %c0_58 = arith.constant 0 : index
    %48 = vector.load %arg30[%c0_57, %c0_58] : memref<144x288xf32, #tpu.memory_space<vmem>>, vector<8x80xf32>
    tpu.vector_store %arg30[%c0_57, %c0_58], %47 {strides = array<i32>} : memref<144x288xf32, #tpu.memory_space<vmem>>, vector<8x80xf32>,
    %c0_59 = arith.constant 0 : index
    %c1_60 = arith.constant 1 : index
    %49 = vector.load %arg25[%c0_59, %c1_60] : memref<8x110xf32, #tpu.memory_space<vmem>>, vector<8x80xf32>
    %c8_61 = arith.constant 8 : index
    %c0_62 = arith.constant 0 : index
    %50 = vector.load %arg30[%c8_61, %c0_62] : memref<144x288xf32, #tpu.memory_space<vmem>>, vector<8x80xf32>
    tpu.vector_store %arg30[%c8_61, %c0_62], %49 {strides = array<i32>} : memref<144x288xf32, #tpu.memory_space<vmem>>, vector<8x80xf32>,
    %c0_63 = arith.constant 0 : index
    %c2_64 = arith.constant 2 : index
    %51 = vector.load %arg25[%c0_63, %c2_64] : memref<8x110xf32, #tpu.memory_space<vmem>>, vector<8x80xf32>
    %c16_65 = arith.constant 16 : index
    %c0_66 = arith.constant 0 : index
    %52 = vector.load %arg30[%c16_65, %c0_66] : memref<144x288xf32, #tpu.memory_space<vmem>>, vector<8x80xf32>
    tpu.vector_store %arg30[%c16_65, %c0_66], %51 {strides = array<i32>} : memref<144x288xf32, #tpu.memory_space<vmem>>, vector<8x80xf32>,
    %c0_67 = arith.constant 0 : index
    %c10 = arith.constant 10 : index
    %53 = vector.load %arg25[%c0_67, %c10] : memref<8x110xf32, #tpu.memory_space<vmem>>, vector<8x80xf32>
    %c24_68 = arith.constant 24 : index
    %c0_69 = arith.constant 0 : index
    %54 = vector.load %arg30[%c24_68, %c0_69] : memref<144x288xf32, #tpu.memory_space<vmem>>, vector<8x80xf32>
    tpu.vector_store %arg30[%c24_68, %c0_69], %53 {strides = array<i32>} : memref<144x288xf32, #tpu.memory_space<vmem>>, vector<8x80xf32>,
    %c0_70 = arith.constant 0 : index
    %c11 = arith.constant 11 : index
    %55 = vector.load %arg25[%c0_70, %c11] : memref<8x110xf32, #tpu.memory_space<vmem>>, vector<8x80xf32>
    %c32_71 = arith.constant 32 : index
    %c0_72 = arith.constant 0 : index
    %56 = vector.load %arg30[%c32_71, %c0_72] : memref<144x288xf32, #tpu.memory_space<vmem>>, vector<8x80xf32>
    tpu.vector_store %arg30[%c32_71, %c0_72], %55 {strides = array<i32>} : memref<144x288xf32, #tpu.memory_space<vmem>>, vector<8x80xf32>,
    %c0_73 = arith.constant 0 : index
    %c12 = arith.constant 12 : index
    %57 = vector.load %arg25[%c0_73, %c12] : memref<8x110xf32, #tpu.memory_space<vmem>>, vector<8x80xf32>
    %c40_74 = arith.constant 40 : index
    %c0_75 = arith.constant 0 : index
    %58 = vector.load %arg30[%c40_74, %c0_75] : memref<144x288xf32, #tpu.memory_space<vmem>>, vector<8x80xf32>
    tpu.vector_store %arg30[%c40_74, %c0_75], %57 {strides = array<i32>} : memref<144x288xf32, #tpu.memory_space<vmem>>, vector<8x80xf32>,
    %c0_76 = arith.constant 0 : index
    %c20_77 = arith.constant 20 : index
    %59 = vector.load %arg25[%c0_76, %c20_77] : memref<8x110xf32, #tpu.memory_space<vmem>>, vector<8x80xf32>
    %c48_78 = arith.constant 48 : index
    %c0_79 = arith.constant 0 : index
    %60 = vector.load %arg30[%c48_78, %c0_79] : memref<144x288xf32, #tpu.memory_space<vmem>>, vector<8x80xf32>
    tpu.vector_store %arg30[%c48_78, %c0_79], %59 {strides = array<i32>} : memref<144x288xf32, #tpu.memory_space<vmem>>, vector<8x80xf32>,
    %c0_80 = arith.constant 0 : index
    %c21 = arith.constant 21 : index
    %61 = vector.load %arg25[%c0_80, %c21] : memref<8x110xf32, #tpu.memory_space<vmem>>, vector<8x80xf32>
    %c56_81 = arith.constant 56 : index
    %c0_82 = arith.constant 0 : index
    %62 = vector.load %arg30[%c56_81, %c0_82] : memref<144x288xf32, #tpu.memory_space<vmem>>, vector<8x80xf32>
    tpu.vector_store %arg30[%c56_81, %c0_82], %61 {strides = array<i32>} : memref<144x288xf32, #tpu.memory_space<vmem>>, vector<8x80xf32>,
    %c0_83 = arith.constant 0 : index
    %c22 = arith.constant 22 : index
    %63 = vector.load %arg25[%c0_83, %c22] : memref<8x110xf32, #tpu.memory_space<vmem>>, vector<8x80xf32>
    %c64_84 = arith.constant 64 : index
    %c0_85 = arith.constant 0 : index
    %64 = vector.load %arg30[%c64_84, %c0_85] : memref<144x288xf32, #tpu.memory_space<vmem>>, vector<8x80xf32>
    tpu.vector_store %arg30[%c64_84, %c0_85], %63 {strides = array<i32>} : memref<144x288xf32, #tpu.memory_space<vmem>>, vector<8x80xf32>,
    %c0_86 = arith.constant 0 : index
    %c0_87 = arith.constant 0 : index
    %65 = vector.load %arg30[%c0_86, %c0_87] : memref<144x288xf32, #tpu.memory_space<vmem>>, vector<72x80xf32>
    %66 = arith.truncf %65 : vector<72x80xf32> to vector<72x80xbf16>
    %cst_88 = arith.constant dense<0.000000e+00> : vector<8x80xf32>
    %67 = tpu.matmul %46, %66, %cst_88 {dimension_numbers = #tpu.dot_dimension_numbers<[1], [0], [0], [1], [0, 0, 1, 1], [], []>} : vector<8x72xbf16>, vector<72x80xbf16>, vector<8x80xf32> -> vector<8x80xf32>
    %cst_89 = arith.constant 0.000000e+00 : f32
    %68 = vector.broadcast %cst_89 : f32 to vector<8x80xf32>
    %69 = arith.maximumf %67, %68 : vector<8x80xf32>
    %c0_90 = arith.constant 0 : index
    %c0_91 = arith.constant 0 : index
    %70 = vector.load %arg18[%c0_90, %c0_91] : memref<80x64xf32, #tpu.memory_space<vmem>>, vector<80x64xf32>
    %cst_92 = arith.constant dense<0.000000e+00> : vector<8x64xf32>
    %71 = tpu.matmul %69, %70, %cst_92 {dimension_numbers = #tpu.dot_dimension_numbers<[1], [0], [0], [1], [0, 0, 1, 1], [], []>} : vector<8x80xf32>, vector<80x64xf32>, vector<8x64xf32> -> vector<8x64xf32>
    %c0_93 = arith.constant 0 : index
    %c0_94 = arith.constant 0 : index
    %c0_95 = arith.constant 0 : index
    %72 = vector.load %arg22[%c0_93, %c0_94, %c0_95] : memref<1x8x64xf32, #tpu.memory_space<vmem>>, vector<1x8x64xf32>
    %73 = vector.shape_cast %72 : vector<1x8x64xf32> to vector<8x64xf32>
    %74 = vector.shape_cast %71 : vector<8x64xf32> to vector<1x8x64xf32>
    tpu.vector_store %arg22[%c0_93, %c0_94, %c0_95], %74 {strides = array<i32>} : memref<1x8x64xf32, #tpu.memory_space<vmem>>, vector<1x8x64xf32>,
    %c0_96 = arith.constant 0 : index
    %c0_97 = arith.constant 0 : index
    %75 = vector.load %arg16[%c0_96, %c0_97] : memref<80x100xf32, #tpu.memory_space<vmem>>, vector<80x100xf32>
    %cst_98 = arith.constant dense<0.000000e+00> : vector<8x100xf32>
    %76 = tpu.matmul %69, %75, %cst_98 {dimension_numbers = #tpu.dot_dimension_numbers<[1], [0], [0], [1], [0, 0, 1, 1], [], []>} : vector<8x80xf32>, vector<80x100xf32>, vector<8x100xf32> -> vector<8x100xf32>
    %c0_99 = arith.constant 0 : index
    %c0_100 = arith.constant 0 : index
    %77 = vector.load %arg26[%c0_99, %c0_100] : memref<16x110xf32, #tpu.memory_space<vmem>>, vector<8x100xf32>
    tpu.vector_store %arg26[%c0_99, %c0_100], %76 {strides = array<i32>} : memref<16x110xf32, #tpu.memory_space<vmem>>, vector<8x100xf32>,
    %c0_101 = arith.constant 0 : index
    %c0_102 = arith.constant 0 : index
    %c0_103 = arith.constant 0 : index
    %78 = vector.load %arg2[%c0_101, %c0_102, %c0_103] : memref<1x8x100xf32, #tpu.memory_space<vmem>>, vector<1x8x100xf32>
    %79 = vector.shape_cast %78 : vector<1x8x100xf32> to vector<8x100xf32>
    %c8_104 = arith.constant 8 : index
    %c0_105 = arith.constant 0 : index
    %80 = vector.load %arg26[%c8_104, %c0_105] : memref<16x110xf32, #tpu.memory_space<vmem>>, vector<8x100xf32>
    tpu.vector_store %arg26[%c8_104, %c0_105], %79 {strides = array<i32>} : memref<16x110xf32, #tpu.memory_space<vmem>>, vector<8x100xf32>,
    %c0_106 = arith.constant 0 : index
    %c0_107 = arith.constant 0 : index
    %81 = vector.load %arg6[%c0_106, %c0_107] : memref<16x144xbf16, #tpu.memory_space<vmem>>, vector<16x144xbf16>
    %c0_108 = arith.constant 0 : index
    %c0_109 = arith.constant 0 : index
    %82 = vector.load %arg26[%c0_108, %c0_109] : memref<16x110xf32, #tpu.memory_space<vmem>>, vector<16x80xf32>
    %c0_110 = arith.constant 0 : index
    %c0_111 = arith.constant 0 : index
    %83 = vector.load %arg30[%c0_110, %c0_111] : memref<144x288xf32, #tpu.memory_space<vmem>>, vector<16x80xf32>
    tpu.vector_store %arg30[%c0_110, %c0_111], %82 {strides = array<i32>} : memref<144x288xf32, #tpu.memory_space<vmem>>, vector<16x80xf32>,
    %c0_112 = arith.constant 0 : index
    %c1_113 = arith.constant 1 : index
    %84 = vector.load %arg26[%c0_112, %c1_113] : memref<16x110xf32, #tpu.memory_space<vmem>>, vector<16x80xf32>
    %c16_114 = arith.constant 16 : index
    %c0_115 = arith.constant 0 : index
    %85 = vector.load %arg30[%c16_114, %c0_115] : memref<144x288xf32, #tpu.memory_space<vmem>>, vector<16x80xf32>
    tpu.vector_store %arg30[%c16_114, %c0_115], %84 {strides = array<i32>} : memref<144x288xf32, #tpu.memory_space<vmem>>, vector<16x80xf32>,
    %c0_116 = arith.constant 0 : index
    %c2_117 = arith.constant 2 : index
    %86 = vector.load %arg26[%c0_116, %c2_117] : memref<16x110xf32, #tpu.memory_space<vmem>>, vector<16x80xf32>
    %c32_118 = arith.constant 32 : index
    %c0_119 = arith.constant 0 : index
    %87 = vector.load %arg30[%c32_118, %c0_119] : memref<144x288xf32, #tpu.memory_space<vmem>>, vector<16x80xf32>
    tpu.vector_store %arg30[%c32_118, %c0_119], %86 {strides = array<i32>} : memref<144x288xf32, #tpu.memory_space<vmem>>, vector<16x80xf32>,
    %c0_120 = arith.constant 0 : index
    %c10_121 = arith.constant 10 : index
    %88 = vector.load %arg26[%c0_120, %c10_121] : memref<16x110xf32, #tpu.memory_space<vmem>>, vector<16x80xf32>
    %c48_122 = arith.constant 48 : index
    %c0_123 = arith.constant 0 : index
    %89 = vector.load %arg30[%c48_122, %c0_123] : memref<144x288xf32, #tpu.memory_space<vmem>>, vector<16x80xf32>
    tpu.vector_store %arg30[%c48_122, %c0_123], %88 {strides = array<i32>} : memref<144x288xf32, #tpu.memory_space<vmem>>, vector<16x80xf32>,
    %c0_124 = arith.constant 0 : index
    %c11_125 = arith.constant 11 : index
    %90 = vector.load %arg26[%c0_124, %c11_125] : memref<16x110xf32, #tpu.memory_space<vmem>>, vector<16x80xf32>
    %c64_126 = arith.constant 64 : index
    %c0_127 = arith.constant 0 : index
    %91 = vector.load %arg30[%c64_126, %c0_127] : memref<144x288xf32, #tpu.memory_space<vmem>>, vector<16x80xf32>
    tpu.vector_store %arg30[%c64_126, %c0_127], %90 {strides = array<i32>} : memref<144x288xf32, #tpu.memory_space<vmem>>, vector<16x80xf32>,
    %c0_128 = arith.constant 0 : index
    %c12_129 = arith.constant 12 : index
    %92 = vector.load %arg26[%c0_128, %c12_129] : memref<16x110xf32, #tpu.memory_space<vmem>>, vector<16x80xf32>
    %c80 = arith.constant 80 : index
    %c0_130 = arith.constant 0 : index
    %93 = vector.load %arg30[%c80, %c0_130] : memref<144x288xf32, #tpu.memory_space<vmem>>, vector<16x80xf32>
    tpu.vector_store %arg30[%c80, %c0_130], %92 {strides = array<i32>} : memref<144x288xf32, #tpu.memory_space<vmem>>, vector<16x80xf32>,
    %c0_131 = arith.constant 0 : index
    %c20_132 = arith.constant 20 : index
    %94 = vector.load %arg26[%c0_131, %c20_132] : memref<16x110xf32, #tpu.memory_space<vmem>>, vector<16x80xf32>
    %c96 = arith.constant 96 : index
    %c0_133 = arith.constant 0 : index
    %95 = vector.load %arg30[%c96, %c0_133] : memref<144x288xf32, #tpu.memory_space<vmem>>, vector<16x80xf32>
    tpu.vector_store %arg30[%c96, %c0_133], %94 {strides = array<i32>} : memref<144x288xf32, #tpu.memory_space<vmem>>, vector<16x80xf32>,
    %c0_134 = arith.constant 0 : index
    %c21_135 = arith.constant 21 : index
    %96 = vector.load %arg26[%c0_134, %c21_135] : memref<16x110xf32, #tpu.memory_space<vmem>>, vector<16x80xf32>
    %c112 = arith.constant 112 : index
    %c0_136 = arith.constant 0 : index
    %97 = vector.load %arg30[%c112, %c0_136] : memref<144x288xf32, #tpu.memory_space<vmem>>, vector<16x80xf32>
    tpu.vector_store %arg30[%c112, %c0_136], %96 {strides = array<i32>} : memref<144x288xf32, #tpu.memory_space<vmem>>, vector<16x80xf32>,
    %c0_137 = arith.constant 0 : index
    %c22_138 = arith.constant 22 : index
    %98 = vector.load %arg26[%c0_137, %c22_138] : memref<16x110xf32, #tpu.memory_space<vmem>>, vector<16x80xf32>
    %c128 = arith.constant 128 : index
    %c0_139 = arith.constant 0 : index
    %99 = vector.load %arg30[%c128, %c0_139] : memref<144x288xf32, #tpu.memory_space<vmem>>, vector<16x80xf32>
    tpu.vector_store %arg30[%c128, %c0_139], %98 {strides = array<i32>} : memref<144x288xf32, #tpu.memory_space<vmem>>, vector<16x80xf32>,
    %c0_140 = arith.constant 0 : index
    %c0_141 = arith.constant 0 : index
    %100 = vector.load %arg30[%c0_140, %c0_141] : memref<144x288xf32, #tpu.memory_space<vmem>>, vector<144x80xf32>
    %101 = arith.truncf %100 : vector<144x80xf32> to vector<144x80xbf16>
    %cst_142 = arith.constant dense<0.000000e+00> : vector<16x80xf32>
    %102 = tpu.matmul %81, %101, %cst_142 {dimension_numbers = #tpu.dot_dimension_numbers<[1], [0], [0], [1], [0, 0, 1, 1], [], []>} : vector<16x144xbf16>, vector<144x80xbf16>, vector<16x80xf32> -> vector<16x80xf32>
    %cst_143 = arith.constant 0.000000e+00 : f32
    %103 = vector.broadcast %cst_143 : f32 to vector<16x80xf32>
    %104 = arith.maximumf %102, %103 : vector<16x80xf32>
    %c0_144 = arith.constant 0 : index
    %c0_145 = arith.constant 0 : index
    %105 = vector.load %arg15[%c0_144, %c0_145] : memref<80x36xf32, #tpu.memory_space<vmem>>, vector<80x36xf32>
    %cst_146 = arith.constant dense<0.000000e+00> : vector<16x36xf32>
    %106 = tpu.matmul %104, %105, %cst_146 {dimension_numbers = #tpu.dot_dimension_numbers<[1], [0], [0], [1], [0, 0, 1, 1], [], []>} : vector<16x80xf32>, vector<80x36xf32>, vector<16x36xf32> -> vector<16x36xf32>
    %c0_147 = arith.constant 0 : index
    %c0_148 = arith.constant 0 : index
    %107 = vector.load %arg27[%c0_147, %c0_148] : memref<16x42xf32, #tpu.memory_space<vmem>>, vector<16x36xf32>
    tpu.vector_store %arg27[%c0_147, %c0_148], %106 {strides = array<i32>} : memref<16x42xf32, #tpu.memory_space<vmem>>, vector<16x36xf32>,
    %c0_149 = arith.constant 0 : index
    %c0_150 = arith.constant 0 : index
    %108 = vector.load %arg7[%c0_149, %c0_150] : memref<16x144xbf16, #tpu.memory_space<vmem>>, vector<16x144xbf16>
    %c0_151 = arith.constant 0 : index
    %c0_152 = arith.constant 0 : index
    %109 = vector.load %arg27[%c0_151, %c0_152] : memref<16x42xf32, #tpu.memory_space<vmem>>, vector<16x24xf32>
    %c0_153 = arith.constant 0 : index
    %c0_154 = arith.constant 0 : index
    %110 = vector.load %arg30[%c0_153, %c0_154] : memref<144x288xf32, #tpu.memory_space<vmem>>, vector<16x24xf32>
    tpu.vector_store %arg30[%c0_153, %c0_154], %109 {strides = array<i32>} : memref<144x288xf32, #tpu.memory_space<vmem>>, vector<16x24xf32>,
    %c0_155 = arith.constant 0 : index
    %c1_156 = arith.constant 1 : index
    %111 = vector.load %arg27[%c0_155, %c1_156] : memref<16x42xf32, #tpu.memory_space<vmem>>, vector<16x24xf32>
    %c16_157 = arith.constant 16 : index
    %c0_158 = arith.constant 0 : index
    %112 = vector.load %arg30[%c16_157, %c0_158] : memref<144x288xf32, #tpu.memory_space<vmem>>, vector<16x24xf32>
    tpu.vector_store %arg30[%c16_157, %c0_158], %111 {strides = array<i32>} : memref<144x288xf32, #tpu.memory_space<vmem>>, vector<16x24xf32>,
    %c0_159 = arith.constant 0 : index
    %c2_160 = arith.constant 2 : index
    %113 = vector.load %arg27[%c0_159, %c2_160] : memref<16x42xf32, #tpu.memory_space<vmem>>, vector<16x24xf32>
    %c32_161 = arith.constant 32 : index
    %c0_162 = arith.constant 0 : index
    %114 = vector.load %arg30[%c32_161, %c0_162] : memref<144x288xf32, #tpu.memory_space<vmem>>, vector<16x24xf32>
    tpu.vector_store %arg30[%c32_161, %c0_162], %113 {strides = array<i32>} : memref<144x288xf32, #tpu.memory_space<vmem>>, vector<16x24xf32>,
    %c0_163 = arith.constant 0 : index
    %c6 = arith.constant 6 : index
    %115 = vector.load %arg27[%c0_163, %c6] : memref<16x42xf32, #tpu.memory_space<vmem>>, vector<16x24xf32>
    %c48_164 = arith.constant 48 : index
    %c0_165 = arith.constant 0 : index
    %116 = vector.load %arg30[%c48_164, %c0_165] : memref<144x288xf32, #tpu.memory_space<vmem>>, vector<16x24xf32>
    tpu.vector_store %arg30[%c48_164, %c0_165], %115 {strides = array<i32>} : memref<144x288xf32, #tpu.memory_space<vmem>>, vector<16x24xf32>,
    %c0_166 = arith.constant 0 : index
    %c7 = arith.constant 7 : index
    %117 = vector.load %arg27[%c0_166, %c7] : memref<16x42xf32, #tpu.memory_space<vmem>>, vector<16x24xf32>
    %c64_167 = arith.constant 64 : index
    %c0_168 = arith.constant 0 : index
    %118 = vector.load %arg30[%c64_167, %c0_168] : memref<144x288xf32, #tpu.memory_space<vmem>>, vector<16x24xf32>
    tpu.vector_store %arg30[%c64_167, %c0_168], %117 {strides = array<i32>} : memref<144x288xf32, #tpu.memory_space<vmem>>, vector<16x24xf32>,
    %c0_169 = arith.constant 0 : index
    %c8_170 = arith.constant 8 : index
    %119 = vector.load %arg27[%c0_169, %c8_170] : memref<16x42xf32, #tpu.memory_space<vmem>>, vector<16x24xf32>
    %c80_171 = arith.constant 80 : index
    %c0_172 = arith.constant 0 : index
    %120 = vector.load %arg30[%c80_171, %c0_172] : memref<144x288xf32, #tpu.memory_space<vmem>>, vector<16x24xf32>
    tpu.vector_store %arg30[%c80_171, %c0_172], %119 {strides = array<i32>} : memref<144x288xf32, #tpu.memory_space<vmem>>, vector<16x24xf32>,
    %c0_173 = arith.constant 0 : index
    %c12_174 = arith.constant 12 : index
    %121 = vector.load %arg27[%c0_173, %c12_174] : memref<16x42xf32, #tpu.memory_space<vmem>>, vector<16x24xf32>
    %c96_175 = arith.constant 96 : index
    %c0_176 = arith.constant 0 : index
    %122 = vector.load %arg30[%c96_175, %c0_176] : memref<144x288xf32, #tpu.memory_space<vmem>>, vector<16x24xf32>
    tpu.vector_store %arg30[%c96_175, %c0_176], %121 {strides = array<i32>} : memref<144x288xf32, #tpu.memory_space<vmem>>, vector<16x24xf32>,
    %c0_177 = arith.constant 0 : index
    %c13 = arith.constant 13 : index
    %123 = vector.load %arg27[%c0_177, %c13] : memref<16x42xf32, #tpu.memory_space<vmem>>, vector<16x24xf32>
    %c112_178 = arith.constant 112 : index
    %c0_179 = arith.constant 0 : index
    %124 = vector.load %arg30[%c112_178, %c0_179] : memref<144x288xf32, #tpu.memory_space<vmem>>, vector<16x24xf32>
    tpu.vector_store %arg30[%c112_178, %c0_179], %123 {strides = array<i32>} : memref<144x288xf32, #tpu.memory_space<vmem>>, vector<16x24xf32>,
    %c0_180 = arith.constant 0 : index
    %c14 = arith.constant 14 : index
    %125 = vector.load %arg27[%c0_180, %c14] : memref<16x42xf32, #tpu.memory_space<vmem>>, vector<16x24xf32>
    %c128_181 = arith.constant 128 : index
    %c0_182 = arith.constant 0 : index
    %126 = vector.load %arg30[%c128_181, %c0_182] : memref<144x288xf32, #tpu.memory_space<vmem>>, vector<16x24xf32>
    tpu.vector_store %arg30[%c128_181, %c0_182], %125 {strides = array<i32>} : memref<144x288xf32, #tpu.memory_space<vmem>>, vector<16x24xf32>,
    %c0_183 = arith.constant 0 : index
    %c0_184 = arith.constant 0 : index
    %127 = vector.load %arg30[%c0_183, %c0_184] : memref<144x288xf32, #tpu.memory_space<vmem>>, vector<144x24xf32>
    %128 = arith.truncf %127 : vector<144x24xf32> to vector<144x24xbf16>
    %cst_185 = arith.constant dense<0.000000e+00> : vector<16x24xf32>
    %129 = tpu.matmul %108, %128, %cst_185 {dimension_numbers = #tpu.dot_dimension_numbers<[1], [0], [0], [1], [0, 0, 1, 1], [], []>} : vector<16x144xbf16>, vector<144x24xbf16>, vector<16x24xf32> -> vector<16x24xf32>
    %cst_186 = arith.constant 0.000000e+00 : f32
    %130 = vector.broadcast %cst_186 : f32 to vector<16x24xf32>
    %131 = arith.maximumf %129, %130 : vector<16x24xf32>
    %c0_187 = arith.constant 0 : index
    %c0_188 = arith.constant 0 : index
    %132 = vector.load %arg19[%c0_187, %c0_188] : memref<24x16xf32, #tpu.memory_space<vmem>>, vector<24x16xf32>
    %cst_189 = arith.constant dense<0.000000e+00> : vector<16x16xf32>
    %133 = tpu.matmul %131, %132, %cst_189 {dimension_numbers = #tpu.dot_dimension_numbers<[1], [0], [0], [1], [0, 0, 1, 1], [], []>} : vector<16x24xf32>, vector<24x16xf32>, vector<16x16xf32> -> vector<16x16xf32>
    %c0_190 = arith.constant 0 : index
    %c0_191 = arith.constant 0 : index
    %c0_192 = arith.constant 0 : index
    %134 = vector.load %arg23[%c0_190, %c0_191, %c0_192] : memref<1x16x16xf32, #tpu.memory_space<vmem>>, vector<1x16x16xf32>
    %135 = vector.shape_cast %134 : vector<1x16x16xf32> to vector<16x16xf32>
    %136 = vector.shape_cast %133 : vector<16x16xf32> to vector<1x16x16xf32>
    tpu.vector_store %arg23[%c0_190, %c0_191, %c0_192], %136 {strides = array<i32>} : memref<1x16x16xf32, #tpu.memory_space<vmem>>, vector<1x16x16xf32>,
    %c0_193 = arith.constant 0 : index
    %c0_194 = arith.constant 0 : index
    %137 = vector.load %arg17[%c0_193, %c0_194] : memref<24x36xf32, #tpu.memory_space<vmem>>, vector<24x36xf32>
    %cst_195 = arith.constant dense<0.000000e+00> : vector<16x36xf32>
    %138 = tpu.matmul %131, %137, %cst_195 {dimension_numbers = #tpu.dot_dimension_numbers<[1], [0], [0], [1], [0, 0, 1, 1], [], []>} : vector<16x24xf32>, vector<24x36xf32>, vector<16x36xf32> -> vector<16x36xf32>
    %c0_196 = arith.constant 0 : index
    %c0_197 = arith.constant 0 : index
    %139 = vector.load %arg28[%c0_196, %c0_197] : memref<32x42xf32, #tpu.memory_space<vmem>>, vector<16x36xf32>
    tpu.vector_store %arg28[%c0_196, %c0_197], %138 {strides = array<i32>} : memref<32x42xf32, #tpu.memory_space<vmem>>, vector<16x36xf32>,
    %c0_198 = arith.constant 0 : index
    %c0_199 = arith.constant 0 : index
    %c0_200 = arith.constant 0 : index
    %140 = vector.load %arg3[%c0_198, %c0_199, %c0_200] : memref<1x16x36xf32, #tpu.memory_space<vmem>>, vector<1x16x36xf32>
    %141 = vector.shape_cast %140 : vector<1x16x36xf32> to vector<16x36xf32>
    %c16_201 = arith.constant 16 : index
    %c0_202 = arith.constant 0 : index
    %142 = vector.load %arg28[%c16_201, %c0_202] : memref<32x42xf32, #tpu.memory_space<vmem>>, vector<16x36xf32>
    tpu.vector_store %arg28[%c16_201, %c0_202], %141 {strides = array<i32>} : memref<32x42xf32, #tpu.memory_space<vmem>>, vector<16x36xf32>,
    %c0_203 = arith.constant 0 : index
    %c0_204 = arith.constant 0 : index
    %143 = vector.load %arg8[%c0_203, %c0_204] : memref<64x128xbf16, #tpu.memory_space<vmem>>, vector<64x128xbf16>
    %c0_205 = arith.constant 0 : index
    %c7_206 = arith.constant 7 : index
    %144 = vector.load %arg28[%c0_205, %c7_206] : memref<32x42xf32, #tpu.memory_space<vmem>>, vector<32x24xf32>
    %c0_207 = arith.constant 0 : index
    %c0_208 = arith.constant 0 : index
    %145 = vector.load %arg30[%c0_207, %c0_208] : memref<144x288xf32, #tpu.memory_space<vmem>>, vector<32x24xf32>
    tpu.vector_store %arg30[%c0_207, %c0_208], %144 {strides = array<i32>} : memref<144x288xf32, #tpu.memory_space<vmem>>, vector<32x24xf32>,
    %c0_209 = arith.constant 0 : index
    %c8_210 = arith.constant 8 : index
    %146 = vector.load %arg28[%c0_209, %c8_210] : memref<32x42xf32, #tpu.memory_space<vmem>>, vector<32x24xf32>
    %c32_211 = arith.constant 32 : index
    %c0_212 = arith.constant 0 : index
    %147 = vector.load %arg30[%c32_211, %c0_212] : memref<144x288xf32, #tpu.memory_space<vmem>>, vector<32x24xf32>
    tpu.vector_store %arg30[%c32_211, %c0_212], %146 {strides = array<i32>} : memref<144x288xf32, #tpu.memory_space<vmem>>, vector<32x24xf32>,
    %c0_213 = arith.constant 0 : index
    %c13_214 = arith.constant 13 : index
    %148 = vector.load %arg28[%c0_213, %c13_214] : memref<32x42xf32, #tpu.memory_space<vmem>>, vector<32x24xf32>
    %c64_215 = arith.constant 64 : index
    %c0_216 = arith.constant 0 : index
    %149 = vector.load %arg30[%c64_215, %c0_216] : memref<144x288xf32, #tpu.memory_space<vmem>>, vector<32x24xf32>
    tpu.vector_store %arg30[%c64_215, %c0_216], %148 {strides = array<i32>} : memref<144x288xf32, #tpu.memory_space<vmem>>, vector<32x24xf32>,
    %c0_217 = arith.constant 0 : index
    %c14_218 = arith.constant 14 : index
    %150 = vector.load %arg28[%c0_217, %c14_218] : memref<32x42xf32, #tpu.memory_space<vmem>>, vector<32x24xf32>
    %c96_219 = arith.constant 96 : index
    %c0_220 = arith.constant 0 : index
    %151 = vector.load %arg30[%c96_219, %c0_220] : memref<144x288xf32, #tpu.memory_space<vmem>>, vector<32x24xf32>
    tpu.vector_store %arg30[%c96_219, %c0_220], %150 {strides = array<i32>} : memref<144x288xf32, #tpu.memory_space<vmem>>, vector<32x24xf32>,
    %c0_221 = arith.constant 0 : index
    %c0_222 = arith.constant 0 : index
    %152 = vector.load %arg30[%c0_221, %c0_222] : memref<144x288xf32, #tpu.memory_space<vmem>>, vector<128x24xf32>
    %153 = arith.truncf %152 : vector<128x24xf32> to vector<128x24xbf16>
    %cst_223 = arith.constant dense<0.000000e+00> : vector<64x24xf32>
    %154 = tpu.matmul %143, %153, %cst_223 {dimension_numbers = #tpu.dot_dimension_numbers<[1], [0], [0], [1], [0, 0, 1, 1], [], []>} : vector<64x128xbf16>, vector<128x24xbf16>, vector<64x24xf32> -> vector<64x24xf32>
    %c0_224 = arith.constant 0 : index
    %c0_225 = arith.constant 0 : index
    %155 = vector.load %arg10[%c0_224, %c0_225] : memref<64x1xf32, #tpu.memory_space<vmem>>, vector<64x1xf32>
    %156 = vector.broadcast %155 : vector<64x1xf32> to vector<64x24xf32>
    %157 = arith.mulf %154, %156 : vector<64x24xf32>
    %c0_226 = arith.constant 0 : index
    %c0_227 = arith.constant 0 : index
    %158 = vector.load %arg11[%c0_226, %c0_227] : memref<64x1xf32, #tpu.memory_space<vmem>>, vector<64x1xf32>
    %159 = vector.broadcast %158 : vector<64x1xf32> to vector<64x24xf32>
    %160 = arith.addf %157, %159 : vector<64x24xf32>
    %cst_228 = arith.constant 0.000000e+00 : f32
    %161 = vector.broadcast %cst_228 : f32 to vector<64x24xf32>
    %162 = arith.maximumf %160, %161 : vector<64x24xf32>
    %163 = vector.extract_strided_slice %162 {offsets = [0, 0], sizes = [16, 24], strides = [1, 1]} : vector<64x24xf32> to vector<16x24xf32>
    %c0_229 = arith.constant 0 : index
    %c0_230 = arith.constant 0 : index
    %c0_231 = arith.constant 0 : index
    %164 = vector.load %arg20[%c0_229, %c0_230, %c0_231] : memref<4x24x100xf32, #tpu.memory_space<vmem>>, vector<1x24x100xf32>
    %165 = vector.shape_cast %164 : vector<1x24x100xf32> to vector<24x100xf32>
    %cst_232 = arith.constant dense<0.000000e+00> : vector<16x100xf32>
    %166 = tpu.matmul %163, %165, %cst_232 {dimension_numbers = #tpu.dot_dimension_numbers<[1], [0], [0], [1], [0, 0, 1, 1], [], []>} : vector<16x24xf32>, vector<24x100xf32>, vector<16x100xf32> -> vector<16x100xf32>
    %167 = vector.extract_strided_slice %162 {offsets = [16, 0], sizes = [16, 24], strides = [1, 1]} : vector<64x24xf32> to vector<16x24xf32>
    %c1_233 = arith.constant 1 : index
    %c0_234 = arith.constant 0 : index
    %c0_235 = arith.constant 0 : index
    %168 = vector.load %arg20[%c1_233, %c0_234, %c0_235] : memref<4x24x100xf32, #tpu.memory_space<vmem>>, vector<1x24x100xf32>
    %169 = vector.shape_cast %168 : vector<1x24x100xf32> to vector<24x100xf32>
    %cst_236 = arith.constant dense<0.000000e+00> : vector<16x100xf32>
    %170 = tpu.matmul %167, %169, %cst_236 {dimension_numbers = #tpu.dot_dimension_numbers<[1], [0], [0], [1], [0, 0, 1, 1], [], []>} : vector<16x24xf32>, vector<24x100xf32>, vector<16x100xf32> -> vector<16x100xf32>
    %171 = arith.addf %166, %170 : vector<16x100xf32>
    %172 = vector.extract_strided_slice %162 {offsets = [32, 0], sizes = [16, 24], strides = [1, 1]} : vector<64x24xf32> to vector<16x24xf32>
    %c2_237 = arith.constant 2 : index
    %c0_238 = arith.constant 0 : index
    %c0_239 = arith.constant 0 : index
    %173 = vector.load %arg20[%c2_237, %c0_238, %c0_239] : memref<4x24x100xf32, #tpu.memory_space<vmem>>, vector<1x24x100xf32>
    %174 = vector.shape_cast %173 : vector<1x24x100xf32> to vector<24x100xf32>
    %cst_240 = arith.constant dense<0.000000e+00> : vector<16x100xf32>
    %175 = tpu.matmul %172, %174, %cst_240 {dimension_numbers = #tpu.dot_dimension_numbers<[1], [0], [0], [1], [0, 0, 1, 1], [], []>} : vector<16x24xf32>, vector<24x100xf32>, vector<16x100xf32> -> vector<16x100xf32>
    %176 = arith.addf %171, %175 : vector<16x100xf32>
    %177 = vector.extract_strided_slice %162 {offsets = [48, 0], sizes = [16, 24], strides = [1, 1]} : vector<64x24xf32> to vector<16x24xf32>
    %c3 = arith.constant 3 : index
    %c0_241 = arith.constant 0 : index
    %c0_242 = arith.constant 0 : index
    %178 = vector.load %arg20[%c3, %c0_241, %c0_242] : memref<4x24x100xf32, #tpu.memory_space<vmem>>, vector<1x24x100xf32>
    %179 = vector.shape_cast %178 : vector<1x24x100xf32> to vector<24x100xf32>
    %cst_243 = arith.constant dense<0.000000e+00> : vector<16x100xf32>
    %180 = tpu.matmul %177, %179, %cst_243 {dimension_numbers = #tpu.dot_dimension_numbers<[1], [0], [0], [1], [0, 0, 1, 1], [], []>} : vector<16x24xf32>, vector<24x100xf32>, vector<16x100xf32> -> vector<16x100xf32>
    %181 = arith.addf %176, %180 : vector<16x100xf32>
    %c0_244 = arith.constant 0 : index
    %c0_245 = arith.constant 0 : index
    %182 = vector.load %arg29[%c0_244, %c0_245] : memref<16x110xf32, #tpu.memory_space<vmem>>, vector<16x100xf32>
    tpu.vector_store %arg29[%c0_244, %c0_245], %181 {strides = array<i32>} : memref<16x110xf32, #tpu.memory_space<vmem>>, vector<16x100xf32>,
    %c0_246 = arith.constant 0 : index
    %c0_247 = arith.constant 0 : index
    %183 = vector.load %arg9[%c0_246, %c0_247] : memref<32x64xbf16, #tpu.memory_space<vmem>>, vector<32x64xbf16>
    %c0_248 = arith.constant 0 : index
    %c11_249 = arith.constant 11 : index
    %184 = vector.load %arg29[%c0_248, %c11_249] : memref<16x110xf32, #tpu.memory_space<vmem>>, vector<16x80xf32>
    %c0_250 = arith.constant 0 : index
    %c0_251 = arith.constant 0 : index
    %185 = vector.load %arg30[%c0_250, %c0_251] : memref<144x288xf32, #tpu.memory_space<vmem>>, vector<16x80xf32>
    tpu.vector_store %arg30[%c0_250, %c0_251], %184 {strides = array<i32>} : memref<144x288xf32, #tpu.memory_space<vmem>>, vector<16x80xf32>,
    %c0_252 = arith.constant 0 : index
    %c12_253 = arith.constant 12 : index
    %186 = vector.load %arg29[%c0_252, %c12_253] : memref<16x110xf32, #tpu.memory_space<vmem>>, vector<16x80xf32>
    %c16_254 = arith.constant 16 : index
    %c0_255 = arith.constant 0 : index
    %187 = vector.load %arg30[%c16_254, %c0_255] : memref<144x288xf32, #tpu.memory_space<vmem>>, vector<16x80xf32>
    tpu.vector_store %arg30[%c16_254, %c0_255], %186 {strides = array<i32>} : memref<144x288xf32, #tpu.memory_space<vmem>>, vector<16x80xf32>,
    %c0_256 = arith.constant 0 : index
    %c21_257 = arith.constant 21 : index
    %188 = vector.load %arg29[%c0_256, %c21_257] : memref<16x110xf32, #tpu.memory_space<vmem>>, vector<16x80xf32>
    %c32_258 = arith.constant 32 : index
    %c0_259 = arith.constant 0 : index
    %189 = vector.load %arg30[%c32_258, %c0_259] : memref<144x288xf32, #tpu.memory_space<vmem>>, vector<16x80xf32>
    tpu.vector_store %arg30[%c32_258, %c0_259], %188 {strides = array<i32>} : memref<144x288xf32, #tpu.memory_space<vmem>>, vector<16x80xf32>,
    %c0_260 = arith.constant 0 : index
    %c22_261 = arith.constant 22 : index
    %190 = vector.load %arg29[%c0_260, %c22_261] : memref<16x110xf32, #tpu.memory_space<vmem>>, vector<16x80xf32>
    %c48_262 = arith.constant 48 : index
    %c0_263 = arith.constant 0 : index
    %191 = vector.load %arg30[%c48_262, %c0_263] : memref<144x288xf32, #tpu.memory_space<vmem>>, vector<16x80xf32>
    tpu.vector_store %arg30[%c48_262, %c0_263], %190 {strides = array<i32>} : memref<144x288xf32, #tpu.memory_space<vmem>>, vector<16x80xf32>,
    %c0_264 = arith.constant 0 : index
    %c0_265 = arith.constant 0 : index
    %192 = vector.load %arg30[%c0_264, %c0_265] : memref<144x288xf32, #tpu.memory_space<vmem>>, vector<64x80xf32>
    %193 = arith.truncf %192 : vector<64x80xf32> to vector<64x80xbf16>
    %cst_266 = arith.constant dense<0.000000e+00> : vector<32x80xf32>
    %194 = tpu.matmul %183, %193, %cst_266 {dimension_numbers = #tpu.dot_dimension_numbers<[1], [0], [0], [1], [0, 0, 1, 1], [], []>} : vector<32x64xbf16>, vector<64x80xbf16>, vector<32x80xf32> -> vector<32x80xf32>
    %c0_267 = arith.constant 0 : index
    %c0_268 = arith.constant 0 : index
    %195 = vector.load %arg12[%c0_267, %c0_268] : memref<32x1xf32, #tpu.memory_space<vmem>>, vector<32x1xf32>
    %196 = vector.broadcast %195 : vector<32x1xf32> to vector<32x80xf32>
    %197 = arith.mulf %194, %196 : vector<32x80xf32>
    %c0_269 = arith.constant 0 : index
    %c0_270 = arith.constant 0 : index
    %198 = vector.load %arg13[%c0_269, %c0_270] : memref<32x1xf32, #tpu.memory_space<vmem>>, vector<32x1xf32>
    %199 = vector.broadcast %198 : vector<32x1xf32> to vector<32x80xf32>
    %200 = arith.addf %197, %199 : vector<32x80xf32>
    %201 = vector.extract_strided_slice %200 {offsets = [0, 0], sizes = [8, 80], strides = [1, 1]} : vector<32x80xf32> to vector<8x80xf32>
    %c0_271 = arith.constant 0 : index
    %c0_272 = arith.constant 0 : index
    %c0_273 = arith.constant 0 : index
    %202 = vector.load %arg21[%c0_271, %c0_272, %c0_273] : memref<4x80x256xf32, #tpu.memory_space<vmem>>, vector<1x80x256xf32>
    %203 = vector.shape_cast %202 : vector<1x80x256xf32> to vector<80x256xf32>
    %cst_274 = arith.constant dense<0.000000e+00> : vector<8x256xf32>
    %204 = tpu.matmul %201, %203, %cst_274 {dimension_numbers = #tpu.dot_dimension_numbers<[1], [0], [0], [1], [0, 0, 1, 1], [], []>} : vector<8x80xf32>, vector<80x256xf32>, vector<8x256xf32> -> vector<8x256xf32>
    %205 = vector.extract_strided_slice %200 {offsets = [8, 0], sizes = [8, 80], strides = [1, 1]} : vector<32x80xf32> to vector<8x80xf32>
    %c1_275 = arith.constant 1 : index
    %c0_276 = arith.constant 0 : index
    %c0_277 = arith.constant 0 : index
    %206 = vector.load %arg21[%c1_275, %c0_276, %c0_277] : memref<4x80x256xf32, #tpu.memory_space<vmem>>, vector<1x80x256xf32>
    %207 = vector.shape_cast %206 : vector<1x80x256xf32> to vector<80x256xf32>
    %cst_278 = arith.constant dense<0.000000e+00> : vector<8x256xf32>
    %208 = tpu.matmul %205, %207, %cst_278 {dimension_numbers = #tpu.dot_dimension_numbers<[1], [0], [0], [1], [0, 0, 1, 1], [], []>} : vector<8x80xf32>, vector<80x256xf32>, vector<8x256xf32> -> vector<8x256xf32>
    %209 = arith.addf %204, %208 : vector<8x256xf32>
    %210 = vector.extract_strided_slice %200 {offsets = [16, 0], sizes = [8, 80], strides = [1, 1]} : vector<32x80xf32> to vector<8x80xf32>
    %c2_279 = arith.constant 2 : index
    %c0_280 = arith.constant 0 : index
    %c0_281 = arith.constant 0 : index
    %211 = vector.load %arg21[%c2_279, %c0_280, %c0_281] : memref<4x80x256xf32, #tpu.memory_space<vmem>>, vector<1x80x256xf32>
    %212 = vector.shape_cast %211 : vector<1x80x256xf32> to vector<80x256xf32>
    %cst_282 = arith.constant dense<0.000000e+00> : vector<8x256xf32>
    %213 = tpu.matmul %210, %212, %cst_282 {dimension_numbers = #tpu.dot_dimension_numbers<[1], [0], [0], [1], [0, 0, 1, 1], [], []>} : vector<8x80xf32>, vector<80x256xf32>, vector<8x256xf32> -> vector<8x256xf32>
    %214 = arith.addf %209, %213 : vector<8x256xf32>
    %215 = vector.extract_strided_slice %200 {offsets = [24, 0], sizes = [8, 80], strides = [1, 1]} : vector<32x80xf32> to vector<8x80xf32>
    %c3_283 = arith.constant 3 : index
    %c0_284 = arith.constant 0 : index
    %c0_285 = arith.constant 0 : index
    %216 = vector.load %arg21[%c3_283, %c0_284, %c0_285] : memref<4x80x256xf32, #tpu.memory_space<vmem>>, vector<1x80x256xf32>
    %217 = vector.shape_cast %216 : vector<1x80x256xf32> to vector<80x256xf32>
    %cst_286 = arith.constant dense<0.000000e+00> : vector<8x256xf32>
    %218 = tpu.matmul %215, %217, %cst_286 {dimension_numbers = #tpu.dot_dimension_numbers<[1], [0], [0], [1], [0, 0, 1, 1], [], []>} : vector<8x80xf32>, vector<80x256xf32>, vector<8x256xf32> -> vector<8x256xf32>
    %219 = arith.addf %214, %218 : vector<8x256xf32>
    %c0_287 = arith.constant 0 : index
    %c0_288 = arith.constant 0 : index
    %c0_289 = arith.constant 0 : index
    %220 = vector.load %arg24[%c0_287, %c0_288, %c0_289] : memref<1x8x256xf32, #tpu.memory_space<vmem>>, vector<1x8x256xf32>
    %221 = vector.shape_cast %220 : vector<1x8x256xf32> to vector<8x256xf32>
    %222 = vector.shape_cast %219 : vector<8x256xf32> to vector<1x8x256xf32>
    tpu.vector_store %arg24[%c0_287, %c0_288, %c0_289], %222 {strides = array<i32>} : memref<1x8x256xf32, #tpu.memory_space<vmem>>, vector<1x8x256xf32>,
    return
  }
  func.func @transform_0(%arg0: i32) -> (i32, i32, i32) {
    %c0_i32 = arith.constant 0 : i32
    %c0_i32_0 = arith.constant 0 : i32
    %c0_i32_1 = arith.constant 0 : i32
    return %arg0, %c0_i32, %c0_i32_0 : i32, i32, i32
  }
  func.func @transform_1(%arg0: i32) -> (i32, i32, i32) {
    %c0_i32 = arith.constant 0 : i32
    %c0_i32_0 = arith.constant 0 : i32
    %c0_i32_1 = arith.constant 0 : i32
    return %arg0, %c0_i32, %c0_i32_0 : i32, i32, i32
  }
  func.func @transform_2(%arg0: i32) -> (i32, i32, i32) {
    %c0_i32 = arith.constant 0 : i32
    %c0_i32_0 = arith.constant 0 : i32
    %c0_i32_1 = arith.constant 0 : i32
    return %arg0, %c0_i32, %c0_i32_0 : i32, i32, i32
  }
  func.func @transform_3(%arg0: i32) -> (i32, i32) {
    %c0_i32 = arith.constant 0 : i32
    %c0_i32_0 = arith.constant 0 : i32
    %c0_i32_1 = arith.constant 0 : i32
    return %c0_i32, %c0_i32_0 : i32, i32
  }
  func.func @transform_4(%arg0: i32) -> (i32, i32) {
    %c0_i32 = arith.constant 0 : i32
    %c0_i32_0 = arith.constant 0 : i32
    %c0_i32_1 = arith.constant 0 : i32
    return %c0_i32, %c0_i32_0 : i32, i32
  }
  func.func @transform_5(%arg0: i32) -> (i32, i32) {
    %c0_i32 = arith.constant 0 : i32
    %c0_i32_0 = arith.constant 0 : i32
    %c0_i32_1 = arith.constant 0 : i32
    return %c0_i32, %c0_i32_0 : i32, i32
  }
  func.func @transform_6(%arg0: i32) -> (i32, i32) {
    %c0_i32 = arith.constant 0 : i32
    %c0_i32_0 = arith.constant 0 : i32
    %c0_i32_1 = arith.constant 0 : i32
    return %c0_i32, %c0_i32_0 : i32, i32
  }
  func.func @transform_7(%arg0: i32) -> (i32, i32) {
    %c0_i32 = arith.constant 0 : i32
    %c0_i32_0 = arith.constant 0 : i32
    %c0_i32_1 = arith.constant 0 : i32
    return %c0_i32, %c0_i32_0 : i32, i32
  }
  func.func @transform_8(%arg0: i32) -> (i32, i32) {
    %c0_i32 = arith.constant 0 : i32
    %c0_i32_0 = arith.constant 0 : i32
    %c0_i32_1 = arith.constant 0 : i32
    return %c0_i32, %c0_i32_0 : i32, i32
  }
  func.func @transform_9(%arg0: i32) -> (i32, i32) {
    %c0_i32 = arith.constant 0 : i32
    %c0_i32_0 = arith.constant 0 : i32
    %c0_i32_1 = arith.constant 0 : i32
    return %c0_i32, %c0_i32_0 : i32, i32
  }
  func.func @transform_10(%arg0: i32) -> (i32, i32) {
    %c0_i32 = arith.constant 0 : i32
    %c0_i32_0 = arith.constant 0 : i32
    %c0_i32_1 = arith.constant 0 : i32
    return %c0_i32, %c0_i32_0 : i32, i32
  }
  func.func @transform_11(%arg0: i32) -> (i32, i32) {
    %c0_i32 = arith.constant 0 : i32
    %c0_i32_0 = arith.constant 0 : i32
    %c0_i32_1 = arith.constant 0 : i32
    return %c0_i32, %c0_i32_0 : i32, i32
  }
  func.func @transform_12(%arg0: i32) -> (i32, i32) {
    %c0_i32 = arith.constant 0 : i32
    %c0_i32_0 = arith.constant 0 : i32
    %c0_i32_1 = arith.constant 0 : i32
    return %c0_i32, %c0_i32_0 : i32, i32
  }
  func.func @transform_13(%arg0: i32) -> (i32, i32) {
    %c0_i32 = arith.constant 0 : i32
    %c0_i32_0 = arith.constant 0 : i32
    %c0_i32_1 = arith.constant 0 : i32
    return %c0_i32, %c0_i32_0 : i32, i32
  }
  func.func @transform_14(%arg0: i32) -> (i32, i32) {
    %c0_i32 = arith.constant 0 : i32
    %c0_i32_0 = arith.constant 0 : i32
    %c0_i32_1 = arith.constant 0 : i32
    return %c0_i32, %c0_i32_0 : i32, i32
  }
  func.func @transform_15(%arg0: i32) -> (i32, i32) {
    %c0_i32 = arith.constant 0 : i32
    %c0_i32_0 = arith.constant 0 : i32
    %c0_i32_1 = arith.constant 0 : i32
    return %c0_i32, %c0_i32_0 : i32, i32
  }
  func.func @transform_16(%arg0: i32) -> (i32, i32) {
    %c0_i32 = arith.constant 0 : i32
    %c0_i32_0 = arith.constant 0 : i32
    %c0_i32_1 = arith.constant 0 : i32
    return %c0_i32, %c0_i32_0 : i32, i32
  }
  func.func @transform_17(%arg0: i32) -> (i32, i32) {
    %c0_i32 = arith.constant 0 : i32
    %c0_i32_0 = arith.constant 0 : i32
    %c0_i32_1 = arith.constant 0 : i32
    return %c0_i32, %c0_i32_0 : i32, i32
  }
  func.func @transform_18(%arg0: i32) -> (i32, i32) {
    %c0_i32 = arith.constant 0 : i32
    %c0_i32_0 = arith.constant 0 : i32
    %c0_i32_1 = arith.constant 0 : i32
    return %c0_i32, %c0_i32_0 : i32, i32
  }
  func.func @transform_19(%arg0: i32) -> (i32, i32, i32) {
    %c0_i32 = arith.constant 0 : i32
    %c0_i32_0 = arith.constant 0 : i32
    %c0_i32_1 = arith.constant 0 : i32
    %c0_i32_2 = arith.constant 0 : i32
    return %c0_i32, %c0_i32_0, %c0_i32_1 : i32, i32, i32
  }
  func.func @transform_20(%arg0: i32) -> (i32, i32, i32) {
    %c0_i32 = arith.constant 0 : i32
    %c0_i32_0 = arith.constant 0 : i32
    %c0_i32_1 = arith.constant 0 : i32
    %c0_i32_2 = arith.constant 0 : i32
    return %c0_i32, %c0_i32_0, %c0_i32_1 : i32, i32, i32
  }
  func.func @transform_21(%arg0: i32) -> (i32, i32, i32) {
    %c0_i32 = arith.constant 0 : i32
    %c0_i32_0 = arith.constant 0 : i32
    %c0_i32_1 = arith.constant 0 : i32
    return %arg0, %c0_i32, %c0_i32_0 : i32, i32, i32
  }
  func.func @transform_22(%arg0: i32) -> (i32, i32, i32) {
    %c0_i32 = arith.constant 0 : i32
    %c0_i32_0 = arith.constant 0 : i32
    %c0_i32_1 = arith.constant 0 : i32
    return %arg0, %c0_i32, %c0_i32_0 : i32, i32, i32
  }
  func.func @transform_23(%arg0: i32) -> (i32, i32, i32) {
    %c0_i32 = arith.constant 0 : i32
    %c0_i32_0 = arith.constant 0 : i32
    %c0_i32_1 = arith.constant 0 : i32
    return %arg0, %c0_i32, %c0_i32_0 : i32, i32, i32
  }
}

</mosaic_0001>

<llo_original>
// kernel: tile.23
$region0: #{tile.23}
  #allocation0 [shape = 's32[1]{0}', space=sflag, size = 0x4, scoped, tag = 'scoped memory for tile.23']
  %s0 = inlined_call_operand.vmem [shape: f32[16], index: 0, kind: input, shape index: {}]
  %s1 = inlined_call_operand.vmem [shape: f32[4,16], index: 1, kind: output, shape index: {}]
  // Predicated region
  $region2: #{tile.23} parent=0 // pred_check
    _
  $region3: #{tile.23} parent=0 // pred_check_branch
    %3 = sbr.rel (0) target = $region5
  $region4: #{tile.23} parent=0 // pred_region
    _
  $region5: #{tile.23} parent=0 // pred_fallthru
    _
  %v4 = vld [vmem:[%s0] ss:$0 sm:$0xff]
  %5 = vst [vmem:[%s1] sm:$0xf] %v4

// kernel: tile.0
$region0: #{tile.0}
  %s0 = inlined_call_operand.vmem [shape: f32[4,16], index: 0, kind: input, shape index: {}]
  %s1 = inlined_call_operand.vmem [shape: f32[64,1], index: 1, kind: output, shape index: {}]
  $region1: #{tile.0} parent=0
    #allocation0 [shape = 'u8[4096]{0}', space=vmem, size = 0x1000, scoped, tag = 'scoped mem for input reshape']
    %s3 = sshll.u32 1, 4
    %s4 = ssub.s32 %s3, 1
    %v5 = vld [vmem:[%s0] sm:%s4]
    %6 = vst [vmem:[#allocation0] sm:%s4] %v5
    %v7 = vld [vmem:[#allocation0] sm:$0xf]
    %vm8 = vcmask 7168
    %9 = vst.msk [vmem:[%s1] ss:$16 sm:$0x3] %vm8, %v7
    %10 = vst.msk [vmem:[%s1] ss:$16 sm:$0xc] %vm8, %v7
    %v11 = vld [vmem:[#allocation0] sm:$0xf]
    %12 = vrot.lane.b32.xlu0 %v11, 127
    %v13 = vpop.permute.xlu0 %12
    %vm14 = vcmask 7168
    %s15 = scalar_lea.vmem %s1, 1
    %16 = vst.msk [vmem:[%s15] ss:$16 sm:$0x3] %vm14, %v13
    %s17 = scalar_lea.vmem %s1, 1
    %18 = vst.msk [vmem:[%s17] ss:$16 sm:$0xc] %vm14, %v13
    %v19 = vld [vmem:[#allocation0] sm:$0xf]
    %20 = vrot.lane.b32.xlu0 %v19, 126
    %v21 = vpop.permute.xlu0 %20
    %vm22 = vcmask 7168
    %s23 = scalar_lea.vmem %s1, 2
    %24 = vst.msk [vmem:[%s23] ss:$16 sm:$0x3] %vm22, %v21
    %s25 = scalar_lea.vmem %s1, 2
    %26 = vst.msk [vmem:[%s25] ss:$16 sm:$0xc] %vm22, %v21
    %v27 = vld [vmem:[#allocation0] sm:$0xf]
    %28 = vrot.lane.b32.xlu0 %v27, 125
    %v29 = vpop.permute.xlu0 %28
    %vm30 = vcmask 7168
    %s31 = scalar_lea.vmem %s1, 3
    %32 = vst.msk [vmem:[%s31] ss:$16 sm:$0x3] %vm30, %v29
    %s33 = scalar_lea.vmem %s1, 3
    %34 = vst.msk [vmem:[%s33] ss:$16 sm:$0xc] %vm30, %v29
    %v35 = vld [vmem:[#allocation0] sm:$0xf]
    %36 = vrot.lane.b32.xlu0 %v35, 124
    %v37 = vpop.permute.xlu0 %36
    %vm38 = vcmask 7168
    %s39 = scalar_lea.vmem %s1, 4
    %40 = vst.msk [vmem:[%s39] ss:$16 sm:$0x3] %vm38, %v37
    %s41 = scalar_lea.vmem %s1, 4
    %42 = vst.msk [vmem:[%s41] ss:$16 sm:$0xc] %vm38, %v37
    %v43 = vld [vmem:[#allocation0] sm:$0xf]
    %44 = vrot.lane.b32.xlu0 %v43, 123
    %v45 = vpop.permute.xlu0 %44
    %vm46 = vcmask 7168
    %s47 = scalar_lea.vmem %s1, 5
    %48 = vst.msk [vmem:[%s47] ss:$16 sm:$0x3] %vm46, %v45
    %s49 = scalar_lea.vmem %s1, 5
    %50 = vst.msk [vmem:[%s49] ss:$16 sm:$0xc] %vm46, %v45
    %v51 = vld [vmem:[#allocation0] sm:$0xf]
    %52 = vrot.lane.b32.xlu0 %v51, 122
    %v53 = vpop.permute.xlu0 %52
    %vm54 = vcmask 7168
    %s55 = scalar_lea.vmem %s1, 6
    %56 = vst.msk [vmem:[%s55] ss:$16 sm:$0x3] %vm54, %v53
    %s57 = scalar_lea.vmem %s1, 6
    %58 = vst.msk [vmem:[%s57] ss:$16 sm:$0xc] %vm54, %v53
    %v59 = vld [vmem:[#allocation0] sm:$0xf]
    %60 = vrot.lane.b32.xlu0 %v59, 121
    %v61 = vpop.permute.xlu0 %60
    %vm62 = vcmask 7168
    %s63 = scalar_lea.vmem %s1, 7
    %64 = vst.msk [vmem:[%s63] ss:$16 sm:$0x3] %vm62, %v61
    %s65 = scalar_lea.vmem %s1, 7
    %66 = vst.msk [vmem:[%s65] ss:$16 sm:$0xc] %vm62, %v61
    %v67 = vld [vmem:[#allocation0] sm:$0xf]
    %68 = vrot.lane.b32.xlu0 %v67, 120
    %v69 = vpop.permute.xlu0 %68
    %vm70 = vcmask 7168
    %s71 = scalar_lea.vmem %s1, 8
    %72 = vst.msk [vmem:[%s71] ss:$16 sm:$0x3] %vm70, %v69
    %s73 = scalar_lea.vmem %s1, 8
    %74 = vst.msk [vmem:[%s73] ss:$16 sm:$0xc] %vm70, %v69
    %v75 = vld [vmem:[#allocation0] sm:$0xf]
    %76 = vrot.lane.b32.xlu0 %v75, 119
    %v77 = vpop.permute.xlu0 %76
    %vm78 = vcmask 7168
    %s79 = scalar_lea.vmem %s1, 9
    %80 = vst.msk [vmem:[%s79] ss:$16 sm:$0x3] %vm78, %v77
    %s81 = scalar_lea.vmem %s1, 9
    %82 = vst.msk [vmem:[%s81] ss:$16 sm:$0xc] %vm78, %v77
    %v83 = vld [vmem:[#allocation0] sm:$0xf]
    %84 = vrot.lane.b32.xlu0 %v83, 118
    %v85 = vpop.permute.xlu0 %84
    %vm86 = vcmask 7168
    %s87 = scalar_lea.vmem %s1, 10
    %88 = vst.msk [vmem:[%s87] ss:$16 sm:$0x3] %vm86, %v85
    %s89 = scalar_lea.vmem %s1, 10
    %90 = vst.msk [vmem:[%s89] ss:$16 sm:$0xc] %vm86, %v85
    %v91 = vld [vmem:[#allocation0] sm:$0xf]
    %92 = vrot.lane.b32.xlu0 %v91, 117
    %v93 = vpop.permute.xlu0 %92
    %vm94 = vcmask 7168
    %s95 = scalar_lea.vmem %s1, 11
    %96 = vst.msk [vmem:[%s95] ss:$16 sm:$0x3] %vm94, %v93
    %s97 = scalar_lea.vmem %s1, 11
    %98 = vst.msk [vmem:[%s97] ss:$16 sm:$0xc] %vm94, %v93
    %v99 = vld [vmem:[#allocation0] sm:$0xf]
    %100 = vrot.lane.b32.xlu0 %v99, 116
    %v101 = vpop.permute.xlu0 %100
    %vm102 = vcmask 7168
    %s103 = scalar_lea.vmem %s1, 12
    %104 = vst.msk [vmem:[%s103] ss:$16 sm:$0x3] %vm102, %v101
    %s105 = scalar_lea.vmem %s1, 12
    %106 = vst.msk [vmem:[%s105] ss:$16 sm:$0xc] %vm102, %v101
    %v107 = vld [vmem:[#allocation0] sm:$0xf]
    %108 = vrot.lane.b32.xlu0 %v107, 115
    %v109 = vpop.permute.xlu0 %108
    %vm110 = vcmask 7168
    %s111 = scalar_lea.vmem %s1, 13
    %112 = vst.msk [vmem:[%s111] ss:$16 sm:$0x3] %vm110, %v109
    %s113 = scalar_lea.vmem %s1, 13
    %114 = vst.msk [vmem:[%s113] ss:$16 sm:$0xc] %vm110, %v109
    %v115 = vld [vmem:[#allocation0] sm:$0xf]
    %116 = vrot.lane.b32.xlu0 %v115, 114
    %v117 = vpop.permute.xlu0 %116
    %vm118 = vcmask 7168
    %s119 = scalar_lea.vmem %s1, 14
    %120 = vst.msk [vmem:[%s119] ss:$16 sm:$0x3] %vm118, %v117
    %s121 = scalar_lea.vmem %s1, 14
    %122 = vst.msk [vmem:[%s121] ss:$16 sm:$0xc] %vm118, %v117
    %v123 = vld [vmem:[#allocation0] sm:$0xf]
    %124 = vrot.lane.b32.xlu0 %v123, 113
    %v125 = vpop.permute.xlu0 %124
    %vm126 = vcmask 7168
    %s127 = scalar_lea.vmem %s1, 15
    %128 = vst.msk [vmem:[%s127] ss:$16 sm:$0x3] %vm126, %v125
    %s129 = scalar_lea.vmem %s1, 15
    %130 = vst.msk [vmem:[%s129] ss:$16 sm:$0xc] %vm126, %v125

// kernel: tile.33
$region0: #{tile.33}
  #allocation0 [shape = 's32[1]{0}', space=sflag, size = 0x4, scoped, tag = 'scoped memory for tile.33']
  %s0 = inlined_call_operand.vmem [shape: f32[8], index: 0, kind: input, shape index: {}]
  %s1 = inlined_call_operand.vmem [shape: f32[4,8], index: 1, kind: output, shape index: {}]
  // Predicated region
  $region2: #{tile.33} parent=0 // pred_check
    _
  $region3: #{tile.33} parent=0 // pred_check_branch
    %3 = sbr.rel (0) target = $region5
  $region4: #{tile.33} parent=0 // pred_region
    _
  $region5: #{tile.33} parent=0 // pred_fallthru
    _
  %v4 = vld [vmem:[%s0] ss:$0 sm:$0xff]
  %5 = vst [vmem:[%s1] sm:$0xf] %v4

// kernel: tile.2
$region0: #{tile.2}
  %s0 = inlined_call_operand.vmem [shape: f32[4,8], index: 0, kind: input, shape index: {}]
  %s1 = inlined_call_operand.vmem [shape: f32[32,1], index: 1, kind: output, shape index: {}]
  $region1: #{tile.2} parent=0
    #allocation0 [shape = 'u8[4096]{0}', space=vmem, size = 0x1000, scoped, tag = 'scoped mem for input reshape']
    %s3 = sshll.u32 1, 4
    %s4 = ssub.s32 %s3, 1
    %v5 = vld [vmem:[%s0] sm:%s4]
    %6 = vst [vmem:[#allocation0] sm:%s4] %v5
    %v7 = vld [vmem:[#allocation0] sm:$0xf]
    %vm8 = vcmask 7168
    %9 = vst.msk [vmem:[%s1] ss:$8 sm:$0xf] %vm8, %v7
    %v10 = vld [vmem:[#allocation0] sm:$0xf]
    %11 = vrot.lane.b32.xlu0 %v10, 127
    %v12 = vpop.permute.xlu0 %11
    %vm13 = vcmask 7168
    %s14 = scalar_lea.vmem %s1, 1
    %15 = vst.msk [vmem:[%s14] ss:$8 sm:$0xf] %vm13, %v12
    %v16 = vld [vmem:[#allocation0] sm:$0xf]
    %17 = vrot.lane.b32.xlu0 %v16, 126
    %v18 = vpop.permute.xlu0 %17
    %vm19 = vcmask 7168
    %s20 = scalar_lea.vmem %s1, 2
    %21 = vst.msk [vmem:[%s20] ss:$8 sm:$0xf] %vm19, %v18
    %v22 = vld [vmem:[#allocation0] sm:$0xf]
    %23 = vrot.lane.b32.xlu0 %v22, 125
    %v24 = vpop.permute.xlu0 %23
    %vm25 = vcmask 7168
    %s26 = scalar_lea.vmem %s1, 3
    %27 = vst.msk [vmem:[%s26] ss:$8 sm:$0xf] %vm25, %v24
    %v28 = vld [vmem:[#allocation0] sm:$0xf]
    %29 = vrot.lane.b32.xlu0 %v28, 124
    %v30 = vpop.permute.xlu0 %29
    %vm31 = vcmask 7168
    %s32 = scalar_lea.vmem %s1, 4
    %33 = vst.msk [vmem:[%s32] ss:$8 sm:$0xf] %vm31, %v30
    %v34 = vld [vmem:[#allocation0] sm:$0xf]
    %35 = vrot.lane.b32.xlu0 %v34, 123
    %v36 = vpop.permute.xlu0 %35
    %vm37 = vcmask 7168
    %s38 = scalar_lea.vmem %s1, 5
    %39 = vst.msk [vmem:[%s38] ss:$8 sm:$0xf] %vm37, %v36
    %v40 = vld [vmem:[#allocation0] sm:$0xf]
    %41 = vrot.lane.b32.xlu0 %v40, 122
    %v42 = vpop.permute.xlu0 %41
    %vm43 = vcmask 7168
    %s44 = scalar_lea.vmem %s1, 6
    %45 = vst.msk [vmem:[%s44] ss:$8 sm:$0xf] %vm43, %v42
    %v46 = vld [vmem:[#allocation0] sm:$0xf]
    %47 = vrot.lane.b32.xlu0 %v46, 121
    %v48 = vpop.permute.xlu0 %47
    %vm49 = vcmask 7168
    %s50 = scalar_lea.vmem %s1, 7
    %51 = vst.msk [vmem:[%s50] ss:$8 sm:$0xf] %vm49, %v48

// kernel: hourglass_1_forward.1
$region0: #{hourglass_1_forward.1}
  #allocation0 [shape = 'u32[]', space=smem, size = 0x4, offset = 0x4, fixed_abs, tag = 'smem constant byte address 0x4 - core index']
  #allocation1 [shape = 'u32[144,128]{1,0:T(1,128)}', space=vmem, size = 0x12000, scoped, tag = 'internal scratch']
  #allocation2 [shape = 'f32[8,110]{1,0:T(8,128)}', space=vmem, size = 0x1000, scoped, tag = 'scratch operand']
  #allocation3 [shape = 'f32[16,110]{1,0:T(8,128)}', space=vmem, size = 0x2000, scoped, tag = 'scratch operand']
  #allocation4 [shape = 'f32[16,42]{1,0:T(8,128)}', space=vmem, size = 0x2000, scoped, tag = 'scratch operand']
  #allocation5 [shape = 'f32[32,42]{1,0:T(8,128)}', space=vmem, size = 0x4000, scoped, tag = 'scratch operand']
  #allocation6 [shape = 'f32[16,110]{1,0:T(8,128)}', space=vmem, size = 0x2000, scoped, tag = 'scratch operand']
  #allocation7 [shape = 'f32[144,288]{1,0:T(8,128)}', space=vmem, size = 0x36000, scoped, tag = 'scratch operand']
  %s0 = inlined_call_operand.vmem [shape: f32[2,8,342], index: 0, kind: input, shape index: {}]
  %s1 = inlined_call_operand.vmem [shape: f32[2,8,100], index: 1, kind: input, shape index: {}]
  %s2 = inlined_call_operand.vmem [shape: f32[2,16,36], index: 2, kind: input, shape index: {}]
  %s3 = inlined_call_operand.vmem [shape: bf16[8,72], index: 3, kind: input, shape index: {}]
  %s4 = inlined_call_operand.vmem [shape: bf16[8,72], index: 4, kind: input, shape index: {}]
  %s5 = inlined_call_operand.vmem [shape: bf16[16,144], index: 5, kind: input, shape index: {}]
  %s6 = inlined_call_operand.vmem [shape: bf16[16,144], index: 6, kind: input, shape index: {}]
  %s7 = inlined_call_operand.vmem [shape: bf16[64,128], index: 7, kind: input, shape index: {}]
  %s8 = inlined_call_operand.vmem [shape: bf16[32,64], index: 8, kind: input, shape index: {}]
  %s9 = inlined_call_operand.vmem [shape: f32[64,1], index: 9, kind: input, shape index: {}]
  %s10 = inlined_call_operand.vmem [shape: f32[64,1], index: 10, kind: input, shape index: {}]
  %s11 = inlined_call_operand.vmem [shape: f32[32,1], index: 11, kind: input, shape index: {}]
  %s12 = inlined_call_operand.vmem [shape: f32[32,1], index: 12, kind: input, shape index: {}]
  %s13 = inlined_call_operand.vmem [shape: f32[288,100], index: 13, kind: input, shape index: {}]
  %s14 = inlined_call_operand.vmem [shape: f32[80,36], index: 14, kind: input, shape index: {}]
  %s15 = inlined_call_operand.vmem [shape: f32[80,100], index: 15, kind: input, shape index: {}]
  %s16 = inlined_call_operand.vmem [shape: f32[24,36], index: 16, kind: input, shape index: {}]
  %s17 = inlined_call_operand.vmem [shape: f32[80,64], index: 17, kind: input, shape index: {}]
  %s18 = inlined_call_operand.vmem [shape: f32[24,16], index: 18, kind: input, shape index: {}]
  %s19 = inlined_call_operand.vmem [shape: f32[4,24,100], index: 19, kind: input, shape index: {}]
  %s20 = inlined_call_operand.vmem [shape: f32[4,80,256], index: 20, kind: input, shape index: {}]
  %s21 = inlined_call_operand.vmem [shape: f32[2,8,64], index: 21, kind: output, shape index: {0}]
  %s22 = inlined_call_operand.vmem [shape: f32[2,16,16], index: 22, kind: output, shape index: {1}]
  %s23 = inlined_call_operand.vmem [shape: f32[2,8,256], index: 23, kind: output, shape index: {2}]
  %24 = xla_tuple %s21, %s22, %s23
  %s25 = sld [smem:[#allocation0]]
  $region133: #{hourglass_1_forward.1} parent=0
    _
  %s27 = ssub.s32 1, %s25
  %s28 = scalar_select 0, %s27, %s25
  loop: start=0, step=1, limit=4
  $region2: #{hourglass_1_forward.1} parent=0 // loop_pre_header
    _
  $region3: #{hourglass_1_forward.1} parent=0 // loop_header
    %s30 = sphi 0, %s34
    %p31 = scmp.ge.s32.totalorder %s30, 4
    %s40 = sphi 0, %s42
    %s43 = sphi 0, %s40
    %s44 = sphi 0, %s43
    %s60 = sphi 0, %s44
    %s66 = sphi 0, %s68
    %s69 = sphi 0, %s66
    %s70 = sphi 0, %s69
    %s86 = sphi 0, %s70
    %s92 = sphi 0, %s94
    %s95 = sphi 0, %s92
    %s96 = sphi 0, %s95
    %s112 = sphi 0, %s96
    %s116 = sphi 0, %s116
    %s118 = sphi 0, %s116
    %s119 = sphi 0, %s118
    %s133 = sphi 0, %s119
    %s137 = sphi 0, %s137
    %s139 = sphi 0, %s137
    %s140 = sphi 0, %s139
    %s154 = sphi 0, %s140
    %s158 = sphi 0, %s158
    %s160 = sphi 0, %s158
    %s161 = sphi 0, %s160
    %s175 = sphi 0, %s161
    %s179 = sphi 0, %s179
    %s181 = sphi 0, %s179
    %s182 = sphi 0, %s181
    %s196 = sphi 0, %s182
    %s200 = sphi 0, %s200
    %s202 = sphi 0, %s200
    %s203 = sphi 0, %s202
    %s217 = sphi 0, %s203
    %s221 = sphi 0, %s221
    %s223 = sphi 0, %s221
    %s224 = sphi 0, %s223
    %s238 = sphi 0, %s224
    %s242 = sphi 0, %s242
    %s244 = sphi 0, %s242
    %s245 = sphi 0, %s244
    %s259 = sphi 0, %s245
    %s263 = sphi 0, %s263
    %s265 = sphi 0, %s263
    %s266 = sphi 0, %s265
    %s280 = sphi 0, %s266
    %s284 = sphi 0, %s284
    %s286 = sphi 0, %s284
    %s287 = sphi 0, %s286
    %s301 = sphi 0, %s287
    %s305 = sphi 0, %s305
    %s307 = sphi 0, %s305
    %s308 = sphi 0, %s307
    %s322 = sphi 0, %s308
    %s326 = sphi 0, %s326
    %s328 = sphi 0, %s326
    %s329 = sphi 0, %s328
    %s343 = sphi 0, %s329
    %s347 = sphi 0, %s347
    %s349 = sphi 0, %s347
    %s350 = sphi 0, %s349
    %s364 = sphi 0, %s350
    %s368 = sphi 0, %s368
    %s370 = sphi 0, %s368
    %s371 = sphi 0, %s370
    %s385 = sphi 0, %s371
    %s389 = sphi 0, %s389
    %s391 = sphi 0, %s389
    %s392 = sphi 0, %s391
    %s406 = sphi 0, %s392
    %s410 = sphi 0, %s410
    %s412 = sphi 0, %s410
    %s413 = sphi 0, %s412
    %s427 = sphi 0, %s413
    %s431 = sphi 0, %s431
    %s433 = sphi 0, %s431
    %s434 = sphi 0, %s433
    %s448 = sphi 0, %s434
    %s452 = sphi 0, %s452
    %s454 = sphi 0, %s452
    %s455 = sphi 0, %s454
    %s469 = sphi 0, %s455
    %s473 = sphi 0, %s473
    %s475 = sphi 0, %s473
    %s476 = sphi 0, %s475
    %s490 = sphi 0, %s476
    %s496 = sphi 0, %s498
    %s499 = sphi 0, %s496
    %s500 = sphi 0, %s499
    %s516 = sphi 0, %s500
    %s522 = sphi 0, %s524
    %s525 = sphi 0, %s522
    %s526 = sphi 0, %s525
    %s542 = sphi 0, %s526
    %s548 = sphi 0, %s550
    %s551 = sphi 0, %s548
    %s552 = sphi 0, %s551
    %s568 = sphi 0, %s552
  $region4: #{hourglass_1_forward.1} parent=0 // loop_header_branch
    %33 = sbr.rel (%p31) target = $region8
  $region5: #{hourglass_1_forward.1} parent=0 // loop_body
    %s35 = ssub.s32 %s30, 1
    %s36 = ssub.s32 %s30, 2
    %s37 = sadd.s32 %s30, 1
    %s38 = ssub.s32 %s30, %s37
    %p39 = scmp.eq.s32.totalorder %s38, 0
    %s41 = sadd.s32 %s40, 1
    %s42 = scalar_select %p39, %s40, %s41
    %p45 = pneg %p39
    %p46 = scmp.eq.s32.totalorder %s30, 1
    %p47 = por %p45, %p46
    %p48 = scmp.ne.s32.totalorder %s40, %s43
    %p49 = scmp.eq.s32.totalorder %s30, 0
    %p50 = por %p48, %p49
    %p51 = scmp.ne.s32.totalorder %s40, %s43
    %p52 = scmp.eq.s32.totalorder %s35, 1
    %p53 = por %p51, %p52
    %p54 = scmp.ne.s32.totalorder %s43, %s44
    %p55 = scmp.eq.s32.totalorder %s35, 0
    %p56 = por %p54, %p55
    %p57 = scmp.ne.s32.totalorder %s43, %s44
    %p58 = scmp.eq.s32.totalorder %s36, 1
    %p59 = por %p57, %p58
    %p61 = scmp.ne.s32.totalorder %s44, %s60
    %p62 = scmp.eq.s32.totalorder %s36, 0
    %p63 = por %p61, %p62
    %s64 = ssub.s32 %s30, %s37
    %p65 = scmp.eq.s32.totalorder %s64, 0
    %s67 = sadd.s32 %s66, 1
    %s68 = scalar_select %p65, %s66, %s67
    %p71 = pneg %p65
    %p72 = scmp.eq.s32.totalorder %s30, 1
    %p73 = por %p71, %p72
    %p74 = scmp.ne.s32.totalorder %s66, %s69
    %p75 = scmp.eq.s32.totalorder %s30, 0
    %p76 = por %p74, %p75
    %p77 = scmp.ne.s32.totalorder %s66, %s69
    %p78 = scmp.eq.s32.totalorder %s35, 1
    %p79 = por %p77, %p78
    %p80 = scmp.ne.s32.totalorder %s69, %s70
    %p81 = scmp.eq.s32.totalorder %s35, 0
    %p82 = por %p80, %p81
    %p83 = scmp.ne.s32.totalorder %s69, %s70
    %p84 = scmp.eq.s32.totalorder %s36, 1
    %p85 = por %p83, %p84
    %p87 = scmp.ne.s32.totalorder %s70, %s86
    %p88 = scmp.eq.s32.totalorder %s36, 0
    %p89 = por %p87, %p88
    %s90 = ssub.s32 %s30, %s37
    %p91 = scmp.eq.s32.totalorder %s90, 0
    %s93 = sadd.s32 %s92, 1
    %s94 = scalar_select %p91, %s92, %s93
    %p97 = pneg %p91
    %p98 = scmp.eq.s32.totalorder %s30, 1
    %p99 = por %p97, %p98
    %p100 = scmp.ne.s32.totalorder %s92, %s95
    %p101 = scmp.eq.s32.totalorder %s30, 0
    %p102 = por %p100, %p101
    %p103 = scmp.ne.s32.totalorder %s92, %s95
    %p104 = scmp.eq.s32.totalorder %s35, 1
    %p105 = por %p103, %p104
    %p106 = scmp.ne.s32.totalorder %s95, %s96
    %p107 = scmp.eq.s32.totalorder %s35, 0
    %p108 = por %p106, %p107
    %p109 = scmp.ne.s32.totalorder %s95, %s96
    %p110 = scmp.eq.s32.totalorder %s36, 1
    %p111 = por %p109, %p110
    %p113 = scmp.ne.s32.totalorder %s96, %s112
    %p114 = scmp.eq.s32.totalorder %s36, 0
    %p115 = por %p113, %p114
    %s117 = sadd.s32 %s116, 1
    %p120 = scmp.eq.s32.totalorder %s30, 1
    %p121 = scmp.ne.s32.totalorder %s116, %s118
    %p122 = scmp.eq.s32.totalorder %s30, 0
    %p123 = por %p121, %p122
    %p124 = scmp.ne.s32.totalorder %s116, %s118
    %p125 = scmp.eq.s32.totalorder %s35, 1
    %p126 = por %p124, %p125
    %p127 = scmp.ne.s32.totalorder %s118, %s119
    %p128 = scmp.eq.s32.totalorder %s35, 0
    %p129 = por %p127, %p128
    %p130 = scmp.ne.s32.totalorder %s118, %s119
    %p131 = scmp.eq.s32.totalorder %s36, 1
    %p132 = por %p130, %p131
    %p134 = scmp.ne.s32.totalorder %s119, %s133
    %p135 = scmp.eq.s32.totalorder %s36, 0
    %p136 = por %p134, %p135
    %s138 = sadd.s32 %s137, 1
    %p141 = scmp.eq.s32.totalorder %s30, 1
    %p142 = scmp.ne.s32.totalorder %s137, %s139
    %p143 = scmp.eq.s32.totalorder %s30, 0
    %p144 = por %p142, %p143
    %p145 = scmp.ne.s32.totalorder %s137, %s139
    %p146 = scmp.eq.s32.totalorder %s35, 1
    %p147 = por %p145, %p146
    %p148 = scmp.ne.s32.totalorder %s139, %s140
    %p149 = scmp.eq.s32.totalorder %s35, 0
    %p150 = por %p148, %p149
    %p151 = scmp.ne.s32.totalorder %s139, %s140
    %p152 = scmp.eq.s32.totalorder %s36, 1
    %p153 = por %p151, %p152
    %p155 = scmp.ne.s32.totalorder %s140, %s154
    %p156 = scmp.eq.s32.totalorder %s36, 0
    %p157 = por %p155, %p156
    %s159 = sadd.s32 %s158, 1
    %p162 = scmp.eq.s32.totalorder %s30, 1
    %p163 = scmp.ne.s32.totalorder %s158, %s160
    %p164 = scmp.eq.s32.totalorder %s30, 0
    %p165 = por %p163, %p164
    %p166 = scmp.ne.s32.totalorder %s158, %s160
    %p167 = scmp.eq.s32.totalorder %s35, 1
    %p168 = por %p166, %p167
    %p169 = scmp.ne.s32.totalorder %s160, %s161
    %p170 = scmp.eq.s32.totalorder %s35, 0
    %p171 = por %p169, %p170
    %p172 = scmp.ne.s32.totalorder %s160, %s161
    %p173 = scmp.eq.s32.totalorder %s36, 1
    %p174 = por %p172, %p173
    %p176 = scmp.ne.s32.totalorder %s161, %s175
    %p177 = scmp.eq.s32.totalorder %s36, 0
    %p178 = por %p176, %p177
    %s180 = sadd.s32 %s179, 1
    %p183 = scmp.eq.s32.totalorder %s30, 1
    %p184 = scmp.ne.s32.totalorder %s179, %s181
    %p185 = scmp.eq.s32.totalorder %s30, 0
    %p186 = por %p184, %p185
    %p187 = scmp.ne.s32.totalorder %s179, %s181
    %p188 = scmp.eq.s32.totalorder %s35, 1
    %p189 = por %p187, %p188
    %p190 = scmp.ne.s32.totalorder %s181, %s182
    %p191 = scmp.eq.s32.totalorder %s35, 0
    %p192 = por %p190, %p191
    %p193 = scmp.ne.s32.totalorder %s181, %s182
    %p194 = scmp.eq.s32.totalorder %s36, 1
    %p195 = por %p193, %p194
    %p197 = scmp.ne.s32.totalorder %s182, %s196
    %p198 = scmp.eq.s32.totalorder %s36, 0
    %p199 = por %p197, %p198
    %s201 = sadd.s32 %s200, 1
    %p204 = scmp.eq.s32.totalorder %s30, 1
    %p205 = scmp.ne.s32.totalorder %s200, %s202
    %p206 = scmp.eq.s32.totalorder %s30, 0
    %p207 = por %p205, %p206
    %p208 = scmp.ne.s32.totalorder %s200, %s202
    %p209 = scmp.eq.s32.totalorder %s35, 1
    %p210 = por %p208, %p209
    %p211 = scmp.ne.s32.totalorder %s202, %s203
    %p212 = scmp.eq.s32.totalorder %s35, 0
    %p213 = por %p211, %p212
    %p214 = scmp.ne.s32.totalorder %s202, %s203
    %p215 = scmp.eq.s32.totalorder %s36, 1
    %p216 = por %p214, %p215
    %p218 = scmp.ne.s32.totalorder %s203, %s217
    %p219 = scmp.eq.s32.totalorder %s36, 0
    %p220 = por %p218, %p219
    %s222 = sadd.s32 %s221, 1
    %p225 = scmp.eq.s32.totalorder %s30, 1
    %p226 = scmp.ne.s32.totalorder %s221, %s223
    %p227 = scmp.eq.s32.totalorder %s30, 0
    %p228 = por %p226, %p227
    %p229 = scmp.ne.s32.totalorder %s221, %s223
    %p230 = scmp.eq.s32.totalorder %s35, 1
    %p231 = por %p229, %p230
    %p232 = scmp.ne.s32.totalorder %s223, %s224
    %p233 = scmp.eq.s32.totalorder %s35, 0
    %p234 = por %p232, %p233
    %p235 = scmp.ne.s32.totalorder %s223, %s224
    %p236 = scmp.eq.s32.totalorder %s36, 1
    %p237 = por %p235, %p236
    %p239 = scmp.ne.s32.totalorder %s224, %s238
    %p240 = scmp.eq.s32.totalorder %s36, 0
    %p241 = por %p239, %p240
    %s243 = sadd.s32 %s242, 1
    %p246 = scmp.eq.s32.totalorder %s30, 1
    %p247 = scmp.ne.s32.totalorder %s242, %s244
    %p248 = scmp.eq.s32.totalorder %s30, 0
    %p249 = por %p247, %p248
    %p250 = scmp.ne.s32.totalorder %s242, %s244
    %p251 = scmp.eq.s32.totalorder %s35, 1
    %p252 = por %p250, %p251
    %p253 = scmp.ne.s32.totalorder %s244, %s245
    %p254 = scmp.eq.s32.totalorder %s35, 0
    %p255 = por %p253, %p254
    %p256 = scmp.ne.s32.totalorder %s244, %s245
    %p257 = scmp.eq.s32.totalorder %s36, 1
    %p258 = por %p256, %p257
    %p260 = scmp.ne.s32.totalorder %s245, %s259
    %p261 = scmp.eq.s32.totalorder %s36, 0
    %p262 = por %p260, %p261
    %s264 = sadd.s32 %s263, 1
    %p267 = scmp.eq.s32.totalorder %s30, 1
    %p268 = scmp.ne.s32.totalorder %s263, %s265
    %p269 = scmp.eq.s32.totalorder %s30, 0
    %p270 = por %p268, %p269
    %p271 = scmp.ne.s32.totalorder %s263, %s265
    %p272 = scmp.eq.s32.totalorder %s35, 1
    %p273 = por %p271, %p272
    %p274 = scmp.ne.s32.totalorder %s265, %s266
    %p275 = scmp.eq.s32.totalorder %s35, 0
    %p276 = por %p274, %p275
    %p277 = scmp.ne.s32.totalorder %s265, %s266
    %p278 = scmp.eq.s32.totalorder %s36, 1
    %p279 = por %p277, %p278
    %p281 = scmp.ne.s32.totalorder %s266, %s280
    %p282 = scmp.eq.s32.totalorder %s36, 0
    %p283 = por %p281, %p282
    %s285 = sadd.s32 %s284, 1
    %p288 = scmp.eq.s32.totalorder %s30, 1
    %p289 = scmp.ne.s32.totalorder %s284, %s286
    %p290 = scmp.eq.s32.totalorder %s30, 0
    %p291 = por %p289, %p290
    %p292 = scmp.ne.s32.totalorder %s284, %s286
    %p293 = scmp.eq.s32.totalorder %s35, 1
    %p294 = por %p292, %p293
    %p295 = scmp.ne.s32.totalorder %s286, %s287
    %p296 = scmp.eq.s32.totalorder %s35, 0
    %p297 = por %p295, %p296
    %p298 = scmp.ne.s32.totalorder %s286, %s287
    %p299 = scmp.eq.s32.totalorder %s36, 1
    %p300 = por %p298, %p299
    %p302 = scmp.ne.s32.totalorder %s287, %s301
    %p303 = scmp.eq.s32.totalorder %s36, 0
    %p304 = por %p302, %p303
    %s306 = sadd.s32 %s305, 1
    %p309 = scmp.eq.s32.totalorder %s30, 1
    %p310 = scmp.ne.s32.totalorder %s305, %s307
    %p311 = scmp.eq.s32.totalorder %s30, 0
    %p312 = por %p310, %p311
    %p313 = scmp.ne.s32.totalorder %s305, %s307
    %p314 = scmp.eq.s32.totalorder %s35, 1
    %p315 = por %p313, %p314
    %p316 = scmp.ne.s32.totalorder %s307, %s308
    %p317 = scmp.eq.s32.totalorder %s35, 0
    %p318 = por %p316, %p317
    %p319 = scmp.ne.s32.totalorder %s307, %s308
    %p320 = scmp.eq.s32.totalorder %s36, 1
    %p321 = por %p319, %p320
    %p323 = scmp.ne.s32.totalorder %s308, %s322
    %p324 = scmp.eq.s32.totalorder %s36, 0
    %p325 = por %p323, %p324
    %s327 = sadd.s32 %s326, 1
    %p330 = scmp.eq.s32.totalorder %s30, 1
    %p331 = scmp.ne.s32.totalorder %s326, %s328
    %p332 = scmp.eq.s32.totalorder %s30, 0
    %p333 = por %p331, %p332
    %p334 = scmp.ne.s32.totalorder %s326, %s328
    %p335 = scmp.eq.s32.totalorder %s35, 1
    %p336 = por %p334, %p335
    %p337 = scmp.ne.s32.totalorder %s328, %s329
    %p338 = scmp.eq.s32.totalorder %s35, 0
    %p339 = por %p337, %p338
    %p340 = scmp.ne.s32.totalorder %s328, %s329
    %p341 = scmp.eq.s32.totalorder %s36, 1
    %p342 = por %p340, %p341
    %p344 = scmp.ne.s32.totalorder %s329, %s343
    %p345 = scmp.eq.s32.totalorder %s36, 0
    %p346 = por %p344, %p345
    %s348 = sadd.s32 %s347, 1
    %p351 = scmp.eq.s32.totalorder %s30, 1
    %p352 = scmp.ne.s32.totalorder %s347, %s349
    %p353 = scmp.eq.s32.totalorder %s30, 0
    %p354 = por %p352, %p353
    %p355 = scmp.ne.s32.totalorder %s347, %s349
    %p356 = scmp.eq.s32.totalorder %s35, 1
    %p357 = por %p355, %p356
    %p358 = scmp.ne.s32.totalorder %s349, %s350
    %p359 = scmp.eq.s32.totalorder %s35, 0
    %p360 = por %p358, %p359
    %p361 = scmp.ne.s32.totalorder %s349, %s350
    %p362 = scmp.eq.s32.totalorder %s36, 1
    %p363 = por %p361, %p362
    %p365 = scmp.ne.s32.totalorder %s350, %s364
    %p366 = scmp.eq.s32.totalorder %s36, 0
    %p367 = por %p365, %p366
    %s369 = sadd.s32 %s368, 1
    %p372 = scmp.eq.s32.totalorder %s30, 1
    %p373 = scmp.ne.s32.totalorder %s368, %s370
    %p374 = scmp.eq.s32.totalorder %s30, 0
    %p375 = por %p373, %p374
    %p376 = scmp.ne.s32.totalorder %s368, %s370
    %p377 = scmp.eq.s32.totalorder %s35, 1
    %p378 = por %p376, %p377
    %p379 = scmp.ne.s32.totalorder %s370, %s371
    %p380 = scmp.eq.s32.totalorder %s35, 0
    %p381 = por %p379, %p380
    %p382 = scmp.ne.s32.totalorder %s370, %s371
    %p383 = scmp.eq.s32.totalorder %s36, 1
    %p384 = por %p382, %p383
    %p386 = scmp.ne.s32.totalorder %s371, %s385
    %p387 = scmp.eq.s32.totalorder %s36, 0
    %p388 = por %p386, %p387
    %s390 = sadd.s32 %s389, 1
    %p393 = scmp.eq.s32.totalorder %s30, 1
    %p394 = scmp.ne.s32.totalorder %s389, %s391
    %p395 = scmp.eq.s32.totalorder %s30, 0
    %p396 = por %p394, %p395
    %p397 = scmp.ne.s32.totalorder %s389, %s391
    %p398 = scmp.eq.s32.totalorder %s35, 1
    %p399 = por %p397, %p398
    %p400 = scmp.ne.s32.totalorder %s391, %s392
    %p401 = scmp.eq.s32.totalorder %s35, 0
    %p402 = por %p400, %p401
    %p403 = scmp.ne.s32.totalorder %s391, %s392
    %p404 = scmp.eq.s32.totalorder %s36, 1
    %p405 = por %p403, %p404
    %p407 = scmp.ne.s32.totalorder %s392, %s406
    %p408 = scmp.eq.s32.totalorder %s36, 0
    %p409 = por %p407, %p408
    %s411 = sadd.s32 %s410, 1
    %p414 = scmp.eq.s32.totalorder %s30, 1
    %p415 = scmp.ne.s32.totalorder %s410, %s412
    %p416 = scmp.eq.s32.totalorder %s30, 0
    %p417 = por %p415, %p416
    %p418 = scmp.ne.s32.totalorder %s410, %s412
    %p419 = scmp.eq.s32.totalorder %s35, 1
    %p420 = por %p418, %p419
    %p421 = scmp.ne.s32.totalorder %s412, %s413
    %p422 = scmp.eq.s32.totalorder %s35, 0
    %p423 = por %p421, %p422
    %p424 = scmp.ne.s32.totalorder %s412, %s413
    %p425 = scmp.eq.s32.totalorder %s36, 1
    %p426 = por %p424, %p425
    %p428 = scmp.ne.s32.totalorder %s413, %s427
    %p429 = scmp.eq.s32.totalorder %s36, 0
    %p430 = por %p428, %p429
    %s432 = sadd.s32 %s431, 1
    %p435 = scmp.eq.s32.totalorder %s30, 1
    %p436 = scmp.ne.s32.totalorder %s431, %s433
    %p437 = scmp.eq.s32.totalorder %s30, 0
    %p438 = por %p436, %p437
    %p439 = scmp.ne.s32.totalorder %s431, %s433
    %p440 = scmp.eq.s32.totalorder %s35, 1
    %p441 = por %p439, %p440
    %p442 = scmp.ne.s32.totalorder %s433, %s434
    %p443 = scmp.eq.s32.totalorder %s35, 0
    %p444 = por %p442, %p443
    %p445 = scmp.ne.s32.totalorder %s433, %s434
    %p446 = scmp.eq.s32.totalorder %s36, 1
    %p447 = por %p445, %p446
    %p449 = scmp.ne.s32.totalorder %s434, %s448
    %p450 = scmp.eq.s32.totalorder %s36, 0
    %p451 = por %p449, %p450
    %s453 = sadd.s32 %s452, 1
    %p456 = scmp.eq.s32.totalorder %s30, 1
    %p457 = scmp.ne.s32.totalorder %s452, %s454
    %p458 = scmp.eq.s32.totalorder %s30, 0
    %p459 = por %p457, %p458
    %p460 = scmp.ne.s32.totalorder %s452, %s454
    %p461 = scmp.eq.s32.totalorder %s35, 1
    %p462 = por %p460, %p461
    %p463 = scmp.ne.s32.totalorder %s454, %s455
    %p464 = scmp.eq.s32.totalorder %s35, 0
    %p465 = por %p463, %p464
    %p466 = scmp.ne.s32.totalorder %s454, %s455
    %p467 = scmp.eq.s32.totalorder %s36, 1
    %p468 = por %p466, %p467
    %p470 = scmp.ne.s32.totalorder %s455, %s469
    %p471 = scmp.eq.s32.totalorder %s36, 0
    %p472 = por %p470, %p471
    %s474 = sadd.s32 %s473, 1
    %p477 = scmp.eq.s32.totalorder %s30, 1
    %p478 = scmp.ne.s32.totalorder %s473, %s475
    %p479 = scmp.eq.s32.totalorder %s30, 0
    %p480 = por %p478, %p479
    %p481 = scmp.ne.s32.totalorder %s473, %s475
    %p482 = scmp.eq.s32.totalorder %s35, 1
    %p483 = por %p481, %p482
    %p484 = scmp.ne.s32.totalorder %s475, %s476
    %p485 = scmp.eq.s32.totalorder %s35, 0
    %p486 = por %p484, %p485
    %p487 = scmp.ne.s32.totalorder %s475, %s476
    %p488 = scmp.eq.s32.totalorder %s36, 1
    %p489 = por %p487, %p488
    %p491 = scmp.ne.s32.totalorder %s476, %s490
    %p492 = scmp.eq.s32.totalorder %s36, 0
    %p493 = por %p491, %p492
    %s494 = ssub.s32 %s30, %s37
    %p495 = scmp.eq.s32.totalorder %s494, 0
    %s497 = sadd.s32 %s496, 1
    %s498 = scalar_select %p495, %s496, %s497
    %p501 = pneg %p495
    %p502 = scmp.eq.s32.totalorder %s30, 1
    %p503 = por %p501, %p502
    %p504 = scmp.ne.s32.totalorder %s496, %s499
    %p505 = scmp.eq.s32.totalorder %s30, 0
    %p506 = por %p504, %p505
    %p507 = scmp.ne.s32.totalorder %s496, %s499
    %p508 = scmp.eq.s32.totalorder %s35, 1
    %p509 = por %p507, %p508
    %p510 = scmp.ne.s32.totalorder %s499, %s500
    %p511 = scmp.eq.s32.totalorder %s35, 0
    %p512 = por %p510, %p511
    %p513 = scmp.ne.s32.totalorder %s499, %s500
    %p514 = scmp.eq.s32.totalorder %s36, 1
    %p515 = por %p513, %p514
    %p517 = scmp.ne.s32.totalorder %s500, %s516
    %p518 = scmp.eq.s32.totalorder %s36, 0
    %p519 = por %p517, %p518
    %s520 = ssub.s32 %s30, %s37
    %p521 = scmp.eq.s32.totalorder %s520, 0
    %s523 = sadd.s32 %s522, 1
    %s524 = scalar_select %p521, %s522, %s523
    %p527 = pneg %p521
    %p528 = scmp.eq.s32.totalorder %s30, 1
    %p529 = por %p527, %p528
    %p530 = scmp.ne.s32.totalorder %s522, %s525
    %p531 = scmp.eq.s32.totalorder %s30, 0
    %p532 = por %p530, %p531
    %p533 = scmp.ne.s32.totalorder %s522, %s525
    %p534 = scmp.eq.s32.totalorder %s35, 1
    %p535 = por %p533, %p534
    %p536 = scmp.ne.s32.totalorder %s525, %s526
    %p537 = scmp.eq.s32.totalorder %s35, 0
    %p538 = por %p536, %p537
    %p539 = scmp.ne.s32.totalorder %s525, %s526
    %p540 = scmp.eq.s32.totalorder %s36, 1
    %p541 = por %p539, %p540
    %p543 = scmp.ne.s32.totalorder %s526, %s542
    %p544 = scmp.eq.s32.totalorder %s36, 0
    %p545 = por %p543, %p544
    %s546 = ssub.s32 %s30, %s37
    %p547 = scmp.eq.s32.totalorder %s546, 0
    %s549 = sadd.s32 %s548, 1
    %s550 = scalar_select %p547, %s548, %s549
    %p553 = pneg %p547
    %p554 = scmp.eq.s32.totalorder %s30, 1
    %p555 = por %p553, %p554
    %p556 = scmp.ne.s32.totalorder %s548, %s551
    %p557 = scmp.eq.s32.totalorder %s30, 0
    %p558 = por %p556, %p557
    %p559 = scmp.ne.s32.totalorder %s548, %s551
    %p560 = scmp.eq.s32.totalorder %s35, 1
    %p561 = por %p559, %p560
    %p562 = scmp.ne.s32.totalorder %s551, %s552
    %p563 = scmp.eq.s32.totalorder %s35, 0
    %p564 = por %p562, %p563
    %p565 = scmp.ne.s32.totalorder %s551, %s552
    %p566 = scmp.eq.s32.totalorder %s36, 1
    %p567 = por %p565, %p566
    %p569 = scmp.ne.s32.totalorder %s552, %s568
    %p570 = scmp.eq.s32.totalorder %s36, 0
    %p571 = por %p569, %p570
    %p572 = scmp.le.s32.totalorder 1, %s30
    %p573 = scmp.lt.s32.totalorder %s30, 3
    %p574 = pnand %p572, %p573
    %p575 = pneg %p574
    // Predicated region
    $region9: #{hourglass_1_forward.1} parent=5 // pred_check
      _
    $region10: #{hourglass_1_forward.1} parent=5 // pred_check_branch
      %577 = sbr.rel (%p574) target = $region12
    $region11: #{hourglass_1_forward.1} parent=5 // pred_region
      %s578 = ssub.s32 %s30, 1
      // Predicated region
      $region13: #{hourglass_1_forward.1} parent=11 // pred_check
        %p579 = pneg %p129
      $region14: #{hourglass_1_forward.1} parent=11 // pred_check_branch
        %581 = sbr.rel (%p579) target = $region16
      $region15: #{hourglass_1_forward.1} parent=11 // pred_region
        _
      $region16: #{hourglass_1_forward.1} parent=11 // pred_fallthru
        _
      // Predicated region
      $region17: #{hourglass_1_forward.1} parent=11 // pred_check
        %p582 = pneg %p150
      $region18: #{hourglass_1_forward.1} parent=11 // pred_check_branch
        %584 = sbr.rel (%p582) target = $region20
      $region19: #{hourglass_1_forward.1} parent=11 // pred_region
        _
      $region20: #{hourglass_1_forward.1} parent=11 // pred_fallthru
        _
      // Predicated region
      $region21: #{hourglass_1_forward.1} parent=11 // pred_check
        %p585 = pneg %p171
      $region22: #{hourglass_1_forward.1} parent=11 // pred_check_branch
        %587 = sbr.rel (%p585) target = $region24
      $region23: #{hourglass_1_forward.1} parent=11 // pred_region
        _
      $region24: #{hourglass_1_forward.1} parent=11 // pred_fallthru
        _
      // Predicated region
      $region25: #{hourglass_1_forward.1} parent=11 // pred_check
        %p588 = pneg %p192
      $region26: #{hourglass_1_forward.1} parent=11 // pred_check_branch
        %590 = sbr.rel (%p588) target = $region28
      $region27: #{hourglass_1_forward.1} parent=11 // pred_region
        _
      $region28: #{hourglass_1_forward.1} parent=11 // pred_fallthru
        _
      // Predicated region
      $region29: #{hourglass_1_forward.1} parent=11 // pred_check
        %p591 = pneg %p213
      $region30: #{hourglass_1_forward.1} parent=11 // pred_check_branch
        %593 = sbr.rel (%p591) target = $region32
      $region31: #{hourglass_1_forward.1} parent=11 // pred_region
        _
      $region32: #{hourglass_1_forward.1} parent=11 // pred_fallthru
        _
      // Predicated region
      $region33: #{hourglass_1_forward.1} parent=11 // pred_check
        %p594 = pneg %p234
      $region34: #{hourglass_1_forward.1} parent=11 // pred_check_branch
        %596 = sbr.rel (%p594) target = $region36
      $region35: #{hourglass_1_forward.1} parent=11 // pred_region
        _
      $region36: #{hourglass_1_forward.1} parent=11 // pred_fallthru
        _
      // Predicated region
      $region37: #{hourglass_1_forward.1} parent=11 // pred_check
        %p597 = pneg %p255
      $region38: #{hourglass_1_forward.1} parent=11 // pred_check_branch
        %599 = sbr.rel (%p597) target = $region40
      $region39: #{hourglass_1_forward.1} parent=11 // pred_region
        _
      $region40: #{hourglass_1_forward.1} parent=11 // pred_fallthru
        _
      // Predicated region
      $region41: #{hourglass_1_forward.1} parent=11 // pred_check
        %p600 = pneg %p276
      $region42: #{hourglass_1_forward.1} parent=11 // pred_check_branch
        %602 = sbr.rel (%p600) target = $region44
      $region43: #{hourglass_1_forward.1} parent=11 // pred_region
        _
      $region44: #{hourglass_1_forward.1} parent=11 // pred_fallthru
        _
      // Predicated region
      $region45: #{hourglass_1_forward.1} parent=11 // pred_check
        %p603 = pneg %p297
      $region46: #{hourglass_1_forward.1} parent=11 // pred_check_branch
        %605 = sbr.rel (%p603) target = $region48
      $region47: #{hourglass_1_forward.1} parent=11 // pred_region
        _
      $region48: #{hourglass_1_forward.1} parent=11 // pred_fallthru
        _
      // Predicated region
      $region49: #{hourglass_1_forward.1} parent=11 // pred_check
        %p606 = pneg %p318
      $region50: #{hourglass_1_forward.1} parent=11 // pred_check_branch
        %608 = sbr.rel (%p606) target = $region52
      $region51: #{hourglass_1_forward.1} parent=11 // pred_region
        _
      $region52: #{hourglass_1_forward.1} parent=11 // pred_fallthru
        _
      // Predicated region
      $region53: #{hourglass_1_forward.1} parent=11 // pred_check
        %p609 = pneg %p339
      $region54: #{hourglass_1_forward.1} parent=11 // pred_check_branch
        %611 = sbr.rel (%p609) target = $region56
      $region55: #{hourglass_1_forward.1} parent=11 // pred_region
        _
      $region56: #{hourglass_1_forward.1} parent=11 // pred_fallthru
        _
      // Predicated region
      $region57: #{hourglass_1_forward.1} parent=11 // pred_check
        %p612 = pneg %p360
      $region58: #{hourglass_1_forward.1} parent=11 // pred_check_branch
        %614 = sbr.rel (%p612) target = $region60
      $region59: #{hourglass_1_forward.1} parent=11 // pred_region
        _
      $region60: #{hourglass_1_forward.1} parent=11 // pred_fallthru
        _
      // Predicated region
      $region61: #{hourglass_1_forward.1} parent=11 // pred_check
        %p615 = pneg %p381
      $region62: #{hourglass_1_forward.1} parent=11 // pred_check_branch
        %617 = sbr.rel (%p615) target = $region64
      $region63: #{hourglass_1_forward.1} parent=11 // pred_region
        _
      $region64: #{hourglass_1_forward.1} parent=11 // pred_fallthru
        _
      // Predicated region
      $region65: #{hourglass_1_forward.1} parent=11 // pred_check
        %p618 = pneg %p402
      $region66: #{hourglass_1_forward.1} parent=11 // pred_check_branch
        %620 = sbr.rel (%p618) target = $region68
      $region67: #{hourglass_1_forward.1} parent=11 // pred_region
        _
      $region68: #{hourglass_1_forward.1} parent=11 // pred_fallthru
        _
      // Predicated region
      $region69: #{hourglass_1_forward.1} parent=11 // pred_check
        %p621 = pneg %p423
      $region70: #{hourglass_1_forward.1} parent=11 // pred_check_branch
        %623 = sbr.rel (%p621) target = $region72
      $region71: #{hourglass_1_forward.1} parent=11 // pred_region
        _
      $region72: #{hourglass_1_forward.1} parent=11 // pred_fallthru
        _
      // Predicated region
      $region73: #{hourglass_1_forward.1} parent=11 // pred_check
        %p624 = pneg %p444
      $region74: #{hourglass_1_forward.1} parent=11 // pred_check_branch
        %626 = sbr.rel (%p624) target = $region76
      $region75: #{hourglass_1_forward.1} parent=11 // pred_region
        _
      $region76: #{hourglass_1_forward.1} parent=11 // pred_fallthru
        _
      // Predicated region
      $region77: #{hourglass_1_forward.1} parent=11 // pred_check
        %p627 = pneg %p465
      $region78: #{hourglass_1_forward.1} parent=11 // pred_check_branch
        %629 = sbr.rel (%p627) target = $region80
      $region79: #{hourglass_1_forward.1} parent=11 // pred_region
        _
      $region80: #{hourglass_1_forward.1} parent=11 // pred_fallthru
        _
      // Predicated region
      $region81: #{hourglass_1_forward.1} parent=11 // pred_check
        %p630 = pneg %p486
      $region82: #{hourglass_1_forward.1} parent=11 // pred_check_branch
        %632 = sbr.rel (%p630) target = $region84
      $region83: #{hourglass_1_forward.1} parent=11 // pred_region
        _
      $region84: #{hourglass_1_forward.1} parent=11 // pred_fallthru
        _
    $region12: #{hourglass_1_forward.1} parent=5 // pred_fallthru
      _
    %p633 = scmp.lt.s32.totalorder %s30, 2
    // Predicated region
    $region85: #{hourglass_1_forward.1} parent=5 // pred_check
      %p634 = pneg %p633
    $region86: #{hourglass_1_forward.1} parent=5 // pred_check_branch
      %636 = sbr.rel (%p634) target = $region88
    $region87: #{hourglass_1_forward.1} parent=5 // pred_region
      // Predicated region
      $region89: #{hourglass_1_forward.1} parent=87 // pred_check
        %p637 = pneg %p50
      $region90: #{hourglass_1_forward.1} parent=87 // pred_check_branch
        %639 = sbr.rel (%p637) target = $region92
      $region91: #{hourglass_1_forward.1} parent=87 // pred_region
        %p640 = scmp.lt.s32.totalorder %s30, 1
        %s641 = scalar_select %p640, %s30, 1
        %s642 = smul.addr %s641, 3
        %s643 = smul.addr %s642, 8
        %s644 = scalar_lea.vmem %s0, %s643
      $region92: #{hourglass_1_forward.1} parent=87 // pred_fallthru
        _
      // Predicated region
      $region93: #{hourglass_1_forward.1} parent=87 // pred_check
        %p645 = pneg %p76
      $region94: #{hourglass_1_forward.1} parent=87 // pred_check_branch
        %647 = sbr.rel (%p645) target = $region96
      $region95: #{hourglass_1_forward.1} parent=87 // pred_region
        %p648 = scmp.lt.s32.totalorder %s30, 1
        %s649 = scalar_select %p648, %s30, 1
        %s650 = smul.addr %s649, 8
        %s651 = scalar_lea.vmem %s1, %s650
      $region96: #{hourglass_1_forward.1} parent=87 // pred_fallthru
        _
      // Predicated region
      $region97: #{hourglass_1_forward.1} parent=87 // pred_check
        %p652 = pneg %p102
      $region98: #{hourglass_1_forward.1} parent=87 // pred_check_branch
        %654 = sbr.rel (%p652) target = $region100
      $region99: #{hourglass_1_forward.1} parent=87 // pred_region
        %p655 = scmp.lt.s32.totalorder %s30, 1
        %s656 = scalar_select %p655, %s30, 1
        %s657 = smul.addr %s656, 2
        %s658 = smul.addr %s657, 8
        %s659 = scalar_lea.vmem %s2, %s658
      $region100: #{hourglass_1_forward.1} parent=87 // pred_fallthru
        _
    $region88: #{hourglass_1_forward.1} parent=5 // pred_fallthru
      _
    %p660 = scmp.le.s32.totalorder 1, %s30
    %p661 = scmp.lt.s32.totalorder %s30, 3
    %p662 = pnand %p660, %p661
    %p663 = pneg %p662
    // Predicated region
    $region101: #{hourglass_1_forward.1} parent=5 // pred_check
      _
    $region102: #{hourglass_1_forward.1} parent=5 // pred_check_branch
      %665 = sbr.rel (%p662) target = $region104
    $region103: #{hourglass_1_forward.1} parent=5 // pred_region
      %s666 = ssub.s32 %s30, 1
      %p667 = scmp.lt.s32.totalorder %s35, 1
      %s668 = scalar_select %p667, %s35, 1
      %s669 = smul.addr %s668, 3
      %s670 = smul.addr %s669, 8
      %s671 = scalar_lea.vmem %s0, %s670
      %p672 = pneg %p56
      %p673 = pneg %p53
      %p674 = scmp.lt.s32.totalorder %s35, 1
      %s675 = scalar_select %p674, %s35, 1
      %s676 = smul.addr %s675, 8
      %s677 = scalar_lea.vmem %s1, %s676
      %p678 = pneg %p82
      %p679 = pneg %p79
      %p680 = scmp.lt.s32.totalorder %s35, 1
      %s681 = scalar_select %p680, %s35, 1
      %s682 = smul.addr %s681, 2
      %s683 = smul.addr %s682, 8
      %s684 = scalar_lea.vmem %s2, %s683
      %p685 = pneg %p108
      %p686 = pneg %p105
      %p687 = pneg %p129
      %p688 = pneg %p126
      %p689 = pneg %p150
      %p690 = pneg %p147
      %p691 = pneg %p171
      %p692 = pneg %p168
      %p693 = pneg %p192
      %p694 = pneg %p189
      %p695 = pneg %p213
      %p696 = pneg %p210
      %p697 = pneg %p234
      %p698 = pneg %p231
      %p699 = pneg %p255
      %p700 = pneg %p252
      %p701 = pneg %p276
      %p702 = pneg %p273
      %p703 = pneg %p297
      %p704 = pneg %p294
      %p705 = pneg %p318
      %p706 = pneg %p315
      %p707 = pneg %p339
      %p708 = pneg %p336
      %p709 = pneg %p360
      %p710 = pneg %p357
      %p711 = pneg %p381
      %p712 = pneg %p378
      %p713 = pneg %p402
      %p714 = pneg %p399
      %p715 = pneg %p423
      %p716 = pneg %p420
      %p717 = pneg %p444
      %p718 = pneg %p441
      %p719 = pneg %p465
      %p720 = pneg %p462
      %p721 = pneg %p486
      %p722 = pneg %p483
      %p723 = pneg %p512
      %p724 = pneg %p509
      %p725 = scmp.lt.s32.totalorder %s35, 1
      %s726 = scalar_select %p725, %s35, 1
      %s727 = smul.addr %s726, 8
      %s728 = scalar_lea.vmem %s21, %s727
      %p729 = pneg %p538
      %p730 = pneg %p535
      %p731 = scmp.lt.s32.totalorder %s35, 1
      %s732 = scalar_select %p731, %s35, 1
      %s733 = smul.addr %s732, 2
      %s734 = smul.addr %s733, 8
      %s735 = scalar_lea.vmem %s22, %s734
      %p736 = pneg %p564
      %p737 = pneg %p561
      %p738 = scmp.lt.s32.totalorder %s35, 1
      %s739 = scalar_select %p738, %s35, 1
      %s740 = smul.addr %s739, 2
      %s741 = smul.addr %s740, 8
      %s742 = scalar_lea.vmem %s23, %s741
      %p743 = scmp.lt.s32.totalorder %s35, 1
      %s744 = scalar_select %p743, %s35, 1
      %s745 = smul.addr %s744, 3
      %s746 = smul.addr %s745, 8
      %s747 = scalar_lea.vmem %s0, %s746
      %p748 = scmp.lt.s32.totalorder %s35, 1
      %s749 = scalar_select %p748, %s35, 1
      %s750 = smul.addr %s749, 8
      %s751 = scalar_lea.vmem %s1, %s750
      %p752 = scmp.lt.s32.totalorder %s35, 1
      %s753 = scalar_select %p752, %s35, 1
      %s754 = smul.addr %s753, 2
      %s755 = smul.addr %s754, 8
      %s756 = scalar_lea.vmem %s2, %s755
      %p757 = scmp.lt.s32.totalorder %s35, 1
      %s758 = scalar_select %p757, %s35, 1
      %s759 = smul.addr %s758, 8
      %s760 = scalar_lea.vmem %s21, %s759
      %p761 = scmp.lt.s32.totalorder %s35, 1
      %s762 = scalar_select %p761, %s35, 1
      %s763 = smul.addr %s762, 2
      %s764 = smul.addr %s763, 8
      %s765 = scalar_lea.vmem %s22, %s764
      %p766 = scmp.lt.s32.totalorder %s35, 1
      %s767 = scalar_select %p766, %s35, 1
      %s768 = smul.addr %s767, 2
      %s769 = smul.addr %s768, 8
      %s770 = scalar_lea.vmem %s23, %s769
      %vm772 = vcmask 900096
      %773 = vst.msk [vmem:[#allocation2] sm:$0xff] %vm772, 0.0
      %774 = vst.msk [vmem:[#allocation3] sm:$0xff] %vm772, 0.0
      %775 = vst.msk [vmem:[#allocation3 + $0x8] sm:$0xff] %vm772, 0.0
      %vm776 = vcmask 343040
      %777 = vst.msk [vmem:[#allocation4] sm:$0xff] %vm776, 0.0
      %778 = vst.msk [vmem:[#allocation4 + $0x8] sm:$0xff] %vm776, 0.0
      %779 = vst.msk [vmem:[#allocation5] sm:$0xff] %vm776, 0.0
      %780 = vst.msk [vmem:[#allocation5 + $0x8] sm:$0xff] %vm776, 0.0
      %781 = vst.msk [vmem:[#allocation5 + $0x10] sm:$0xff] %vm776, 0.0
      %782 = vst.msk [vmem:[#allocation5 + $0x18] sm:$0xff] %vm776, 0.0
      %783 = vst.msk [vmem:[#allocation6] sm:$0xff] %vm772, 0.0
      %784 = vst.msk [vmem:[#allocation6 + $0x8] sm:$0xff] %vm772, 0.0
      %v785 = vld [vmem:[%s3] sm:$0xf]
      %v786 = vld [vmem:[%s747] sm:$0xff]
      %v787 = vld [vmem:[%s747 + $0x8] sm:$0xff]
      %v788 = vld [vmem:[%s747 + $0x10] sm:$0xff]
      %789 = vst [vmem:[#allocation7] sm:$0xff] %v786
      %790 = vst [vmem:[#allocation7 + $0x8] sm:$0xff] %v787
      %vm791 = vcmask 261120
      %792 = vst.msk [vmem:[#allocation7 + $0x10] sm:$0xff] %vm791, %v788
      %v793 = vld [vmem:[%s747] sm:$0xff]
      %v794 = vld [vmem:[%s747 + $0x8] sm:$0xff]
      %v795 = vld [vmem:[%s747 + $0x10] sm:$0xff]
      %799 = vrot.lane.b32.xlu0 %v793, 127
      %v800 = vpop.permute.xlu0 %799
      %801 = vrot.lane.b32.xlu0 %v794, 127
      %v802 = vpop.permute.xlu0 %801
      %803 = vrot.lane.b32.xlu0 %v795, 127
      %v804 = vpop.permute.xlu0 %803
      %vm805 = vcmask 1039360
      %v806 = vsel %vm805, %v800, %v802
      %v807 = vsel %vm805, %v802, %v804
      %811 = vst [vmem:[#allocation7 + $0x18] sm:$0xff] %v806
      %812 = vst [vmem:[#allocation7 + $0x20] sm:$0xff] %v807
      %813 = vst.msk [vmem:[#allocation7 + $0x28] sm:$0xff] %vm791, %v804
      %v814 = vld [vmem:[%s747] sm:$0xff]
      %v815 = vld [vmem:[%s747 + $0x8] sm:$0xff]
      %v816 = vld [vmem:[%s747 + $0x10] sm:$0xff]
      %820 = vrot.lane.b32.xlu0 %v814, 126
      %v821 = vpop.permute.xlu0 %820
      %822 = vrot.lane.b32.xlu0 %v815, 126
      %v823 = vpop.permute.xlu0 %822
      %824 = vrot.lane.b32.xlu0 %v816, 126
      %v825 = vpop.permute.xlu0 %824
      %vm826 = vcmask 1031168
      %v827 = vsel %vm826, %v821, %v823
      %v828 = vsel %vm826, %v823, %v825
      %832 = vst [vmem:[#allocation7 + $0x30] sm:$0xff] %v827
      %833 = vst [vmem:[#allocation7 + $0x38] sm:$0xff] %v828
      %834 = vst.msk [vmem:[#allocation7 + $0x40] sm:$0xff] %vm791, %v825
      %v835 = vld [vmem:[%s747] sm:$0xff]
      %v836 = vld [vmem:[%s747 + $0x8] sm:$0xff]
      %v837 = vld [vmem:[%s747 + $0x10] sm:$0xff]
      %841 = vrot.lane.b32.xlu0 %v835, 110
      %v842 = vpop.permute.xlu0 %841
      %843 = vrot.lane.b32.xlu0 %v836, 110
      %v844 = vpop.permute.xlu0 %843
      %845 = vrot.lane.b32.xlu0 %v837, 110
      %v846 = vpop.permute.xlu0 %845
      %v847 = vsel %vm772, %v842, %v844
      %v848 = vsel %vm772, %v844, %v846
      %852 = vst [vmem:[#allocation7 + $0x48] sm:$0xff] %v847
      %853 = vst [vmem:[#allocation7 + $0x50] sm:$0xff] %v848
      %854 = vst.msk [vmem:[#allocation7 + $0x58] sm:$0xff] %vm791, %v846
      %v855 = vld [vmem:[%s747] sm:$0xff]
      %v856 = vld [vmem:[%s747 + $0x8] sm:$0xff]
      %v857 = vld [vmem:[%s747 + $0x10] sm:$0xff]
      %861 = vrot.lane.b32.xlu0 %v855, 109
      %v862 = vpop.permute.xlu0 %861
      %863 = vrot.lane.b32.xlu0 %v856, 109
      %v864 = vpop.permute.xlu0 %863
      %865 = vrot.lane.b32.xlu0 %v857, 109
      %v866 = vpop.permute.xlu0 %865
      %vm867 = vcmask 891904
      %v868 = vsel %vm867, %v862, %v864
      %v869 = vsel %vm867, %v864, %v866
      %873 = vst [vmem:[#allocation7 + $0x60] sm:$0xff] %v868
      %874 = vst [vmem:[#allocation7 + $0x68] sm:$0xff] %v869
      %875 = vst.msk [vmem:[#allocation7 + $0x70] sm:$0xff] %vm791, %v866
      %v876 = vld [vmem:[%s747] sm:$0xff]
      %v877 = vld [vmem:[%s747 + $0x8] sm:$0xff]
      %v878 = vld [vmem:[%s747 + $0x10] sm:$0xff]
      %882 = vrot.lane.b32.xlu0 %v876, 108
      %v883 = vpop.permute.xlu0 %882
      %884 = vrot.lane.b32.xlu0 %v877, 108
      %v885 = vpop.permute.xlu0 %884
      %886 = vrot.lane.b32.xlu0 %v878, 108
      %v887 = vpop.permute.xlu0 %886
      %vm888 = vcmask 883712
      %v889 = vsel %vm888, %v883, %v885
      %v890 = vsel %vm888, %v885, %v887
      %894 = vst [vmem:[#allocation7 + $0x78] sm:$0xff] %v889
      %895 = vst [vmem:[#allocation7 + $0x80] sm:$0xff] %v890
      %896 = vst.msk [vmem:[#allocation7 + $0x88] sm:$0xff] %vm791, %v887
      %v897 = vld [vmem:[%s747] sm:$0xff]
      %v898 = vld [vmem:[%s747 + $0x8] sm:$0xff]
      %v899 = vld [vmem:[%s747 + $0x10] sm:$0xff]
      %903 = vrot.lane.b32.xlu0 %v897, 92
      %v904 = vpop.permute.xlu0 %903
      %905 = vrot.lane.b32.xlu0 %v898, 92
      %v906 = vpop.permute.xlu0 %905
      %907 = vrot.lane.b32.xlu0 %v899, 92
      %v908 = vpop.permute.xlu0 %907
      %vm909 = vcmask 752640
      %v910 = vsel %vm909, %v904, %v906
      %v911 = vsel %vm909, %v906, %v908
      %915 = vst [vmem:[#allocation7 + $0x90] sm:$0xff] %v910
      %916 = vst [vmem:[#allocation7 + $0x98] sm:$0xff] %v911
      %917 = vst.msk [vmem:[#allocation7 + $0xa0] sm:$0xff] %vm791, %v908
      %v918 = vld [vmem:[%s747] sm:$0xff]
      %v919 = vld [vmem:[%s747 + $0x8] sm:$0xff]
      %v920 = vld [vmem:[%s747 + $0x10] sm:$0xff]
      %924 = vrot.lane.b32.xlu0 %v918, 91
      %v925 = vpop.permute.xlu0 %924
      %926 = vrot.lane.b32.xlu0 %v919, 91
      %v927 = vpop.permute.xlu0 %926
      %928 = vrot.lane.b32.xlu0 %v920, 91
      %v929 = vpop.permute.xlu0 %928
      %vm930 = vcmask 744448
      %v931 = vsel %vm930, %v925, %v927
      %v932 = vsel %vm930, %v927, %v929
      %936 = vst [vmem:[#allocation7 + $0xa8] sm:$0xff] %v931
      %937 = vst [vmem:[#allocation7 + $0xb0] sm:$0xff] %v932
      %938 = vst.msk [vmem:[#allocation7 + $0xb8] sm:$0xff] %vm791, %v929
      %v939 = vld [vmem:[%s747] sm:$0xff]
      %v940 = vld [vmem:[%s747 + $0x8] sm:$0xff]
      %v941 = vld [vmem:[%s747 + $0x10] sm:$0xff]
      %945 = vrot.lane.b32.xlu0 %v939, 90
      %v946 = vpop.permute.xlu0 %945
      %947 = vrot.lane.b32.xlu0 %v940, 90
      %v948 = vpop.permute.xlu0 %947
      %949 = vrot.lane.b32.xlu0 %v941, 90
      %v950 = vpop.permute.xlu0 %949
      %vm951 = vcmask 736256
      %v952 = vsel %vm951, %v946, %v948
      %v953 = vsel %vm951, %v948, %v950
      %957 = vst [vmem:[#allocation7 + $0xc0] sm:$0xff] %v952
      %958 = vst [vmem:[#allocation7 + $0xc8] sm:$0xff] %v953
      %959 = vst.msk [vmem:[#allocation7 + $0xd0] sm:$0xff] %vm791, %v950
      %v960 = vld [vmem:[#allocation7] sm:$0xff]
      %v961 = vld [vmem:[#allocation7 + $0x8] sm:$0xff]
      %v962 = vld [vmem:[#allocation7 + $0x10] sm:$0xff]
      %v963 = vld [vmem:[#allocation7 + $0x18] sm:$0xff]
      %v964 = vld [vmem:[#allocation7 + $0x20] sm:$0xff]
      %v965 = vld [vmem:[#allocation7 + $0x28] sm:$0xff]
      %v966 = vld [vmem:[#allocation7 + $0x30] sm:$0xff]
      %v967 = vld [vmem:[#allocation7 + $0x38] sm:$0xff]
      %v968 = vld [vmem:[#allocation7 + $0x40] sm:$0xff]
      %v969 = vld [vmem:[#allocation7 + $0x48] sm:$0xff]
      %v970 = vld [vmem:[#allocation7 + $0x50] sm:$0xff]
      %v971 = vld [vmem:[#allocation7 + $0x58] sm:$0xff]
      %v972 = vld [vmem:[#allocation7 + $0x60] sm:$0xff]
      %v973 = vld [vmem:[#allocation7 + $0x68] sm:$0xff]
      %v974 = vld [vmem:[#allocation7 + $0x70] sm:$0xff]
      %v975 = vld [vmem:[#allocation7 + $0x78] sm:$0xff]
      %v976 = vld [vmem:[#allocation7 + $0x80] sm:$0xff]
      %v977 = vld [vmem:[#allocation7 + $0x88] sm:$0xff]
      %v978 = vld [vmem:[#allocation7 + $0x90] sm:$0xff]
      %v979 = vld [vmem:[#allocation7 + $0x98] sm:$0xff]
      %v980 = vld [vmem:[#allocation7 + $0xa0] sm:$0xff]
      %v981 = vld [vmem:[#allocation7 + $0xa8] sm:$0xff]
      %v982 = vld [vmem:[#allocation7 + $0xb0] sm:$0xff]
      %v983 = vld [vmem:[#allocation7 + $0xb8] sm:$0xff]
      %v984 = vld [vmem:[#allocation7 + $0xc0] sm:$0xff]
      %v985 = vld [vmem:[#allocation7 + $0xc8] sm:$0xff]
      %v986 = vld [vmem:[#allocation7 + $0xd0] sm:$0xff]
      %v987 = vpack.c.bf16 %v963, %v960
      %v988 = vpack.c.bf16 %v964, %v961
      %v989 = vpack.c.bf16 %v965, %v962
      %v990 = vpack.c.bf16 %v969, %v966
      %v991 = vpack.c.bf16 %v970, %v967
      %v992 = vpack.c.bf16 %v971, %v968
      %v993 = vpack.c.bf16 %v975, %v972
      %v994 = vpack.c.bf16 %v976, %v973
      %v995 = vpack.c.bf16 %v977, %v974
      %v996 = vpack.c.bf16 %v981, %v978
      %v997 = vpack.c.bf16 %v982, %v979
      %v998 = vpack.c.bf16 %v983, %v980
      %v999 = vpack.c.bf16 %v984, %v984
      %v1000 = vpack.c.bf16 %v985, %v985
      %v1001 = vpack.c.bf16 %v986, %v986
      %vm1002 = vcmask 588800
      %v1004 = vsel %vm1002, %v785, 0
      %vm1006 = vcmask 1043456
      %v1008 = vsel %vm1006, %v999, 0
      %v1011 = vsel %vm1006, %v1000, 0
      %v1014 = vsel %vm1006, %v1001, 0
      %1016 = vmatprep.subr.bf16.mxu0 0
      %1017 = vmatpush1.bf16.msra.mxu0 0
      %1018 = vmatprep.subr.bf16.mxu0 0
      %1019 = vmatpush1.bf16.msra.mxu0 0
      %1020 = vmatprep.subr.bf16.mxu0 0
      %1021 = vmatpush1.bf16.msra.mxu0 0
      %1022 = vmatprep.subr.bf16.mxu0 %v1011
      %1023 = vmatpush1.bf16.msra.mxu0 %v1008
      %1024 = vmatprep.subr.bf16.mxu0 %v997
      %1025 = vmatpush1.bf16.msra.mxu0 %v996
      %1026 = vmatprep.subr.bf16.mxu0 %v994
      %1027 = vmatpush1.bf16.msra.mxu0 %v993
      %1028 = vmatprep.subr.bf16.mxu0 %v991
      %1029 = vmatpush1.bf16.msra.mxu0 %v990
      %1030 = vmatprep.subr.bf16.mxu0 %v988
      %1031 = vmatpush1.bf16.msra.mxu0 %v987
      %1032 = vmatprep.subr.bf16.mxu0 0
      %1033 = vmatpush2.bf16.msra.mxu0 0
      %1034 = vmatprep.subr.bf16.mxu0 0
      %1035 = vmatpush2.bf16.msra.mxu0 0
      %1036 = vmatprep.subr.bf16.mxu0 0
      %1037 = vmatpush2.bf16.msra.mxu0 0
      %1038 = vmatprep.subr.bf16.mxu0 0
      %1039 = vmatpush2.bf16.msra.mxu0 0
      %1040 = vmatprep.subr.bf16.mxu0 0
      %1041 = vmatpush2.bf16.msra.mxu0 0
      %1042 = vmatprep.subr.bf16.mxu0 0
      %1043 = vmatpush2.bf16.msra.mxu0 0
      %1044 = vmatprep.subr.bf16.mxu0 0
      %1045 = vmatpush2.bf16.msra.mxu0 0
      %1046 = vmatprep.subr.bf16.mxu0 0
      %1047 = vmatpush2.bf16.msra.mxu0 0
      %1048 = vmatprep.mubr.bf16.mxu0 0
      %1049 = vmatmul.mubr.bf16.gmra.mxu0 %v1004
      %v1050 = vpop.f32.mrf.mxu0
      %v1051 = vadd.f32 0.0, %v1050
      %v1052 = vpop.f32.mrf.mxu0
      %v1053 = vadd.f32 0.0, %v1052
      %v1054 = vpop.f32.mrf.mxu0
      %v1055 = vpop.f32.mrf.mxu0
      %1056 = vdwg.mxu0
      %1057 = vmatprep.subr.bf16.mxu0 0
      %1058 = vmatpush1.bf16.msra.mxu0 0
      %1059 = vmatprep.subr.bf16.mxu0 0
      %1060 = vmatpush1.bf16.msra.mxu0 0
      %1061 = vmatprep.subr.bf16.mxu0 0
      %1062 = vmatpush1.bf16.msra.mxu0 0
      %1063 = vmatprep.subr.bf16.mxu0 0
      %1064 = vmatpush1.bf16.msra.mxu0 %v1014
      %1065 = vmatprep.subr.bf16.mxu0 0
      %1066 = vmatpush1.bf16.msra.mxu0 %v998
      %1067 = vmatprep.subr.bf16.mxu0 0
      %1068 = vmatpush1.bf16.msra.mxu0 %v995
      %1069 = vmatprep.subr.bf16.mxu0 0
      %1070 = vmatpush1.bf16.msra.mxu0 %v992
      %1071 = vmatprep.subr.bf16.mxu0 0
      %1072 = vmatpush1.bf16.msra.mxu0 %v989
      %1073 = vmatprep.subr.bf16.mxu0 0
      %1074 = vmatpush2.bf16.msra.mxu0 0
      %1075 = vmatprep.subr.bf16.mxu0 0
      %1076 = vmatpush2.bf16.msra.mxu0 0
      %1077 = vmatprep.subr.bf16.mxu0 0
      %1078 = vmatpush2.bf16.msra.mxu0 0
      %1079 = vmatprep.subr.bf16.mxu0 0
      %1080 = vmatpush2.bf16.msra.mxu0 0
      %1081 = vmatprep.subr.bf16.mxu0 0
      %1082 = vmatpush2.bf16.msra.mxu0 0
      %1083 = vmatprep.subr.bf16.mxu0 0
      %1084 = vmatpush2.bf16.msra.mxu0 0
      %1085 = vmatprep.subr.bf16.mxu0 0
      %1086 = vmatpush2.bf16.msra.mxu0 0
      %1087 = vmatprep.subr.bf16.mxu0 0
      %1088 = vmatpush2.bf16.msra.mxu0 0
      %1089 = vmatprep.mubr.bf16.mxu0 0
      %1090 = vmatmul.mubr.bf16.gmra.mxu0 %v1004
      %v1091 = vpop.f32.mrf.mxu0
      %v1092 = vadd.f32 0.0, %v1091
      %v1093 = vpop.f32.mrf.mxu0
      %v1094 = vpop.f32.mrf.mxu0
      %v1095 = vpop.f32.mrf.mxu0
      %1096 = vdwg.mxu0
      %v1097 = vmax.f32 %v1051, 0.0
      %v1098 = vmax.f32 %v1053, 0.0
      %v1099 = vmax.f32 %v1092, 0.0
      %v1100 = vld [vmem:[%s13] sm:$0xff]
      %v1101 = vld [vmem:[%s13 + $0x8] sm:$0xff]
      %v1102 = vld [vmem:[%s13 + $0x10] sm:$0xff]
      %v1103 = vld [vmem:[%s13 + $0x18] sm:$0xff]
      %v1104 = vld [vmem:[%s13 + $0x20] sm:$0xff]
      %v1105 = vld [vmem:[%s13 + $0x28] sm:$0xff]
      %v1106 = vld [vmem:[%s13 + $0x30] sm:$0xff]
      %v1107 = vld [vmem:[%s13 + $0x38] sm:$0xff]
      %v1108 = vld [vmem:[%s13 + $0x40] sm:$0xff]
      %v1109 = vld [vmem:[%s13 + $0x48] sm:$0xff]
      %v1110 = vld [vmem:[%s13 + $0x50] sm:$0xff]
      %v1111 = vld [vmem:[%s13 + $0x58] sm:$0xff]
      %v1112 = vld [vmem:[%s13 + $0x60] sm:$0xff]
      %v1113 = vld [vmem:[%s13 + $0x68] sm:$0xff]
      %v1114 = vld [vmem:[%s13 + $0x70] sm:$0xff]
      %v1115 = vld [vmem:[%s13 + $0x78] sm:$0xff]
      %v1116 = vld [vmem:[%s13 + $0x80] sm:$0xff]
      %v1117 = vld [vmem:[%s13 + $0x88] sm:$0xff]
      %v1118 = vld [vmem:[%s13 + $0x90] sm:$0xff]
      %v1119 = vld [vmem:[%s13 + $0x98] sm:$0xff]
      %v1120 = vld [vmem:[%s13 + $0xa0] sm:$0xff]
      %v1121 = vld [vmem:[%s13 + $0xa8] sm:$0xff]
      %v1122 = vld [vmem:[%s13 + $0xb0] sm:$0xff]
      %v1123 = vld [vmem:[%s13 + $0xb8] sm:$0xff]
      %v1124 = vld [vmem:[%s13 + $0xc0] sm:$0xff]
      %v1125 = vld [vmem:[%s13 + $0xc8] sm:$0xff]
      %v1126 = vld [vmem:[%s13 + $0xd0] sm:$0xff]
      %v1127 = vld [vmem:[%s13 + $0xd8] sm:$0xff]
      %v1128 = vld [vmem:[%s13 + $0xe0] sm:$0xff]
      %v1129 = vld [vmem:[%s13 + $0xe8] sm:$0xff]
      %v1130 = vld [vmem:[%s13 + $0xf0] sm:$0xff]
      %v1131 = vld [vmem:[%s13 + $0xf8] sm:$0xff]
      %v1132 = vld [vmem:[%s13 + $0x100] sm:$0xff]
      %v1133 = vld [vmem:[%s13 + $0x108] sm:$0xff]
      %v1134 = vld [vmem:[%s13 + $0x110] sm:$0xff]
      %v1135 = vld [vmem:[%s13 + $0x118] sm:$0xff]
      %v1137 = vsel %vm791, %v1099, 0
      %1139 = vmatprep.subr.mxu0 0.0
      %1140 = vmatpush1.msra.mxu0 %v1115
      %1141 = vmatprep.subr.mxu0 0.0
      %1142 = vmatpush1.msra.mxu0 %v1114
      %1143 = vmatprep.subr.mxu0 0.0
      %1144 = vmatpush1.msra.mxu0 %v1113
      %1145 = vmatprep.subr.mxu0 0.0
      %1146 = vmatpush1.msra.mxu0 %v1112
      %1147 = vmatprep.subr.mxu0 0.0
      %1148 = vmatpush1.msra.mxu0 %v1111
      %1149 = vmatprep.subr.mxu0 0.0
      %1150 = vmatpush1.msra.mxu0 %v1110
      %1151 = vmatprep.subr.mxu0 0.0
      %1152 = vmatpush1.msra.mxu0 %v1109
      %1153 = vmatprep.subr.mxu0 0.0
      %1154 = vmatpush1.msra.mxu0 %v1108
      %1155 = vmatprep.subr.mxu0 0.0
      %1156 = vmatpush1.msra.mxu0 %v1107
      %1157 = vmatprep.subr.mxu0 0.0
      %1158 = vmatpush1.msra.mxu0 %v1106
      %1159 = vmatprep.subr.mxu0 0.0
      %1160 = vmatpush1.msra.mxu0 %v1105
      %1161 = vmatprep.subr.mxu0 0.0
      %1162 = vmatpush1.msra.mxu0 %v1104
      %1163 = vmatprep.subr.mxu0 0.0
      %1164 = vmatpush1.msra.mxu0 %v1103
      %1165 = vmatprep.subr.mxu0 0.0
      %1166 = vmatpush1.msra.mxu0 %v1102
      %1167 = vmatprep.subr.mxu0 0.0
      %1168 = vmatpush1.msra.mxu0 %v1101
      %1169 = vmatprep.subr.mxu0 0.0
      %1170 = vmatpush1.msra.mxu0 %v1100
      %1171 = vmatprep.subr.mxu0 0.0
      %1172 = vmatpush2.msra.mxu0 %v1131
      %1173 = vmatprep.subr.mxu0 0.0
      %1174 = vmatpush2.msra.mxu0 %v1130
      %1175 = vmatprep.subr.mxu0 0.0
      %1176 = vmatpush2.msra.mxu0 %v1129
      %1177 = vmatprep.subr.mxu0 0.0
      %1178 = vmatpush2.msra.mxu0 %v1128
      %1179 = vmatprep.subr.mxu0 0.0
      %1180 = vmatpush2.msra.mxu0 %v1127
      %1181 = vmatprep.subr.mxu0 0.0
      %1182 = vmatpush2.msra.mxu0 %v1126
      %1183 = vmatprep.subr.mxu0 0.0
      %1184 = vmatpush2.msra.mxu0 %v1125
      %1185 = vmatprep.subr.mxu0 0.0
      %1186 = vmatpush2.msra.mxu0 %v1124
      %1187 = vmatprep.subr.mxu0 0.0
      %1188 = vmatpush2.msra.mxu0 %v1123
      %1189 = vmatprep.subr.mxu0 0.0
      %1190 = vmatpush2.msra.mxu0 %v1122
      %1191 = vmatprep.subr.mxu0 0.0
      %1192 = vmatpush2.msra.mxu0 %v1121
      %1193 = vmatprep.subr.mxu0 0.0
      %1194 = vmatpush2.msra.mxu0 %v1120
      %1195 = vmatprep.subr.mxu0 0.0
      %1196 = vmatpush2.msra.mxu0 %v1119
      %1197 = vmatprep.subr.mxu0 0.0
      %1198 = vmatpush2.msra.mxu0 %v1118
      %1199 = vmatprep.subr.mxu0 0.0
      %1200 = vmatpush2.msra.mxu0 %v1117
      %1201 = vmatprep.subr.mxu0 0.0
      %1202 = vmatpush2.msra.mxu0 %v1116
      %1203 = vmatprep.mubr.f32.mxu0 %v1098
      %1204 = vmatmul.mubr.f32.gmra.mxu0 %v1097
      %v1205 = vpop.f32.mrf.mxu0
      %v1206 = vadd.f32 0.0, %v1205
      %v1207 = vpop.f32.mrf.mxu0
      %1208 = vdwg.mxu0
      %1209 = vmatprep.subr.mxu0 0.0
      %1210 = vmatpush1.msra.mxu0 0.0
      %1211 = vmatprep.subr.mxu0 0.0
      %1212 = vmatpush1.msra.mxu0 0.0
      %1213 = vmatprep.subr.mxu0 0.0
      %1214 = vmatpush1.msra.mxu0 0.0
      %1215 = vmatprep.subr.mxu0 0.0
      %1216 = vmatpush1.msra.mxu0 0.0
      %1217 = vmatprep.subr.mxu0 0.0
      %1218 = vmatpush1.msra.mxu0 0.0
      %1219 = vmatprep.subr.mxu0 0.0
      %1220 = vmatpush1.msra.mxu0 0.0
      %1221 = vmatprep.subr.mxu0 0.0
      %1222 = vmatpush1.msra.mxu0 0.0
      %1223 = vmatprep.subr.mxu0 0.0
      %1224 = vmatpush1.msra.mxu0 0.0
      %1225 = vmatprep.subr.mxu0 0.0
      %1226 = vmatpush1.msra.mxu0 0.0
      %1227 = vmatprep.subr.mxu0 0.0
      %1228 = vmatpush1.msra.mxu0 0.0
      %1229 = vmatprep.subr.mxu0 0.0
      %1230 = vmatpush1.msra.mxu0 0.0
      %1231 = vmatprep.subr.mxu0 0.0
      %1232 = vmatpush1.msra.mxu0 0.0
      %1233 = vmatprep.subr.mxu0 0.0
      %1234 = vmatpush1.msra.mxu0 %v1135
      %1235 = vmatprep.subr.mxu0 0.0
      %1236 = vmatpush1.msra.mxu0 %v1134
      %1237 = vmatprep.subr.mxu0 0.0
      %1238 = vmatpush1.msra.mxu0 %v1133
      %1239 = vmatprep.subr.mxu0 0.0
      %1240 = vmatpush1.msra.mxu0 %v1132
      %1241 = vmatprep.subr.mxu0 0.0
      %1242 = vmatpush2.msra.mxu0 0.0
      %1243 = vmatprep.subr.mxu0 0.0
      %1244 = vmatpush2.msra.mxu0 0.0
      %1245 = vmatprep.subr.mxu0 0.0
      %1246 = vmatpush2.msra.mxu0 0.0
      %1247 = vmatprep.subr.mxu0 0.0
      %1248 = vmatpush2.msra.mxu0 0.0
      %1249 = vmatprep.subr.mxu0 0.0
      %1250 = vmatpush2.msra.mxu0 0.0
      %1251 = vmatprep.subr.mxu0 0.0
      %1252 = vmatpush2.msra.mxu0 0.0
      %1253 = vmatprep.subr.mxu0 0.0
      %1254 = vmatpush2.msra.mxu0 0.0
      %1255 = vmatprep.subr.mxu0 0.0
      %1256 = vmatpush2.msra.mxu0 0.0
      %1257 = vmatprep.subr.mxu0 0.0
      %1258 = vmatpush2.msra.mxu0 0.0
      %1259 = vmatprep.subr.mxu0 0.0
      %1260 = vmatpush2.msra.mxu0 0.0
      %1261 = vmatprep.subr.mxu0 0.0
      %1262 = vmatpush2.msra.mxu0 0.0
      %1263 = vmatprep.subr.mxu0 0.0
      %1264 = vmatpush2.msra.mxu0 0.0
      %1265 = vmatprep.subr.mxu0 0.0
      %1266 = vmatpush2.msra.mxu0 0.0
      %1267 = vmatprep.subr.mxu0 0.0
      %1268 = vmatpush2.msra.mxu0 0.0
      %1269 = vmatprep.subr.mxu0 0.0
      %1270 = vmatpush2.msra.mxu0 0.0
      %1271 = vmatprep.subr.mxu0 0.0
      %1272 = vmatpush2.msra.mxu0 0.0
      %1273 = vmatprep.mubr.f32.mxu0 0.0
      %1274 = vmatmul.mubr.f32.gmra.mxu0 %v1137
      %v1275 = vpop.f32.mrf.mxu0
      %v1276 = vadd.f32 %v1206, %v1275
      %v1277 = vpop.f32.mrf.mxu0
      %1278 = vdwg.mxu0
      %vm1279 = vcmask 818176
      %1280 = vst.msk [vmem:[#allocation2] sm:$0xff] %vm1279, %v1276
      %v1281 = vld [vmem:[%s4] sm:$0xf]
      %v1282 = vld [vmem:[#allocation2] sm:$0xff]
      %vm1283 = vcmask 654336
      %1284 = vst.msk [vmem:[#allocation7] sm:$0xff] %vm1283, %v1282
      %v1285 = vld [vmem:[#allocation2] sm:$0xff]
      %1287 = vrot.lane.b32.xlu0 %v1285, 127
      %v1288 = vpop.permute.xlu0 %1287
      %1290 = vst.msk [vmem:[#allocation7 + $0x18] sm:$0xff] %vm1283, %v1288
      %v1291 = vld [vmem:[#allocation2] sm:$0xff]
      %1293 = vrot.lane.b32.xlu0 %v1291, 126
      %v1294 = vpop.permute.xlu0 %1293
      %1296 = vst.msk [vmem:[#allocation7 + $0x30] sm:$0xff] %vm1283, %v1294
      %v1297 = vld [vmem:[#allocation2] sm:$0xff]
      %1299 = vrot.lane.b32.xlu0 %v1297, 118
      %v1300 = vpop.permute.xlu0 %1299
      %1302 = vst.msk [vmem:[#allocation7 + $0x48] sm:$0xff] %vm1283, %v1300
      %v1303 = vld [vmem:[#allocation2] sm:$0xff]
      %1305 = vrot.lane.b32.xlu0 %v1303, 117
      %v1306 = vpop.permute.xlu0 %1305
      %1308 = vst.msk [vmem:[#allocation7 + $0x60] sm:$0xff] %vm1283, %v1306
      %v1309 = vld [vmem:[#allocation2] sm:$0xff]
      %1311 = vrot.lane.b32.xlu0 %v1309, 116
      %v1312 = vpop.permute.xlu0 %1311
      %1314 = vst.msk [vmem:[#allocation7 + $0x78] sm:$0xff] %vm1283, %v1312
      %v1315 = vld [vmem:[#allocation2] sm:$0xff]
      %1317 = vrot.lane.b32.xlu0 %v1315, 108
      %v1318 = vpop.permute.xlu0 %1317
      %1320 = vst.msk [vmem:[#allocation7 + $0x90] sm:$0xff] %vm1283, %v1318
      %v1321 = vld [vmem:[#allocation2] sm:$0xff]
      %1323 = vrot.lane.b32.xlu0 %v1321, 107
      %v1324 = vpop.permute.xlu0 %1323
      %1326 = vst.msk [vmem:[#allocation7 + $0xa8] sm:$0xff] %vm1283, %v1324
      %v1327 = vld [vmem:[#allocation2] sm:$0xff]
      %1329 = vrot.lane.b32.xlu0 %v1327, 106
      %v1330 = vpop.permute.xlu0 %1329
      %1332 = vst.msk [vmem:[#allocation7 + $0xc0] sm:$0xff] %vm1283, %v1330
      %v1333 = vld [vmem:[#allocation7] sm:$0xff]
      %v1334 = vld [vmem:[#allocation7 + $0x18] sm:$0xff]
      %v1335 = vld [vmem:[#allocation7 + $0x30] sm:$0xff]
      %v1336 = vld [vmem:[#allocation7 + $0x48] sm:$0xff]
      %v1337 = vld [vmem:[#allocation7 + $0x60] sm:$0xff]
      %v1338 = vld [vmem:[#allocation7 + $0x78] sm:$0xff]
      %v1339 = vld [vmem:[#allocation7 + $0x90] sm:$0xff]
      %v1340 = vld [vmem:[#allocation7 + $0xa8] sm:$0xff]
      %v1341 = vld [vmem:[#allocation7 + $0xc0] sm:$0xff]
      %v1342 = vpack.c.bf16 %v1334, %v1333
      %v1343 = vpack.c.bf16 %v1336, %v1335
      %v1344 = vpack.c.bf16 %v1338, %v1337
      %v1345 = vpack.c.bf16 %v1340, %v1339
      %v1346 = vpack.c.bf16 %v1341, %v1341
      %v1348 = vsel %vm1002, %v1281, 0
      %v1351 = vsel %vm1006, %v1346, 0
      %1353 = vmatprep.subr.bf16.mxu0 0
      %1354 = vmatpush1.bf16.msra.mxu0 0
      %1355 = vmatprep.subr.bf16.mxu0 0
      %1356 = vmatpush1.bf16.msra.mxu0 0
      %1357 = vmatprep.subr.bf16.mxu0 0
      %1358 = vmatpush1.bf16.msra.mxu0 0
      %1359 = vmatprep.subr.bf16.mxu0 0
      %1360 = vmatpush1.bf16.msra.mxu0 %v1351
      %1361 = vmatprep.subr.bf16.mxu0 0
      %1362 = vmatpush1.bf16.msra.mxu0 %v1345
      %1363 = vmatprep.subr.bf16.mxu0 0
      %1364 = vmatpush1.bf16.msra.mxu0 %v1344
      %1365 = vmatprep.subr.bf16.mxu0 0
      %1366 = vmatpush1.bf16.msra.mxu0 %v1343
      %1367 = vmatprep.subr.bf16.mxu0 0
      %1368 = vmatpush1.bf16.msra.mxu0 %v1342
      %1369 = vmatprep.subr.bf16.mxu0 0
      %1370 = vmatpush2.bf16.msra.mxu0 0
      %1371 = vmatprep.subr.bf16.mxu0 0
      %1372 = vmatpush2.bf16.msra.mxu0 0
      %1373 = vmatprep.subr.bf16.mxu0 0
      %1374 = vmatpush2.bf16.msra.mxu0 0
      %1375 = vmatprep.subr.bf16.mxu0 0
      %1376 = vmatpush2.bf16.msra.mxu0 0
      %1377 = vmatprep.subr.bf16.mxu0 0
      %1378 = vmatpush2.bf16.msra.mxu0 0
      %1379 = vmatprep.subr.bf16.mxu0 0
      %1380 = vmatpush2.bf16.msra.mxu0 0
      %1381 = vmatprep.subr.bf16.mxu0 0
      %1382 = vmatpush2.bf16.msra.mxu0 0
      %1383 = vmatprep.subr.bf16.mxu0 0
      %1384 = vmatpush2.bf16.msra.mxu0 0
      %1385 = vmatprep.mubr.bf16.mxu0 0
      %1386 = vmatmul.mubr.bf16.gmra.mxu0 %v1348
      %v1387 = vpop.f32.mrf.mxu0
      %v1388 = vadd.f32 0.0, %v1387
      %v1389 = vpop.f32.mrf.mxu0
      %v1390 = vpop.f32.mrf.mxu0
      %v1391 = vpop.f32.mrf.mxu0
      %1392 = vdwg.mxu0
      %v1393 = vmax.f32 %v1388, 0.0
      %v1394 = vld [vmem:[%s17] sm:$0xff]
      %v1395 = vld [vmem:[%s17 + $0x8] sm:$0xff]
      %v1396 = vld [vmem:[%s17 + $0x10] sm:$0xff]
      %v1397 = vld [vmem:[%s17 + $0x18] sm:$0xff]
      %v1398 = vld [vmem:[%s17 + $0x20] sm:$0xff]
      %v1399 = vld [vmem:[%s17 + $0x28] sm:$0xff]
      %v1400 = vld [vmem:[%s17 + $0x30] sm:$0xff]
      %v1401 = vld [vmem:[%s17 + $0x38] sm:$0xff]
      %v1402 = vld [vmem:[%s17 + $0x40] sm:$0xff]
      %v1403 = vld [vmem:[%s17 + $0x48] sm:$0xff]
      %v1405 = vsel %vm1283, %v1393, 0
      %1407 = vmatprep.subr.mxu0 0.0
      %1408 = vmatpush1.msra.mxu0 0.0
      %1409 = vmatprep.subr.mxu0 0.0
      %1410 = vmatpush1.msra.mxu0 0.0
      %1411 = vmatprep.subr.mxu0 0.0
      %1412 = vmatpush1.msra.mxu0 0.0
      %1413 = vmatprep.subr.mxu0 0.0
      %1414 = vmatpush1.msra.mxu0 0.0
      %1415 = vmatprep.subr.mxu0 0.0
      %1416 = vmatpush1.msra.mxu0 0.0
      %1417 = vmatprep.subr.mxu0 0.0
      %1418 = vmatpush1.msra.mxu0 0.0
      %1419 = vmatprep.subr.mxu0 0.0
      %1420 = vmatpush1.msra.mxu0 %v1403
      %1421 = vmatprep.subr.mxu0 0.0
      %1422 = vmatpush1.msra.mxu0 %v1402
      %1423 = vmatprep.subr.mxu0 0.0
      %1424 = vmatpush1.msra.mxu0 %v1401
      %1425 = vmatprep.subr.mxu0 0.0
      %1426 = vmatpush1.msra.mxu0 %v1400
      %1427 = vmatprep.subr.mxu0 0.0
      %1428 = vmatpush1.msra.mxu0 %v1399
      %1429 = vmatprep.subr.mxu0 0.0
      %1430 = vmatpush1.msra.mxu0 %v1398
      %1431 = vmatprep.subr.mxu0 0.0
      %1432 = vmatpush1.msra.mxu0 %v1397
      %1433 = vmatprep.subr.mxu0 0.0
      %1434 = vmatpush1.msra.mxu0 %v1396
      %1435 = vmatprep.subr.mxu0 0.0
      %1436 = vmatpush1.msra.mxu0 %v1395
      %1437 = vmatprep.subr.mxu0 0.0
      %1438 = vmatpush1.msra.mxu0 %v1394
      %1439 = vmatprep.subr.mxu0 0.0
      %1440 = vmatpush2.msra.mxu0 0.0
      %1441 = vmatprep.subr.mxu0 0.0
      %1442 = vmatpush2.msra.mxu0 0.0
      %1443 = vmatprep.subr.mxu0 0.0
      %1444 = vmatpush2.msra.mxu0 0.0
      %1445 = vmatprep.subr.mxu0 0.0
      %1446 = vmatpush2.msra.mxu0 0.0
      %1447 = vmatprep.subr.mxu0 0.0
      %1448 = vmatpush2.msra.mxu0 0.0
      %1449 = vmatprep.subr.mxu0 0.0
      %1450 = vmatpush2.msra.mxu0 0.0
      %1451 = vmatprep.subr.mxu0 0.0
      %1452 = vmatpush2.msra.mxu0 0.0
      %1453 = vmatprep.subr.mxu0 0.0
      %1454 = vmatpush2.msra.mxu0 0.0
      %1455 = vmatprep.subr.mxu0 0.0
      %1456 = vmatpush2.msra.mxu0 0.0
      %1457 = vmatprep.subr.mxu0 0.0
      %1458 = vmatpush2.msra.mxu0 0.0
      %1459 = vmatprep.subr.mxu0 0.0
      %1460 = vmatpush2.msra.mxu0 0.0
      %1461 = vmatprep.subr.mxu0 0.0
      %1462 = vmatpush2.msra.mxu0 0.0
      %1463 = vmatprep.subr.mxu0 0.0
      %1464 = vmatpush2.msra.mxu0 0.0
      %1465 = vmatprep.subr.mxu0 0.0
      %1466 = vmatpush2.msra.mxu0 0.0
      %1467 = vmatprep.subr.mxu0 0.0
      %1468 = vmatpush2.msra.mxu0 0.0
      %1469 = vmatprep.subr.mxu0 0.0
      %1470 = vmatpush2.msra.mxu0 0.0
      %1471 = vmatprep.mubr.f32.mxu0 0.0
      %1472 = vmatmul.mubr.f32.gmra.mxu0 %v1405
      %v1473 = vpop.f32.mrf.mxu0
      %v1474 = vadd.f32 0.0, %v1473
      %v1475 = vpop.f32.mrf.mxu0
      %1476 = vdwg.mxu0
      %vm1477 = vcmask 523264
      %1478 = vst.msk [vmem:[%s760] sm:$0xff] %vm1477, %v1474
      %v1479 = vld [vmem:[%s15] sm:$0xff]
      %v1480 = vld [vmem:[%s15 + $0x8] sm:$0xff]
      %v1481 = vld [vmem:[%s15 + $0x10] sm:$0xff]
      %v1482 = vld [vmem:[%s15 + $0x18] sm:$0xff]
      %v1483 = vld [vmem:[%s15 + $0x20] sm:$0xff]
      %v1484 = vld [vmem:[%s15 + $0x28] sm:$0xff]
      %v1485 = vld [vmem:[%s15 + $0x30] sm:$0xff]
      %v1486 = vld [vmem:[%s15 + $0x38] sm:$0xff]
      %v1487 = vld [vmem:[%s15 + $0x40] sm:$0xff]
      %v1488 = vld [vmem:[%s15 + $0x48] sm:$0xff]
      %1489 = vmatprep.subr.mxu0 0.0
      %1490 = vmatpush1.msra.mxu0 0.0
      %1491 = vmatprep.subr.mxu0 0.0
      %1492 = vmatpush1.msra.mxu0 0.0
      %1493 = vmatprep.subr.mxu0 0.0
      %1494 = vmatpush1.msra.mxu0 0.0
      %1495 = vmatprep.subr.mxu0 0.0
      %1496 = vmatpush1.msra.mxu0 0.0
      %1497 = vmatprep.subr.mxu0 0.0
      %1498 = vmatpush1.msra.mxu0 0.0
      %1499 = vmatprep.subr.mxu0 0.0
      %1500 = vmatpush1.msra.mxu0 0.0
      %1501 = vmatprep.subr.mxu0 0.0
      %1502 = vmatpush1.msra.mxu0 %v1488
      %1503 = vmatprep.subr.mxu0 0.0
      %1504 = vmatpush1.msra.mxu0 %v1487
      %1505 = vmatprep.subr.mxu0 0.0
      %1506 = vmatpush1.msra.mxu0 %v1486
      %1507 = vmatprep.subr.mxu0 0.0
      %1508 = vmatpush1.msra.mxu0 %v1485
      %1509 = vmatprep.subr.mxu0 0.0
      %1510 = vmatpush1.msra.mxu0 %v1484
      %1511 = vmatprep.subr.mxu0 0.0
      %1512 = vmatpush1.msra.mxu0 %v1483
      %1513 = vmatprep.subr.mxu0 0.0
      %1514 = vmatpush1.msra.mxu0 %v1482
      %1515 = vmatprep.subr.mxu0 0.0
      %1516 = vmatpush1.msra.mxu0 %v1481
      %1517 = vmatprep.subr.mxu0 0.0
      %1518 = vmatpush1.msra.mxu0 %v1480
      %1519 = vmatprep.subr.mxu0 0.0
      %1520 = vmatpush1.msra.mxu0 %v1479
      %1521 = vmatprep.subr.mxu0 0.0
      %1522 = vmatpush2.msra.mxu0 0.0
      %1523 = vmatprep.subr.mxu0 0.0
      %1524 = vmatpush2.msra.mxu0 0.0
      %1525 = vmatprep.subr.mxu0 0.0
      %1526 = vmatpush2.msra.mxu0 0.0
      %1527 = vmatprep.subr.mxu0 0.0
      %1528 = vmatpush2.msra.mxu0 0.0
      %1529 = vmatprep.subr.mxu0 0.0
      %1530 = vmatpush2.msra.mxu0 0.0
      %1531 = vmatprep.subr.mxu0 0.0
      %1532 = vmatpush2.msra.mxu0 0.0
      %1533 = vmatprep.subr.mxu0 0.0
      %1534 = vmatpush2.msra.mxu0 0.0
      %1535 = vmatprep.subr.mxu0 0.0
      %1536 = vmatpush2.msra.mxu0 0.0
      %1537 = vmatprep.subr.mxu0 0.0
      %1538 = vmatpush2.msra.mxu0 0.0
      %1539 = vmatprep.subr.mxu0 0.0
      %1540 = vmatpush2.msra.mxu0 0.0
      %1541 = vmatprep.subr.mxu0 0.0
      %1542 = vmatpush2.msra.mxu0 0.0
      %1543 = vmatprep.subr.mxu0 0.0
      %1544 = vmatpush2.msra.mxu0 0.0
      %1545 = vmatprep.subr.mxu0 0.0
      %1546 = vmatpush2.msra.mxu0 0.0
      %1547 = vmatprep.subr.mxu0 0.0
      %1548 = vmatpush2.msra.mxu0 0.0
      %1549 = vmatprep.subr.mxu0 0.0
      %1550 = vmatpush2.msra.mxu0 0.0
      %1551 = vmatprep.subr.mxu0 0.0
      %1552 = vmatpush2.msra.mxu0 0.0
      %1553 = vmatprep.mubr.f32.mxu0 0.0
      %1554 = vmatmul.mubr.f32.gmra.mxu0 %v1405
      %v1555 = vpop.f32.mrf.mxu0
      %v1556 = vadd.f32 0.0, %v1555
      %v1557 = vpop.f32.mrf.mxu0
      %1558 = vdwg.mxu0
      %1559 = vst.msk [vmem:[#allocation3] sm:$0xff] %vm1279, %v1556
      %v1560 = vld [vmem:[%s751] sm:$0xff]
      %1561 = vst.msk [vmem:[#allocation3 + $0x8] sm:$0xff] %vm1279, %v1560
      %v1562 = vld [vmem:[%s5] sm:$0xff]
      %v1563 = vld [vmem:[%s5 + $0x8] sm:$0xff]
      %v1564 = vld [vmem:[#allocation3] sm:$0xff]
      %v1565 = vld [vmem:[#allocation3 + $0x8] sm:$0xff]
      %1566 = vst.msk [vmem:[#allocation7] sm:$0xff] %vm1283, %v1564
      %1567 = vst.msk [vmem:[#allocation7 + $0x18] sm:$0xff] %vm1283, %v1565
      %v1568 = vld [vmem:[#allocation3] sm:$0xff]
      %v1569 = vld [vmem:[#allocation3 + $0x8] sm:$0xff]
      %1572 = vrot.lane.b32.xlu0 %v1568, 127
      %v1573 = vpop.permute.xlu0 %1572
      %1574 = vrot.lane.b32.xlu0 %v1569, 127
      %v1575 = vpop.permute.xlu0 %1574
      %1578 = vst.msk [vmem:[#allocation7 + $0x30] sm:$0xff] %vm1283, %v1573
      %1579 = vst.msk [vmem:[#allocation7 + $0x48] sm:$0xff] %vm1283, %v1575
      %v1580 = vld [vmem:[#allocation3] sm:$0xff]
      %v1581 = vld [vmem:[#allocation3 + $0x8] sm:$0xff]
      %1584 = vrot.lane.b32.xlu0 %v1580, 126
      %v1585 = vpop.permute.xlu0 %1584
      %1586 = vrot.lane.b32.xlu0 %v1581, 126
      %v1587 = vpop.permute.xlu0 %1586
      %1590 = vst.msk [vmem:[#allocation7 + $0x60] sm:$0xff] %vm1283, %v1585
      %1591 = vst.msk [vmem:[#allocation7 + $0x78] sm:$0xff] %vm1283, %v1587
      %v1592 = vld [vmem:[#allocation3] sm:$0xff]
      %v1593 = vld [vmem:[#allocation3 + $0x8] sm:$0xff]
      %1596 = vrot.lane.b32.xlu0 %v1592, 118
      %v1597 = vpop.permute.xlu0 %1596
      %1598 = vrot.lane.b32.xlu0 %v1593, 118
      %v1599 = vpop.permute.xlu0 %1598
      %1602 = vst.msk [vmem:[#allocation7 + $0x90] sm:$0xff] %vm1283, %v1597
      %1603 = vst.msk [vmem:[#allocation7 + $0xa8] sm:$0xff] %vm1283, %v1599
      %v1604 = vld [vmem:[#allocation3] sm:$0xff]
      %v1605 = vld [vmem:[#allocation3 + $0x8] sm:$0xff]
      %1608 = vrot.lane.b32.xlu0 %v1604, 117
      %v1609 = vpop.permute.xlu0 %1608
      %1610 = vrot.lane.b32.xlu0 %v1605, 117
      %v1611 = vpop.permute.xlu0 %1610
      %1614 = vst.msk [vmem:[#allocation7 + $0xc0] sm:$0xff] %vm1283, %v1609
      %1615 = vst.msk [vmem:[#allocation7 + $0xd8] sm:$0xff] %vm1283, %v1611
      %v1616 = vld [vmem:[#allocation3] sm:$0xff]
      %v1617 = vld [vmem:[#allocation3 + $0x8] sm:$0xff]
      %1620 = vrot.lane.b32.xlu0 %v1616, 116
      %v1621 = vpop.permute.xlu0 %1620
      %1622 = vrot.lane.b32.xlu0 %v1617, 116
      %v1623 = vpop.permute.xlu0 %1622
      %1626 = vst.msk [vmem:[#allocation7 + $0xf0] sm:$0xff] %vm1283, %v1621
      %1627 = vst.msk [vmem:[#allocation7 + $0x108] sm:$0xff] %vm1283, %v1623
      %v1628 = vld [vmem:[#allocation3] sm:$0xff]
      %v1629 = vld [vmem:[#allocation3 + $0x8] sm:$0xff]
      %1632 = vrot.lane.b32.xlu0 %v1628, 108
      %v1633 = vpop.permute.xlu0 %1632
      %1634 = vrot.lane.b32.xlu0 %v1629, 108
      %v1635 = vpop.permute.xlu0 %1634
      %1638 = vst.msk [vmem:[#allocation7 + $0x120] sm:$0xff] %vm1283, %v1633
      %1639 = vst.msk [vmem:[#allocation7 + $0x138] sm:$0xff] %vm1283, %v1635
      %v1640 = vld [vmem:[#allocation3] sm:$0xff]
      %v1641 = vld [vmem:[#allocation3 + $0x8] sm:$0xff]
      %1644 = vrot.lane.b32.xlu0 %v1640, 107
      %v1645 = vpop.permute.xlu0 %1644
      %1646 = vrot.lane.b32.xlu0 %v1641, 107
      %v1647 = vpop.permute.xlu0 %1646
      %1650 = vst.msk [vmem:[#allocation7 + $0x150] sm:$0xff] %vm1283, %v1645
      %1651 = vst.msk [vmem:[#allocation7 + $0x168] sm:$0xff] %vm1283, %v1647
      %v1652 = vld [vmem:[#allocation3] sm:$0xff]
      %v1653 = vld [vmem:[#allocation3 + $0x8] sm:$0xff]
      %1656 = vrot.lane.b32.xlu0 %v1652, 106
      %v1657 = vpop.permute.xlu0 %1656
      %1658 = vrot.lane.b32.xlu0 %v1653, 106
      %v1659 = vpop.permute.xlu0 %1658
      %1662 = vst.msk [vmem:[#allocation7 + $0x180] sm:$0xff] %vm1283, %v1657
      %1663 = vst.msk [vmem:[#allocation7 + $0x198] sm:$0xff] %vm1283, %v1659
      %v1664 = vld [vmem:[#allocation7] sm:$0xff]
      %v1665 = vld [vmem:[#allocation7 + $0x18] sm:$0xff]
      %v1666 = vld [vmem:[#allocation7 + $0x30] sm:$0xff]
      %v1667 = vld [vmem:[#allocation7 + $0x48] sm:$0xff]
      %v1668 = vld [vmem:[#allocation7 + $0x60] sm:$0xff]
      %v1669 = vld [vmem:[#allocation7 + $0x78] sm:$0xff]
      %v1670 = vld [vmem:[#allocation7 + $0x90] sm:$0xff]
      %v1671 = vld [vmem:[#allocation7 + $0xa8] sm:$0xff]
      %v1672 = vld [vmem:[#allocation7 + $0xc0] sm:$0xff]
      %v1673 = vld [vmem:[#allocation7 + $0xd8] sm:$0xff]
      %v1674 = vld [vmem:[#allocation7 + $0xf0] sm:$0xff]
      %v1675 = vld [vmem:[#allocation7 + $0x108] sm:$0xff]
      %v1676 = vld [vmem:[#allocation7 + $0x120] sm:$0xff]
      %v1677 = vld [vmem:[#allocation7 + $0x138] sm:$0xff]
      %v1678 = vld [vmem:[#allocation7 + $0x150] sm:$0xff]
      %v1679 = vld [vmem:[#allocation7 + $0x168] sm:$0xff]
      %v1680 = vld [vmem:[#allocation7 + $0x180] sm:$0xff]
      %v1681 = vld [vmem:[#allocation7 + $0x198] sm:$0xff]
      %v1682 = vpack.c.bf16 %v1665, %v1664
      %v1683 = vpack.c.bf16 %v1667, %v1666
      %v1684 = vpack.c.bf16 %v1669, %v1668
      %v1685 = vpack.c.bf16 %v1671, %v1670
      %v1686 = vpack.c.bf16 %v1673, %v1672
      %v1687 = vpack.c.bf16 %v1675, %v1674
      %v1688 = vpack.c.bf16 %v1677, %v1676
      %v1689 = vpack.c.bf16 %v1679, %v1678
      %v1690 = vpack.c.bf16 %v1681, %v1680
      %v1693 = vunpack.c.l.b16 %v1562
      %v1694 = vunpack.c.h.b16 %v1562
      %v1695 = vunpack.c.l.b16 %v1563
      %v1696 = vunpack.c.h.b16 %v1563
      %v1697 = vpack.c.b16 %v1695, %v1693
      %v1698 = vpack.c.b16 %v1696, %v1694
      %vm1700 = vcmask 130048
      %v1702 = vsel %vm1700, %v1698, 0
      %1704 = vmatprep.subr.bf16.mxu0 0
      %1705 = vmatpush1.bf16.msra.mxu0 %v1689
      %1706 = vmatprep.subr.bf16.mxu0 0
      %1707 = vmatpush1.bf16.msra.mxu0 %v1688
      %1708 = vmatprep.subr.bf16.mxu0 0
      %1709 = vmatpush1.bf16.msra.mxu0 %v1687
      %1710 = vmatprep.subr.bf16.mxu0 0
      %1711 = vmatpush1.bf16.msra.mxu0 %v1686
      %1712 = vmatprep.subr.bf16.mxu0 0
      %1713 = vmatpush1.bf16.msra.mxu0 %v1685
      %1714 = vmatprep.subr.bf16.mxu0 0
      %1715 = vmatpush1.bf16.msra.mxu0 %v1684
      %1716 = vmatprep.subr.bf16.mxu0 0
      %1717 = vmatpush1.bf16.msra.mxu0 %v1683
      %1718 = vmatprep.subr.bf16.mxu0 0
      %1719 = vmatpush1.bf16.msra.mxu0 %v1682
      %1720 = vmatprep.subr.bf16.mxu0 0
      %1721 = vmatpush2.bf16.msra.mxu0 0
      %1722 = vmatprep.subr.bf16.mxu0 0
      %1723 = vmatpush2.bf16.msra.mxu0 0
      %1724 = vmatprep.subr.bf16.mxu0 0
      %1725 = vmatpush2.bf16.msra.mxu0 0
      %1726 = vmatprep.subr.bf16.mxu0 0
      %1727 = vmatpush2.bf16.msra.mxu0 0
      %1728 = vmatprep.subr.bf16.mxu0 0
      %1729 = vmatpush2.bf16.msra.mxu0 0
      %1730 = vmatprep.subr.bf16.mxu0 0
      %1731 = vmatpush2.bf16.msra.mxu0 0
      %1732 = vmatprep.subr.bf16.mxu0 0
      %1733 = vmatpush2.bf16.msra.mxu0 0
      %1734 = vmatprep.subr.bf16.mxu0 0
      %1735 = vmatpush2.bf16.msra.mxu0 %v1690
      %1736 = vmatprep.mubr.bf16.mxu0 %v1702
      %1737 = vmatmul.mubr.bf16.gmra.mxu0 %v1697
      %v1738 = vpop.f32.mrf.mxu0
      %v1739 = vadd.f32 0.0, %v1738
      %v1740 = vpop.f32.mrf.mxu0
      %v1741 = vpop.f32.mrf.mxu0
      %v1742 = vadd.f32 0.0, %v1741
      %v1743 = vpop.f32.mrf.mxu0
      %1744 = vdwg.mxu0
      %v1745 = vmax.f32 %v1739, 0.0
      %v1746 = vmax.f32 %v1742, 0.0
      %v1747 = vld [vmem:[%s14] sm:$0xff]
      %v1748 = vld [vmem:[%s14 + $0x8] sm:$0xff]
      %v1749 = vld [vmem:[%s14 + $0x10] sm:$0xff]
      %v1750 = vld [vmem:[%s14 + $0x18] sm:$0xff]
      %v1751 = vld [vmem:[%s14 + $0x20] sm:$0xff]
      %v1752 = vld [vmem:[%s14 + $0x28] sm:$0xff]
      %v1753 = vld [vmem:[%s14 + $0x30] sm:$0xff]
      %v1754 = vld [vmem:[%s14 + $0x38] sm:$0xff]
      %v1755 = vld [vmem:[%s14 + $0x40] sm:$0xff]
      %v1756 = vld [vmem:[%s14 + $0x48] sm:$0xff]
      %v1758 = vsel %vm1283, %v1745, 0
      %v1761 = vsel %vm1283, %v1746, 0
      %1763 = vmatprep.subr.mxu0 0.0
      %1764 = vmatpush1.msra.mxu0 0.0
      %1765 = vmatprep.subr.mxu0 0.0
      %1766 = vmatpush1.msra.mxu0 0.0
      %1767 = vmatprep.subr.mxu0 0.0
      %1768 = vmatpush1.msra.mxu0 0.0
      %1769 = vmatprep.subr.mxu0 0.0
      %1770 = vmatpush1.msra.mxu0 0.0
      %1771 = vmatprep.subr.mxu0 0.0
      %1772 = vmatpush1.msra.mxu0 0.0
      %1773 = vmatprep.subr.mxu0 0.0
      %1774 = vmatpush1.msra.mxu0 0.0
      %1775 = vmatprep.subr.mxu0 0.0
      %1776 = vmatpush1.msra.mxu0 %v1756
      %1777 = vmatprep.subr.mxu0 0.0
      %1778 = vmatpush1.msra.mxu0 %v1755
      %1779 = vmatprep.subr.mxu0 0.0
      %1780 = vmatpush1.msra.mxu0 %v1754
      %1781 = vmatprep.subr.mxu0 0.0
      %1782 = vmatpush1.msra.mxu0 %v1753
      %1783 = vmatprep.subr.mxu0 0.0
      %1784 = vmatpush1.msra.mxu0 %v1752
      %1785 = vmatprep.subr.mxu0 0.0
      %1786 = vmatpush1.msra.mxu0 %v1751
      %1787 = vmatprep.subr.mxu0 0.0
      %1788 = vmatpush1.msra.mxu0 %v1750
      %1789 = vmatprep.subr.mxu0 0.0
      %1790 = vmatpush1.msra.mxu0 %v1749
      %1791 = vmatprep.subr.mxu0 0.0
      %1792 = vmatpush1.msra.mxu0 %v1748
      %1793 = vmatprep.subr.mxu0 0.0
      %1794 = vmatpush1.msra.mxu0 %v1747
      %1795 = vmatprep.subr.mxu0 0.0
      %1796 = vmatpush2.msra.mxu0 0.0
      %1797 = vmatprep.subr.mxu0 0.0
      %1798 = vmatpush2.msra.mxu0 0.0
      %1799 = vmatprep.subr.mxu0 0.0
      %1800 = vmatpush2.msra.mxu0 0.0
      %1801 = vmatprep.subr.mxu0 0.0
      %1802 = vmatpush2.msra.mxu0 0.0
      %1803 = vmatprep.subr.mxu0 0.0
      %1804 = vmatpush2.msra.mxu0 0.0
      %1805 = vmatprep.subr.mxu0 0.0
      %1806 = vmatpush2.msra.mxu0 0.0
      %1807 = vmatprep.subr.mxu0 0.0
      %1808 = vmatpush2.msra.mxu0 0.0
      %1809 = vmatprep.subr.mxu0 0.0
      %1810 = vmatpush2.msra.mxu0 0.0
      %1811 = vmatprep.subr.mxu0 0.0
      %1812 = vmatpush2.msra.mxu0 0.0
      %1813 = vmatprep.subr.mxu0 0.0
      %1814 = vmatpush2.msra.mxu0 0.0
      %1815 = vmatprep.subr.mxu0 0.0
      %1816 = vmatpush2.msra.mxu0 0.0
      %1817 = vmatprep.subr.mxu0 0.0
      %1818 = vmatpush2.msra.mxu0 0.0
      %1819 = vmatprep.subr.mxu0 0.0
      %1820 = vmatpush2.msra.mxu0 0.0
      %1821 = vmatprep.subr.mxu0 0.0
      %1822 = vmatpush2.msra.mxu0 0.0
      %1823 = vmatprep.subr.mxu0 0.0
      %1824 = vmatpush2.msra.mxu0 0.0
      %1825 = vmatprep.subr.mxu0 0.0
      %1826 = vmatpush2.msra.mxu0 0.0
      %1827 = vmatprep.mubr.f32.mxu0 0.0
      %1828 = vmatmul.mubr.f32.gmra.mxu0 %v1758
      %v1829 = vpop.f32.mrf.mxu0
      %v1830 = vadd.f32 0.0, %v1829
      %v1831 = vpop.f32.mrf.mxu0
      %1832 = vmatprep.mubr.f32.mxu0 0.0
      %1833 = vmatmul.mubr.f32.gmra.mxu0 %v1761
      %v1834 = vpop.f32.mrf.mxu0
      %v1835 = vadd.f32 0.0, %v1834
      %v1836 = vpop.f32.mrf.mxu0
      %1837 = vdwg.mxu0
      %vm1838 = vcmask 293888
      %1839 = vst.msk [vmem:[#allocation4] sm:$0xff] %vm1838, %v1830
      %1840 = vst.msk [vmem:[#allocation4 + $0x8] sm:$0xff] %vm1838, %v1835
      %v1841 = vld [vmem:[%s6] sm:$0xff]
      %v1842 = vld [vmem:[%s6 + $0x8] sm:$0xff]
      %v1843 = vld [vmem:[#allocation4] sm:$0xff]
      %v1844 = vld [vmem:[#allocation4 + $0x8] sm:$0xff]
      %vm1845 = vcmask 195584
      %1846 = vst.msk [vmem:[#allocation7] sm:$0xff] %vm1845, %v1843
      %1847 = vst.msk [vmem:[#allocation7 + $0x18] sm:$0xff] %vm1845, %v1844
      %v1848 = vld [vmem:[#allocation4] sm:$0xff]
      %v1849 = vld [vmem:[#allocation4 + $0x8] sm:$0xff]
      %1852 = vrot.lane.b32.xlu0 %v1848, 127
      %v1853 = vpop.permute.xlu0 %1852
      %1854 = vrot.lane.b32.xlu0 %v1849, 127
      %v1855 = vpop.permute.xlu0 %1854
      %1858 = vst.msk [vmem:[#allocation7 + $0x30] sm:$0xff] %vm1845, %v1853
      %1859 = vst.msk [vmem:[#allocation7 + $0x48] sm:$0xff] %vm1845, %v1855
      %v1860 = vld [vmem:[#allocation4] sm:$0xff]
      %v1861 = vld [vmem:[#allocation4 + $0x8] sm:$0xff]
      %1864 = vrot.lane.b32.xlu0 %v1860, 126
      %v1865 = vpop.permute.xlu0 %1864
      %1866 = vrot.lane.b32.xlu0 %v1861, 126
      %v1867 = vpop.permute.xlu0 %1866
      %1870 = vst.msk [vmem:[#allocation7 + $0x60] sm:$0xff] %vm1845, %v1865
      %1871 = vst.msk [vmem:[#allocation7 + $0x78] sm:$0xff] %vm1845, %v1867
      %v1872 = vld [vmem:[#allocation4] sm:$0xff]
      %v1873 = vld [vmem:[#allocation4 + $0x8] sm:$0xff]
      %1876 = vrot.lane.b32.xlu0 %v1872, 122
      %v1877 = vpop.permute.xlu0 %1876
      %1878 = vrot.lane.b32.xlu0 %v1873, 122
      %v1879 = vpop.permute.xlu0 %1878
      %1882 = vst.msk [vmem:[#allocation7 + $0x90] sm:$0xff] %vm1845, %v1877
      %1883 = vst.msk [vmem:[#allocation7 + $0xa8] sm:$0xff] %vm1845, %v1879
      %v1884 = vld [vmem:[#allocation4] sm:$0xff]
      %v1885 = vld [vmem:[#allocation4 + $0x8] sm:$0xff]
      %1888 = vrot.lane.b32.xlu0 %v1884, 121
      %v1889 = vpop.permute.xlu0 %1888
      %1890 = vrot.lane.b32.xlu0 %v1885, 121
      %v1891 = vpop.permute.xlu0 %1890
      %1894 = vst.msk [vmem:[#allocation7 + $0xc0] sm:$0xff] %vm1845, %v1889
      %1895 = vst.msk [vmem:[#allocation7 + $0xd8] sm:$0xff] %vm1845, %v1891
      %v1896 = vld [vmem:[#allocation4] sm:$0xff]
      %v1897 = vld [vmem:[#allocation4 + $0x8] sm:$0xff]
      %1900 = vrot.lane.b32.xlu0 %v1896, 120
      %v1901 = vpop.permute.xlu0 %1900
      %1902 = vrot.lane.b32.xlu0 %v1897, 120
      %v1903 = vpop.permute.xlu0 %1902
      %1906 = vst.msk [vmem:[#allocation7 + $0xf0] sm:$0xff] %vm1845, %v1901
      %1907 = vst.msk [vmem:[#allocation7 + $0x108] sm:$0xff] %vm1845, %v1903
      %v1908 = vld [vmem:[#allocation4] sm:$0xff]
      %v1909 = vld [vmem:[#allocation4 + $0x8] sm:$0xff]
      %1912 = vrot.lane.b32.xlu0 %v1908, 116
      %v1913 = vpop.permute.xlu0 %1912
      %1914 = vrot.lane.b32.xlu0 %v1909, 116
      %v1915 = vpop.permute.xlu0 %1914
      %1918 = vst.msk [vmem:[#allocation7 + $0x120] sm:$0xff] %vm1845, %v1913
      %1919 = vst.msk [vmem:[#allocation7 + $0x138] sm:$0xff] %vm1845, %v1915
      %v1920 = vld [vmem:[#allocation4] sm:$0xff]
      %v1921 = vld [vmem:[#allocation4 + $0x8] sm:$0xff]
      %1924 = vrot.lane.b32.xlu0 %v1920, 115
      %v1925 = vpop.permute.xlu0 %1924
      %1926 = vrot.lane.b32.xlu0 %v1921, 115
      %v1927 = vpop.permute.xlu0 %1926
      %1930 = vst.msk [vmem:[#allocation7 + $0x150] sm:$0xff] %vm1845, %v1925
      %1931 = vst.msk [vmem:[#allocation7 + $0x168] sm:$0xff] %vm1845, %v1927
      %v1932 = vld [vmem:[#allocation4] sm:$0xff]
      %v1933 = vld [vmem:[#allocation4 + $0x8] sm:$0xff]
      %1936 = vrot.lane.b32.xlu0 %v1932, 114
      %v1937 = vpop.permute.xlu0 %1936
      %1938 = vrot.lane.b32.xlu0 %v1933, 114
      %v1939 = vpop.permute.xlu0 %1938
      %1942 = vst.msk [vmem:[#allocation7 + $0x180] sm:$0xff] %vm1845, %v1937
      %1943 = vst.msk [vmem:[#allocation7 + $0x198] sm:$0xff] %vm1845, %v1939
      %v1944 = vld [vmem:[#allocation7] sm:$0xff]
      %v1945 = vld [vmem:[#allocation7 + $0x18] sm:$0xff]
      %v1946 = vld [vmem:[#allocation7 + $0x30] sm:$0xff]
      %v1947 = vld [vmem:[#allocation7 + $0x48] sm:$0xff]
      %v1948 = vld [vmem:[#allocation7 + $0x60] sm:$0xff]
      %v1949 = vld [vmem:[#allocation7 + $0x78] sm:$0xff]
      %v1950 = vld [vmem:[#allocation7 + $0x90] sm:$0xff]
      %v1951 = vld [vmem:[#allocation7 + $0xa8] sm:$0xff]
      %v1952 = vld [vmem:[#allocation7 + $0xc0] sm:$0xff]
      %v1953 = vld [vmem:[#allocation7 + $0xd8] sm:$0xff]
      %v1954 = vld [vmem:[#allocation7 + $0xf0] sm:$0xff]
      %v1955 = vld [vmem:[#allocation7 + $0x108] sm:$0xff]
      %v1956 = vld [vmem:[#allocation7 + $0x120] sm:$0xff]
      %v1957 = vld [vmem:[#allocation7 + $0x138] sm:$0xff]
      %v1958 = vld [vmem:[#allocation7 + $0x150] sm:$0xff]
      %v1959 = vld [vmem:[#allocation7 + $0x168] sm:$0xff]
      %v1960 = vld [vmem:[#allocation7 + $0x180] sm:$0xff]
      %v1961 = vld [vmem:[#allocation7 + $0x198] sm:$0xff]
      %v1962 = vpack.c.bf16 %v1945, %v1944
      %v1963 = vpack.c.bf16 %v1947, %v1946
      %v1964 = vpack.c.bf16 %v1949, %v1948
      %v1965 = vpack.c.bf16 %v1951, %v1950
      %v1966 = vpack.c.bf16 %v1953, %v1952
      %v1967 = vpack.c.bf16 %v1955, %v1954
      %v1968 = vpack.c.bf16 %v1957, %v1956
      %v1969 = vpack.c.bf16 %v1959, %v1958
      %v1970 = vpack.c.bf16 %v1961, %v1960
      %v1973 = vunpack.c.l.b16 %v1841
      %v1974 = vunpack.c.h.b16 %v1841
      %v1975 = vunpack.c.l.b16 %v1842
      %v1976 = vunpack.c.h.b16 %v1842
      %v1977 = vpack.c.b16 %v1975, %v1973
      %v1978 = vpack.c.b16 %v1976, %v1974
      %v1981 = vsel %vm1700, %v1978, 0
      %1983 = vmatprep.subr.bf16.mxu0 0
      %1984 = vmatpush1.bf16.msra.mxu0 %v1969
      %1985 = vmatprep.subr.bf16.mxu0 0
      %1986 = vmatpush1.bf16.msra.mxu0 %v1968
      %1987 = vmatprep.subr.bf16.mxu0 0
      %1988 = vmatpush1.bf16.msra.mxu0 %v1967
      %1989 = vmatprep.subr.bf16.mxu0 0
      %1990 = vmatpush1.bf16.msra.mxu0 %v1966
      %1991 = vmatprep.subr.bf16.mxu0 0
      %1992 = vmatpush1.bf16.msra.mxu0 %v1965
      %1993 = vmatprep.subr.bf16.mxu0 0
      %1994 = vmatpush1.bf16.msra.mxu0 %v1964
      %1995 = vmatprep.subr.bf16.mxu0 0
      %1996 = vmatpush1.bf16.msra.mxu0 %v1963
      %1997 = vmatprep.subr.bf16.mxu0 0
      %1998 = vmatpush1.bf16.msra.mxu0 %v1962
      %1999 = vmatprep.subr.bf16.mxu0 0
      %2000 = vmatpush2.bf16.msra.mxu0 0
      %2001 = vmatprep.subr.bf16.mxu0 0
      %2002 = vmatpush2.bf16.msra.mxu0 0
      %2003 = vmatprep.subr.bf16.mxu0 0
      %2004 = vmatpush2.bf16.msra.mxu0 0
      %2005 = vmatprep.subr.bf16.mxu0 0
      %2006 = vmatpush2.bf16.msra.mxu0 0
      %2007 = vmatprep.subr.bf16.mxu0 0
      %2008 = vmatpush2.bf16.msra.mxu0 0
      %2009 = vmatprep.subr.bf16.mxu0 0
      %2010 = vmatpush2.bf16.msra.mxu0 0
      %2011 = vmatprep.subr.bf16.mxu0 0
      %2012 = vmatpush2.bf16.msra.mxu0 0
      %2013 = vmatprep.subr.bf16.mxu0 0
      %2014 = vmatpush2.bf16.msra.mxu0 %v1970
      %2015 = vmatprep.mubr.bf16.mxu0 %v1981
      %2016 = vmatmul.mubr.bf16.gmra.mxu0 %v1977
      %v2017 = vpop.f32.mrf.mxu0
      %v2018 = vadd.f32 0.0, %v2017
      %v2019 = vpop.f32.mrf.mxu0
      %v2020 = vpop.f32.mrf.mxu0
      %v2021 = vadd.f32 0.0, %v2020
      %v2022 = vpop.f32.mrf.mxu0
      %2023 = vdwg.mxu0
      %v2024 = vmax.f32 %v2018, 0.0
      %v2025 = vmax.f32 %v2021, 0.0
      %v2026 = vld [vmem:[%s18] sm:$0xff]
      %v2027 = vld [vmem:[%s18 + $0x8] sm:$0xff]
      %v2028 = vld [vmem:[%s18 + $0x10] sm:$0xff]
      %v2030 = vsel %vm1845, %v2024, 0
      %v2033 = vsel %vm1845, %v2025, 0
      %2035 = vmatprep.subr.mxu0 0.0
      %2036 = vmatpush1.msra.mxu0 0.0
      %2037 = vmatprep.subr.mxu0 0.0
      %2038 = vmatpush1.msra.mxu0 0.0
      %2039 = vmatprep.subr.mxu0 0.0
      %2040 = vmatpush1.msra.mxu0 0.0
      %2041 = vmatprep.subr.mxu0 0.0
      %2042 = vmatpush1.msra.mxu0 0.0
      %2043 = vmatprep.subr.mxu0 0.0
      %2044 = vmatpush1.msra.mxu0 0.0
      %2045 = vmatprep.subr.mxu0 0.0
      %2046 = vmatpush1.msra.mxu0 0.0
      %2047 = vmatprep.subr.mxu0 0.0
      %2048 = vmatpush1.msra.mxu0 0.0
      %2049 = vmatprep.subr.mxu0 0.0
      %2050 = vmatpush1.msra.mxu0 0.0
      %2051 = vmatprep.subr.mxu0 0.0
      %2052 = vmatpush1.msra.mxu0 0.0
      %2053 = vmatprep.subr.mxu0 0.0
      %2054 = vmatpush1.msra.mxu0 0.0
      %2055 = vmatprep.subr.mxu0 0.0
      %2056 = vmatpush1.msra.mxu0 0.0
      %2057 = vmatprep.subr.mxu0 0.0
      %2058 = vmatpush1.msra.mxu0 0.0
      %2059 = vmatprep.subr.mxu0 0.0
      %2060 = vmatpush1.msra.mxu0 0.0
      %2061 = vmatprep.subr.mxu0 0.0
      %2062 = vmatpush1.msra.mxu0 %v2028
      %2063 = vmatprep.subr.mxu0 0.0
      %2064 = vmatpush1.msra.mxu0 %v2027
      %2065 = vmatprep.subr.mxu0 0.0
      %2066 = vmatpush1.msra.mxu0 %v2026
      %2067 = vmatprep.subr.mxu0 0.0
      %2068 = vmatpush2.msra.mxu0 0.0
      %2069 = vmatprep.subr.mxu0 0.0
      %2070 = vmatpush2.msra.mxu0 0.0
      %2071 = vmatprep.subr.mxu0 0.0
      %2072 = vmatpush2.msra.mxu0 0.0
      %2073 = vmatprep.subr.mxu0 0.0
      %2074 = vmatpush2.msra.mxu0 0.0
      %2075 = vmatprep.subr.mxu0 0.0
      %2076 = vmatpush2.msra.mxu0 0.0
      %2077 = vmatprep.subr.mxu0 0.0
      %2078 = vmatpush2.msra.mxu0 0.0
      %2079 = vmatprep.subr.mxu0 0.0
      %2080 = vmatpush2.msra.mxu0 0.0
      %2081 = vmatprep.subr.mxu0 0.0
      %2082 = vmatpush2.msra.mxu0 0.0
      %2083 = vmatprep.subr.mxu0 0.0
      %2084 = vmatpush2.msra.mxu0 0.0
      %2085 = vmatprep.subr.mxu0 0.0
      %2086 = vmatpush2.msra.mxu0 0.0
      %2087 = vmatprep.subr.mxu0 0.0
      %2088 = vmatpush2.msra.mxu0 0.0
      %2089 = vmatprep.subr.mxu0 0.0
      %2090 = vmatpush2.msra.mxu0 0.0
      %2091 = vmatprep.subr.mxu0 0.0
      %2092 = vmatpush2.msra.mxu0 0.0
      %2093 = vmatprep.subr.mxu0 0.0
      %2094 = vmatpush2.msra.mxu0 0.0
      %2095 = vmatprep.subr.mxu0 0.0
      %2096 = vmatpush2.msra.mxu0 0.0
      %2097 = vmatprep.subr.mxu0 0.0
      %2098 = vmatpush2.msra.mxu0 0.0
      %2099 = vmatprep.mubr.f32.mxu0 0.0
      %2100 = vmatmul.mubr.f32.gmra.mxu0 %v2030
      %v2101 = vpop.f32.mrf.mxu0
      %v2102 = vadd.f32 0.0, %v2101
      %v2103 = vpop.f32.mrf.mxu0
      %2104 = vmatprep.mubr.f32.mxu0 0.0
      %2105 = vmatmul.mubr.f32.gmra.mxu0 %v2033
      %v2106 = vpop.f32.mrf.mxu0
      %v2107 = vadd.f32 0.0, %v2106
      %v2108 = vpop.f32.mrf.mxu0
      %2109 = vdwg.mxu0
      %2110 = vst.msk [vmem:[%s765] sm:$0xff] %vm1700, %v2102
      %2111 = vst.msk [vmem:[%s765 + $0x8] sm:$0xff] %vm1700, %v2107
      %v2112 = vld [vmem:[%s16] sm:$0xff]
      %v2113 = vld [vmem:[%s16 + $0x8] sm:$0xff]
      %v2114 = vld [vmem:[%s16 + $0x10] sm:$0xff]
      %2115 = vmatprep.subr.mxu0 0.0
      %2116 = vmatpush1.msra.mxu0 0.0
      %2117 = vmatprep.subr.mxu0 0.0
      %2118 = vmatpush1.msra.mxu0 0.0
      %2119 = vmatprep.subr.mxu0 0.0
      %2120 = vmatpush1.msra.mxu0 0.0
      %2121 = vmatprep.subr.mxu0 0.0
      %2122 = vmatpush1.msra.mxu0 0.0
      %2123 = vmatprep.subr.mxu0 0.0
      %2124 = vmatpush1.msra.mxu0 0.0
      %2125 = vmatprep.subr.mxu0 0.0
      %2126 = vmatpush1.msra.mxu0 0.0
      %2127 = vmatprep.subr.mxu0 0.0
      %2128 = vmatpush1.msra.mxu0 0.0
      %2129 = vmatprep.subr.mxu0 0.0
      %2130 = vmatpush1.msra.mxu0 0.0
      %2131 = vmatprep.subr.mxu0 0.0
      %2132 = vmatpush1.msra.mxu0 0.0
      %2133 = vmatprep.subr.mxu0 0.0
      %2134 = vmatpush1.msra.mxu0 0.0
      %2135 = vmatprep.subr.mxu0 0.0
      %2136 = vmatpush1.msra.mxu0 0.0
      %2137 = vmatprep.subr.mxu0 0.0
      %2138 = vmatpush1.msra.mxu0 0.0
      %2139 = vmatprep.subr.mxu0 0.0
      %2140 = vmatpush1.msra.mxu0 0.0
      %2141 = vmatprep.subr.mxu0 0.0
      %2142 = vmatpush1.msra.mxu0 %v2114
      %2143 = vmatprep.subr.mxu0 0.0
      %2144 = vmatpush1.msra.mxu0 %v2113
      %2145 = vmatprep.subr.mxu0 0.0
      %2146 = vmatpush1.msra.mxu0 %v2112
      %2147 = vmatprep.subr.mxu0 0.0
      %2148 = vmatpush2.msra.mxu0 0.0
      %2149 = vmatprep.subr.mxu0 0.0
      %2150 = vmatpush2.msra.mxu0 0.0
      %2151 = vmatprep.subr.mxu0 0.0
      %2152 = vmatpush2.msra.mxu0 0.0
      %2153 = vmatprep.subr.mxu0 0.0
      %2154 = vmatpush2.msra.mxu0 0.0
      %2155 = vmatprep.subr.mxu0 0.0
      %2156 = vmatpush2.msra.mxu0 0.0
      %2157 = vmatprep.subr.mxu0 0.0
      %2158 = vmatpush2.msra.mxu0 0.0
      %2159 = vmatprep.subr.mxu0 0.0
      %2160 = vmatpush2.msra.mxu0 0.0
      %2161 = vmatprep.subr.mxu0 0.0
      %2162 = vmatpush2.msra.mxu0 0.0
      %2163 = vmatprep.subr.mxu0 0.0
      %2164 = vmatpush2.msra.mxu0 0.0
      %2165 = vmatprep.subr.mxu0 0.0
      %2166 = vmatpush2.msra.mxu0 0.0
      %2167 = vmatprep.subr.mxu0 0.0
      %2168 = vmatpush2.msra.mxu0 0.0
      %2169 = vmatprep.subr.mxu0 0.0
      %2170 = vmatpush2.msra.mxu0 0.0
      %2171 = vmatprep.subr.mxu0 0.0
      %2172 = vmatpush2.msra.mxu0 0.0
      %2173 = vmatprep.subr.mxu0 0.0
      %2174 = vmatpush2.msra.mxu0 0.0
      %2175 = vmatprep.subr.mxu0 0.0
      %2176 = vmatpush2.msra.mxu0 0.0
      %2177 = vmatprep.subr.mxu0 0.0
      %2178 = vmatpush2.msra.mxu0 0.0
      %2179 = vmatprep.mubr.f32.mxu0 0.0
      %2180 = vmatmul.mubr.f32.gmra.mxu0 %v2030
      %v2181 = vpop.f32.mrf.mxu0
      %v2182 = vadd.f32 0.0, %v2181
      %v2183 = vpop.f32.mrf.mxu0
      %2184 = vmatprep.mubr.f32.mxu0 0.0
      %2185 = vmatmul.mubr.f32.gmra.mxu0 %v2033
      %v2186 = vpop.f32.mrf.mxu0
      %v2187 = vadd.f32 0.0, %v2186
      %v2188 = vpop.f32.mrf.mxu0
      %2189 = vdwg.mxu0
      %2190 = vst.msk [vmem:[#allocation5] sm:$0xff] %vm1838, %v2182
      %2191 = vst.msk [vmem:[#allocation5 + $0x8] sm:$0xff] %vm1838, %v2187
      %v2192 = vld [vmem:[%s756] sm:$0xff]
      %v2193 = vld [vmem:[%s756 + $0x8] sm:$0xff]
      %2194 = vst.msk [vmem:[#allocation5 + $0x10] sm:$0xff] %vm1838, %v2192
      %2195 = vst.msk [vmem:[#allocation5 + $0x18] sm:$0xff] %vm1838, %v2193
      %v2196 = vld [vmem:[%s7] sm:$0xf]
      %v2197 = vld [vmem:[%s7 + $0x4] sm:$0xf]
      %v2198 = vld [vmem:[%s7 + $0x8] sm:$0xf]
      %v2199 = vld [vmem:[%s7 + $0xc] sm:$0xf]
      %v2200 = vld [vmem:[%s7 + $0x10] sm:$0xf]
      %v2201 = vld [vmem:[%s7 + $0x14] sm:$0xf]
      %v2202 = vld [vmem:[%s7 + $0x18] sm:$0xf]
      %v2203 = vld [vmem:[%s7 + $0x1c] sm:$0xf]
      %v2204 = vld [vmem:[#allocation5] sm:$0xff]
      %v2205 = vld [vmem:[#allocation5 + $0x8] sm:$0xff]
      %v2206 = vld [vmem:[#allocation5 + $0x10] sm:$0xff]
      %v2207 = vld [vmem:[#allocation5 + $0x18] sm:$0xff]
      %2212 = vrot.lane.b32.xlu0 %v2204, 121
      %v2213 = vpop.permute.xlu0 %2212
      %2214 = vrot.lane.b32.xlu0 %v2205, 121
      %v2215 = vpop.permute.xlu0 %2214
      %2216 = vrot.lane.b32.xlu0 %v2206, 121
      %v2217 = vpop.permute.xlu0 %2216
      %2218 = vrot.lane.b32.xlu0 %v2207, 121
      %v2219 = vpop.permute.xlu0 %2218
      %2224 = vst.msk [vmem:[#allocation7] sm:$0xff] %vm1845, %v2213
      %2225 = vst.msk [vmem:[#allocation7 + $0x18] sm:$0xff] %vm1845, %v2215
      %2226 = vst.msk [vmem:[#allocation7 + $0x30] sm:$0xff] %vm1845, %v2217
      %2227 = vst.msk [vmem:[#allocation7 + $0x48] sm:$0xff] %vm1845, %v2219
      %v2228 = vld [vmem:[#allocation5] sm:$0xff]
      %v2229 = vld [vmem:[#allocation5 + $0x8] sm:$0xff]
      %v2230 = vld [vmem:[#allocation5 + $0x10] sm:$0xff]
      %v2231 = vld [vmem:[#allocation5 + $0x18] sm:$0xff]
      %2236 = vrot.lane.b32.xlu0 %v2228, 120
      %v2237 = vpop.permute.xlu0 %2236
      %2238 = vrot.lane.b32.xlu0 %v2229, 120
      %v2239 = vpop.permute.xlu0 %2238
      %2240 = vrot.lane.b32.xlu0 %v2230, 120
      %v2241 = vpop.permute.xlu0 %2240
      %2242 = vrot.lane.b32.xlu0 %v2231, 120
      %v2243 = vpop.permute.xlu0 %2242
      %2248 = vst.msk [vmem:[#allocation7 + $0x60] sm:$0xff] %vm1845, %v2237
      %2249 = vst.msk [vmem:[#allocation7 + $0x78] sm:$0xff] %vm1845, %v2239
      %2250 = vst.msk [vmem:[#allocation7 + $0x90] sm:$0xff] %vm1845, %v2241
      %2251 = vst.msk [vmem:[#allocation7 + $0xa8] sm:$0xff] %vm1845, %v2243
      %v2252 = vld [vmem:[#allocation5] sm:$0xff]
      %v2253 = vld [vmem:[#allocation5 + $0x8] sm:$0xff]
      %v2254 = vld [vmem:[#allocation5 + $0x10] sm:$0xff]
      %v2255 = vld [vmem:[#allocation5 + $0x18] sm:$0xff]
      %2260 = vrot.lane.b32.xlu0 %v2252, 115
      %v2261 = vpop.permute.xlu0 %2260
      %2262 = vrot.lane.b32.xlu0 %v2253, 115
      %v2263 = vpop.permute.xlu0 %2262
      %2264 = vrot.lane.b32.xlu0 %v2254, 115
      %v2265 = vpop.permute.xlu0 %2264
      %2266 = vrot.lane.b32.xlu0 %v2255, 115
      %v2267 = vpop.permute.xlu0 %2266
      %2272 = vst.msk [vmem:[#allocation7 + $0xc0] sm:$0xff] %vm1845, %v2261
      %2273 = vst.msk [vmem:[#allocation7 + $0xd8] sm:$0xff] %vm1845, %v2263
      %2274 = vst.msk [vmem:[#allocation7 + $0xf0] sm:$0xff] %vm1845, %v2265
      %2275 = vst.msk [vmem:[#allocation7 + $0x108] sm:$0xff] %vm1845, %v2267
      %v2276 = vld [vmem:[#allocation5] sm:$0xff]
      %v2277 = vld [vmem:[#allocation5 + $0x8] sm:$0xff]
      %v2278 = vld [vmem:[#allocation5 + $0x10] sm:$0xff]
      %v2279 = vld [vmem:[#allocation5 + $0x18] sm:$0xff]
      %2284 = vrot.lane.b32.xlu0 %v2276, 114
      %v2285 = vpop.permute.xlu0 %2284
      %2286 = vrot.lane.b32.xlu0 %v2277, 114
      %v2287 = vpop.permute.xlu0 %2286
      %2288 = vrot.lane.b32.xlu0 %v2278, 114
      %v2289 = vpop.permute.xlu0 %2288
      %2290 = vrot.lane.b32.xlu0 %v2279, 114
      %v2291 = vpop.permute.xlu0 %2290
      %2296 = vst.msk [vmem:[#allocation7 + $0x120] sm:$0xff] %vm1845, %v2285
      %2297 = vst.msk [vmem:[#allocation7 + $0x138] sm:$0xff] %vm1845, %v2287
      %2298 = vst.msk [vmem:[#allocation7 + $0x150] sm:$0xff] %vm1845, %v2289
      %2299 = vst.msk [vmem:[#allocation7 + $0x168] sm:$0xff] %vm1845, %v2291
      %v2300 = vld [vmem:[#allocation7] sm:$0xff]
      %v2301 = vld [vmem:[#allocation7 + $0x18] sm:$0xff]
      %v2302 = vld [vmem:[#allocation7 + $0x30] sm:$0xff]
      %v2303 = vld [vmem:[#allocation7 + $0x48] sm:$0xff]
      %v2304 = vld [vmem:[#allocation7 + $0x60] sm:$0xff]
      %v2305 = vld [vmem:[#allocation7 + $0x78] sm:$0xff]
      %v2306 = vld [vmem:[#allocation7 + $0x90] sm:$0xff]
      %v2307 = vld [vmem:[#allocation7 + $0xa8] sm:$0xff]
      %v2308 = vld [vmem:[#allocation7 + $0xc0] sm:$0xff]
      %v2309 = vld [vmem:[#allocation7 + $0xd8] sm:$0xff]
      %v2310 = vld [vmem:[#allocation7 + $0xf0] sm:$0xff]
      %v2311 = vld [vmem:[#allocation7 + $0x108] sm:$0xff]
      %v2312 = vld [vmem:[#allocation7 + $0x120] sm:$0xff]
      %v2313 = vld [vmem:[#allocation7 + $0x138] sm:$0xff]
      %v2314 = vld [vmem:[#allocation7 + $0x150] sm:$0xff]
      %v2315 = vld [vmem:[#allocation7 + $0x168] sm:$0xff]
      %v2316 = vpack.c.bf16 %v2301, %v2300
      %v2317 = vpack.c.bf16 %v2303, %v2302
      %v2318 = vpack.c.bf16 %v2305, %v2304
      %v2319 = vpack.c.bf16 %v2307, %v2306
      %v2320 = vpack.c.bf16 %v2309, %v2308
      %v2321 = vpack.c.bf16 %v2311, %v2310
      %v2322 = vpack.c.bf16 %v2313, %v2312
      %v2323 = vpack.c.bf16 %v2315, %v2314
      %v2332 = vunpack.c.l.b16 %v2196
      %v2333 = vunpack.c.l.b16 %v2197
      %v2334 = vunpack.c.l.b16 %v2198
      %v2335 = vunpack.c.l.b16 %v2199
      %v2336 = vunpack.c.l.b16 %v2200
      %v2337 = vunpack.c.l.b16 %v2201
      %v2338 = vunpack.c.l.b16 %v2202
      %v2339 = vunpack.c.l.b16 %v2203
      %v2340 = vpack.c.b16 %v2333, %v2332
      %v2341 = vpack.c.b16 %v2335, %v2334
      %v2342 = vpack.c.b16 %v2337, %v2336
      %v2343 = vpack.c.b16 %v2339, %v2338
      %2348 = vmatprep.subr.bf16.mxu0 0
      %2349 = vmatpush1.bf16.msra.mxu0 %v2323
      %2350 = vmatprep.subr.bf16.mxu0 0
      %2351 = vmatpush1.bf16.msra.mxu0 %v2322
      %2352 = vmatprep.subr.bf16.mxu0 0
      %2353 = vmatpush1.bf16.msra.mxu0 %v2321
      %2354 = vmatprep.subr.bf16.mxu0 0
      %2355 = vmatpush1.bf16.msra.mxu0 %v2320
      %2356 = vmatprep.subr.bf16.mxu0 0
      %2357 = vmatpush1.bf16.msra.mxu0 %v2319
      %2358 = vmatprep.subr.bf16.mxu0 0
      %2359 = vmatpush1.bf16.msra.mxu0 %v2318
      %2360 = vmatprep.subr.bf16.mxu0 0
      %2361 = vmatpush1.bf16.msra.mxu0 %v2317
      %2362 = vmatprep.subr.bf16.mxu0 0
      %2363 = vmatpush1.bf16.msra.mxu0 %v2316
      %2364 = vmatprep.subr.bf16.mxu0 0
      %2365 = vmatpush2.bf16.msra.mxu0 0
      %2366 = vmatprep.subr.bf16.mxu0 0
      %2367 = vmatpush2.bf16.msra.mxu0 0
      %2368 = vmatprep.subr.bf16.mxu0 0
      %2369 = vmatpush2.bf16.msra.mxu0 0
      %2370 = vmatprep.subr.bf16.mxu0 0
      %2371 = vmatpush2.bf16.msra.mxu0 0
      %2372 = vmatprep.subr.bf16.mxu0 0
      %2373 = vmatpush2.bf16.msra.mxu0 0
      %2374 = vmatprep.subr.bf16.mxu0 0
      %2375 = vmatpush2.bf16.msra.mxu0 0
      %2376 = vmatprep.subr.bf16.mxu0 0
      %2377 = vmatpush2.bf16.msra.mxu0 0
      %2378 = vmatprep.subr.bf16.mxu0 0
      %2379 = vmatpush2.bf16.msra.mxu0 0
      %2380 = vmatprep.mubr.bf16.mxu0 0
      %2381 = vmatmul.mubr.bf16.gmra.mxu0 %v2340
      %v2382 = vpop.f32.mrf.mxu0
      %v2383 = vadd.f32 0.0, %v2382
      %v2384 = vpop.f32.mrf.mxu0
      %v2385 = vpop.f32.mrf.mxu0
      %v2386 = vadd.f32 0.0, %v2385
      %v2387 = vpop.f32.mrf.mxu0
      %2388 = vmatprep.mubr.bf16.mxu0 0
      %2389 = vmatmul.mubr.bf16.gmra.mxu0 %v2341
      %v2390 = vpop.f32.mrf.mxu0
      %v2391 = vadd.f32 0.0, %v2390
      %v2392 = vpop.f32.mrf.mxu0
      %v2393 = vpop.f32.mrf.mxu0
      %v2394 = vadd.f32 0.0, %v2393
      %v2395 = vpop.f32.mrf.mxu0
      %2396 = vmatprep.mubr.bf16.mxu0 0
      %2397 = vmatmul.mubr.bf16.gmra.mxu0 %v2342
      %v2398 = vpop.f32.mrf.mxu0
      %v2399 = vadd.f32 0.0, %v2398
      %v2400 = vpop.f32.mrf.mxu0
      %v2401 = vpop.f32.mrf.mxu0
      %v2402 = vadd.f32 0.0, %v2401
      %v2403 = vpop.f32.mrf.mxu0
      %2404 = vmatprep.mubr.bf16.mxu0 0
      %2405 = vmatmul.mubr.bf16.gmra.mxu0 %v2343
      %v2406 = vpop.f32.mrf.mxu0
      %v2407 = vadd.f32 0.0, %v2406
      %v2408 = vpop.f32.mrf.mxu0
      %v2409 = vpop.f32.mrf.mxu0
      %v2410 = vadd.f32 0.0, %v2409
      %v2411 = vpop.f32.mrf.mxu0
      %2412 = vdwg.mxu0
      %v2413 = vld [vmem:[%s9] sm:$0xff]
      %v2414 = vld [vmem:[%s9 + $0x8] sm:$0xff]
      %v2415 = vld [vmem:[%s9 + $0x10] sm:$0xff]
      %v2416 = vld [vmem:[%s9 + $0x18] sm:$0xff]
      %v2417 = vld [vmem:[%s9 + $0x20] sm:$0xff]
      %v2418 = vld [vmem:[%s9 + $0x28] sm:$0xff]
      %v2419 = vld [vmem:[%s9 + $0x30] sm:$0xff]
      %v2420 = vld [vmem:[%s9 + $0x38] sm:$0xff]
      %2422 = vset.pattern.permute.xlu0 0
      %2423 = vperm.xlu0 %2422, %v2413
      %v2424 = vpop.permute.xlu0 %2423
      %2427 = vset.pattern.permute.xlu0 0
      %2428 = vperm.xlu0 %2427, %v2414
      %v2429 = vpop.permute.xlu0 %2428
      %2432 = vset.pattern.permute.xlu0 0
      %2433 = vperm.xlu0 %2432, %v2415
      %v2434 = vpop.permute.xlu0 %2433
      %2437 = vset.pattern.permute.xlu0 0
      %2438 = vperm.xlu0 %2437, %v2416
      %v2439 = vpop.permute.xlu0 %2438
      %2442 = vset.pattern.permute.xlu0 0
      %2443 = vperm.xlu0 %2442, %v2417
      %v2444 = vpop.permute.xlu0 %2443
      %2447 = vset.pattern.permute.xlu0 0
      %2448 = vperm.xlu0 %2447, %v2418
      %v2449 = vpop.permute.xlu0 %2448
      %2452 = vset.pattern.permute.xlu0 0
      %2453 = vperm.xlu0 %2452, %v2419
      %v2454 = vpop.permute.xlu0 %2453
      %2457 = vset.pattern.permute.xlu0 0
      %2458 = vperm.xlu0 %2457, %v2420
      %v2459 = vpop.permute.xlu0 %2458
      %v2461 = vmul.f32 %v2383, %v2424
      %v2462 = vmul.f32 %v2386, %v2429
      %v2463 = vmul.f32 %v2391, %v2434
      %v2464 = vmul.f32 %v2394, %v2439
      %v2465 = vmul.f32 %v2399, %v2444
      %v2466 = vmul.f32 %v2402, %v2449
      %v2467 = vmul.f32 %v2407, %v2454
      %v2468 = vmul.f32 %v2410, %v2459
      %v2469 = vld [vmem:[%s10] sm:$0xff]
      %v2470 = vld [vmem:[%s10 + $0x8] sm:$0xff]
      %v2471 = vld [vmem:[%s10 + $0x10] sm:$0xff]
      %v2472 = vld [vmem:[%s10 + $0x18] sm:$0xff]
      %v2473 = vld [vmem:[%s10 + $0x20] sm:$0xff]
      %v2474 = vld [vmem:[%s10 + $0x28] sm:$0xff]
      %v2475 = vld [vmem:[%s10 + $0x30] sm:$0xff]
      %v2476 = vld [vmem:[%s10 + $0x38] sm:$0xff]
      %2478 = vset.pattern.permute.xlu0 0
      %2479 = vperm.xlu0 %2478, %v2469
      %v2480 = vpop.permute.xlu0 %2479
      %2483 = vset.pattern.permute.xlu0 0
      %2484 = vperm.xlu0 %2483, %v2470
      %v2485 = vpop.permute.xlu0 %2484
      %2488 = vset.pattern.permute.xlu0 0
      %2489 = vperm.xlu0 %2488, %v2471
      %v2490 = vpop.permute.xlu0 %2489
      %2493 = vset.pattern.permute.xlu0 0
      %2494 = vperm.xlu0 %2493, %v2472
      %v2495 = vpop.permute.xlu0 %2494
      %2498 = vset.pattern.permute.xlu0 0
      %2499 = vperm.xlu0 %2498, %v2473
      %v2500 = vpop.permute.xlu0 %2499
      %2503 = vset.pattern.permute.xlu0 0
      %2504 = vperm.xlu0 %2503, %v2474
      %v2505 = vpop.permute.xlu0 %2504
      %2508 = vset.pattern.permute.xlu0 0
      %2509 = vperm.xlu0 %2508, %v2475
      %v2510 = vpop.permute.xlu0 %2509
      %2513 = vset.pattern.permute.xlu0 0
      %2514 = vperm.xlu0 %2513, %v2476
      %v2515 = vpop.permute.xlu0 %2514
      %v2517 = vadd.f32 %v2461, %v2480
      %v2518 = vadd.f32 %v2462, %v2485
      %v2519 = vadd.f32 %v2463, %v2490
      %v2520 = vadd.f32 %v2464, %v2495
      %v2521 = vadd.f32 %v2465, %v2500
      %v2522 = vadd.f32 %v2466, %v2505
      %v2523 = vadd.f32 %v2467, %v2510
      %v2524 = vadd.f32 %v2468, %v2515
      %v2525 = vmax.f32 %v2517, 0.0
      %v2526 = vmax.f32 %v2518, 0.0
      %v2527 = vmax.f32 %v2519, 0.0
      %v2528 = vmax.f32 %v2520, 0.0
      %v2529 = vmax.f32 %v2521, 0.0
      %v2530 = vmax.f32 %v2522, 0.0
      %v2531 = vmax.f32 %v2523, 0.0
      %v2532 = vmax.f32 %v2524, 0.0
      %v2533 = vld [vmem:[%s19] sm:$0xff]
      %v2534 = vld [vmem:[%s19 + $0x8] sm:$0xff]
      %v2535 = vld [vmem:[%s19 + $0x10] sm:$0xff]
      %s2536 = scalar_lea.vmem %s19, 24
      %v2537 = vld [vmem:[%s2536] sm:$0xff]
      %v2538 = vld [vmem:[%s2536 + $0x8] sm:$0xff]
      %v2539 = vld [vmem:[%s2536 + $0x10] sm:$0xff]
      %v2541 = vsel %vm1845, %v2527, 0
      %v2544 = vsel %vm1845, %v2528, 0
      %2546 = vmatprep.subr.mxu0 0.0
      %2547 = vmatpush1.msra.mxu0 0.0
      %2548 = vmatprep.subr.mxu0 0.0
      %2549 = vmatpush1.msra.mxu0 0.0
      %2550 = vmatprep.subr.mxu0 0.0
      %2551 = vmatpush1.msra.mxu0 0.0
      %2552 = vmatprep.subr.mxu0 0.0
      %2553 = vmatpush1.msra.mxu0 0.0
      %2554 = vmatprep.subr.mxu0 0.0
      %2555 = vmatpush1.msra.mxu0 0.0
      %2556 = vmatprep.subr.mxu0 0.0
      %2557 = vmatpush1.msra.mxu0 0.0
      %2558 = vmatprep.subr.mxu0 0.0
      %2559 = vmatpush1.msra.mxu0 0.0
      %2560 = vmatprep.subr.mxu0 0.0
      %2561 = vmatpush1.msra.mxu0 0.0
      %2562 = vmatprep.subr.mxu0 0.0
      %2563 = vmatpush1.msra.mxu0 0.0
      %2564 = vmatprep.subr.mxu0 0.0
      %2565 = vmatpush1.msra.mxu0 0.0
      %2566 = vmatprep.subr.mxu0 0.0
      %2567 = vmatpush1.msra.mxu0 0.0
      %2568 = vmatprep.subr.mxu0 0.0
      %2569 = vmatpush1.msra.mxu0 0.0
      %2570 = vmatprep.subr.mxu0 0.0
      %2571 = vmatpush1.msra.mxu0 0.0
      %2572 = vmatprep.subr.mxu0 0.0
      %2573 = vmatpush1.msra.mxu0 %v2539
      %2574 = vmatprep.subr.mxu0 0.0
      %2575 = vmatpush1.msra.mxu0 %v2538
      %2576 = vmatprep.subr.mxu0 0.0
      %2577 = vmatpush1.msra.mxu0 %v2537
      %2578 = vmatprep.subr.mxu0 0.0
      %2579 = vmatpush2.msra.mxu0 0.0
      %2580 = vmatprep.subr.mxu0 0.0
      %2581 = vmatpush2.msra.mxu0 0.0
      %2582 = vmatprep.subr.mxu0 0.0
      %2583 = vmatpush2.msra.mxu0 0.0
      %2584 = vmatprep.subr.mxu0 0.0
      %2585 = vmatpush2.msra.mxu0 0.0
      %2586 = vmatprep.subr.mxu0 0.0
      %2587 = vmatpush2.msra.mxu0 0.0
      %2588 = vmatprep.subr.mxu0 0.0
      %2589 = vmatpush2.msra.mxu0 0.0
      %2590 = vmatprep.subr.mxu0 0.0
      %2591 = vmatpush2.msra.mxu0 0.0
      %2592 = vmatprep.subr.mxu0 0.0
      %2593 = vmatpush2.msra.mxu0 0.0
      %2594 = vmatprep.subr.mxu0 0.0
      %2595 = vmatpush2.msra.mxu0 0.0
      %2596 = vmatprep.subr.mxu0 0.0
      %2597 = vmatpush2.msra.mxu0 0.0
      %2598 = vmatprep.subr.mxu0 0.0
      %2599 = vmatpush2.msra.mxu0 0.0
      %2600 = vmatprep.subr.mxu0 0.0
      %2601 = vmatpush2.msra.mxu0 0.0
      %2602 = vmatprep.subr.mxu0 0.0
      %2603 = vmatpush2.msra.mxu0 0.0
      %2604 = vmatprep.subr.mxu0 0.0
      %2605 = vmatpush2.msra.mxu0 0.0
      %2606 = vmatprep.subr.mxu0 0.0
      %2607 = vmatpush2.msra.mxu0 0.0
      %2608 = vmatprep.subr.mxu0 0.0
      %2609 = vmatpush2.msra.mxu0 0.0
      %2610 = vmatprep.mubr.f32.mxu0 0.0
      %2611 = vmatmul.mubr.f32.gmra.mxu0 %v2541
      %v2612 = vpop.f32.mrf.mxu0
      %v2613 = vadd.f32 0.0, %v2612
      %v2614 = vpop.f32.mrf.mxu0
      %2615 = vmatprep.mubr.f32.mxu0 0.0
      %2616 = vmatmul.mubr.f32.gmra.mxu0 %v2544
      %v2617 = vpop.f32.mrf.mxu0
      %v2618 = vadd.f32 0.0, %v2617
      %v2619 = vpop.f32.mrf.mxu0
      %2620 = vdwg.mxu0
      %v2622 = vsel %vm1845, %v2525, 0
      %v2625 = vsel %vm1845, %v2526, 0
      %2627 = vmatprep.subr.mxu0 0.0
      %2628 = vmatpush1.msra.mxu0 0.0
      %2629 = vmatprep.subr.mxu0 0.0
      %2630 = vmatpush1.msra.mxu0 0.0
      %2631 = vmatprep.subr.mxu0 0.0
      %2632 = vmatpush1.msra.mxu0 0.0
      %2633 = vmatprep.subr.mxu0 0.0
      %2634 = vmatpush1.msra.mxu0 0.0
      %2635 = vmatprep.subr.mxu0 0.0
      %2636 = vmatpush1.msra.mxu0 0.0
      %2637 = vmatprep.subr.mxu0 0.0
      %2638 = vmatpush1.msra.mxu0 0.0
      %2639 = vmatprep.subr.mxu0 0.0
      %2640 = vmatpush1.msra.mxu0 0.0
      %2641 = vmatprep.subr.mxu0 0.0
      %2642 = vmatpush1.msra.mxu0 0.0
      %2643 = vmatprep.subr.mxu0 0.0
      %2644 = vmatpush1.msra.mxu0 0.0
      %2645 = vmatprep.subr.mxu0 0.0
      %2646 = vmatpush1.msra.mxu0 0.0
      %2647 = vmatprep.subr.mxu0 0.0
      %2648 = vmatpush1.msra.mxu0 0.0
      %2649 = vmatprep.subr.mxu0 0.0
      %2650 = vmatpush1.msra.mxu0 0.0
      %2651 = vmatprep.subr.mxu0 0.0
      %2652 = vmatpush1.msra.mxu0 0.0
      %2653 = vmatprep.subr.mxu0 0.0
      %2654 = vmatpush1.msra.mxu0 %v2535
      %2655 = vmatprep.subr.mxu0 0.0
      %2656 = vmatpush1.msra.mxu0 %v2534
      %2657 = vmatprep.subr.mxu0 0.0
      %2658 = vmatpush1.msra.mxu0 %v2533
      %2659 = vmatprep.subr.mxu0 0.0
      %2660 = vmatpush2.msra.mxu0 0.0
      %2661 = vmatprep.subr.mxu0 0.0
      %2662 = vmatpush2.msra.mxu0 0.0
      %2663 = vmatprep.subr.mxu0 0.0
      %2664 = vmatpush2.msra.mxu0 0.0
      %2665 = vmatprep.subr.mxu0 0.0
      %2666 = vmatpush2.msra.mxu0 0.0
      %2667 = vmatprep.subr.mxu0 0.0
      %2668 = vmatpush2.msra.mxu0 0.0
      %2669 = vmatprep.subr.mxu0 0.0
      %2670 = vmatpush2.msra.mxu0 0.0
      %2671 = vmatprep.subr.mxu0 0.0
      %2672 = vmatpush2.msra.mxu0 0.0
      %2673 = vmatprep.subr.mxu0 0.0
      %2674 = vmatpush2.msra.mxu0 0.0
      %2675 = vmatprep.subr.mxu0 0.0
      %2676 = vmatpush2.msra.mxu0 0.0
      %2677 = vmatprep.subr.mxu0 0.0
      %2678 = vmatpush2.msra.mxu0 0.0
      %2679 = vmatprep.subr.mxu0 0.0
      %2680 = vmatpush2.msra.mxu0 0.0
      %2681 = vmatprep.subr.mxu0 0.0
      %2682 = vmatpush2.msra.mxu0 0.0
      %2683 = vmatprep.subr.mxu0 0.0
      %2684 = vmatpush2.msra.mxu0 0.0
      %2685 = vmatprep.subr.mxu0 0.0
      %2686 = vmatpush2.msra.mxu0 0.0
      %2687 = vmatprep.subr.mxu0 0.0
      %2688 = vmatpush2.msra.mxu0 0.0
      %2689 = vmatprep.subr.mxu0 0.0
      %2690 = vmatpush2.msra.mxu0 0.0
      %2691 = vmatprep.mubr.f32.mxu0 0.0
      %2692 = vmatmul.mubr.f32.gmra.mxu0 %v2622
      %v2693 = vpop.f32.mrf.mxu0
      %v2694 = vadd.f32 %v2613, %v2693
      %v2695 = vpop.f32.mrf.mxu0
      %2696 = vmatprep.mubr.f32.mxu0 0.0
      %2697 = vmatmul.mubr.f32.gmra.mxu0 %v2625
      %v2698 = vpop.f32.mrf.mxu0
      %v2699 = vadd.f32 %v2618, %v2698
      %v2700 = vpop.f32.mrf.mxu0
      %2701 = vdwg.mxu0
      %s2702 = scalar_lea.vmem %s19, 48
      %v2703 = vld [vmem:[%s2702] sm:$0xff]
      %v2704 = vld [vmem:[%s2702 + $0x8] sm:$0xff]
      %v2705 = vld [vmem:[%s2702 + $0x10] sm:$0xff]
      %v2707 = vsel %vm1845, %v2529, 0
      %v2710 = vsel %vm1845, %v2530, 0
      %2712 = vmatprep.subr.mxu0 0.0
      %2713 = vmatpush1.msra.mxu0 0.0
      %2714 = vmatprep.subr.mxu0 0.0
      %2715 = vmatpush1.msra.mxu0 0.0
      %2716 = vmatprep.subr.mxu0 0.0
      %2717 = vmatpush1.msra.mxu0 0.0
      %2718 = vmatprep.subr.mxu0 0.0
      %2719 = vmatpush1.msra.mxu0 0.0
      %2720 = vmatprep.subr.mxu0 0.0
      %2721 = vmatpush1.msra.mxu0 0.0
      %2722 = vmatprep.subr.mxu0 0.0
      %2723 = vmatpush1.msra.mxu0 0.0
      %2724 = vmatprep.subr.mxu0 0.0
      %2725 = vmatpush1.msra.mxu0 0.0
      %2726 = vmatprep.subr.mxu0 0.0
      %2727 = vmatpush1.msra.mxu0 0.0
      %2728 = vmatprep.subr.mxu0 0.0
      %2729 = vmatpush1.msra.mxu0 0.0
      %2730 = vmatprep.subr.mxu0 0.0
      %2731 = vmatpush1.msra.mxu0 0.0
      %2732 = vmatprep.subr.mxu0 0.0
      %2733 = vmatpush1.msra.mxu0 0.0
      %2734 = vmatprep.subr.mxu0 0.0
      %2735 = vmatpush1.msra.mxu0 0.0
      %2736 = vmatprep.subr.mxu0 0.0
      %2737 = vmatpush1.msra.mxu0 0.0
      %2738 = vmatprep.subr.mxu0 0.0
      %2739 = vmatpush1.msra.mxu0 %v2705
      %2740 = vmatprep.subr.mxu0 0.0
      %2741 = vmatpush1.msra.mxu0 %v2704
      %2742 = vmatprep.subr.mxu0 0.0
      %2743 = vmatpush1.msra.mxu0 %v2703
      %2744 = vmatprep.subr.mxu0 0.0
      %2745 = vmatpush2.msra.mxu0 0.0
      %2746 = vmatprep.subr.mxu0 0.0
      %2747 = vmatpush2.msra.mxu0 0.0
      %2748 = vmatprep.subr.mxu0 0.0
      %2749 = vmatpush2.msra.mxu0 0.0
      %2750 = vmatprep.subr.mxu0 0.0
      %2751 = vmatpush2.msra.mxu0 0.0
      %2752 = vmatprep.subr.mxu0 0.0
      %2753 = vmatpush2.msra.mxu0 0.0
      %2754 = vmatprep.subr.mxu0 0.0
      %2755 = vmatpush2.msra.mxu0 0.0
      %2756 = vmatprep.subr.mxu0 0.0
      %2757 = vmatpush2.msra.mxu0 0.0
      %2758 = vmatprep.subr.mxu0 0.0
      %2759 = vmatpush2.msra.mxu0 0.0
      %2760 = vmatprep.subr.mxu0 0.0
      %2761 = vmatpush2.msra.mxu0 0.0
      %2762 = vmatprep.subr.mxu0 0.0
      %2763 = vmatpush2.msra.mxu0 0.0
      %2764 = vmatprep.subr.mxu0 0.0
      %2765 = vmatpush2.msra.mxu0 0.0
      %2766 = vmatprep.subr.mxu0 0.0
      %2767 = vmatpush2.msra.mxu0 0.0
      %2768 = vmatprep.subr.mxu0 0.0
      %2769 = vmatpush2.msra.mxu0 0.0
      %2770 = vmatprep.subr.mxu0 0.0
      %2771 = vmatpush2.msra.mxu0 0.0
      %2772 = vmatprep.subr.mxu0 0.0
      %2773 = vmatpush2.msra.mxu0 0.0
      %2774 = vmatprep.subr.mxu0 0.0
      %2775 = vmatpush2.msra.mxu0 0.0
      %2776 = vmatprep.mubr.f32.mxu0 0.0
      %2777 = vmatmul.mubr.f32.gmra.mxu0 %v2707
      %v2778 = vpop.f32.mrf.mxu0
      %v2779 = vadd.f32 0.0, %v2778
      %v2780 = vpop.f32.mrf.mxu0
      %2781 = vmatprep.mubr.f32.mxu0 0.0
      %2782 = vmatmul.mubr.f32.gmra.mxu0 %v2710
      %v2783 = vpop.f32.mrf.mxu0
      %v2784 = vadd.f32 0.0, %v2783
      %v2785 = vpop.f32.mrf.mxu0
      %2786 = vdwg.mxu0
      %v2787 = vadd.f32 %v2694, %v2779
      %v2788 = vadd.f32 %v2699, %v2784
      %s2789 = scalar_lea.vmem %s19, 72
      %v2790 = vld [vmem:[%s2789] sm:$0xff]
      %v2791 = vld [vmem:[%s2789 + $0x8] sm:$0xff]
      %v2792 = vld [vmem:[%s2789 + $0x10] sm:$0xff]
      %v2794 = vsel %vm1845, %v2531, 0
      %v2797 = vsel %vm1845, %v2532, 0
      %2799 = vmatprep.subr.mxu0 0.0
      %2800 = vmatpush1.msra.mxu0 0.0
      %2801 = vmatprep.subr.mxu0 0.0
      %2802 = vmatpush1.msra.mxu0 0.0
      %2803 = vmatprep.subr.mxu0 0.0
      %2804 = vmatpush1.msra.mxu0 0.0
      %2805 = vmatprep.subr.mxu0 0.0
      %2806 = vmatpush1.msra.mxu0 0.0
      %2807 = vmatprep.subr.mxu0 0.0
      %2808 = vmatpush1.msra.mxu0 0.0
      %2809 = vmatprep.subr.mxu0 0.0
      %2810 = vmatpush1.msra.mxu0 0.0
      %2811 = vmatprep.subr.mxu0 0.0
      %2812 = vmatpush1.msra.mxu0 0.0
      %2813 = vmatprep.subr.mxu0 0.0
      %2814 = vmatpush1.msra.mxu0 0.0
      %2815 = vmatprep.subr.mxu0 0.0
      %2816 = vmatpush1.msra.mxu0 0.0
      %2817 = vmatprep.subr.mxu0 0.0
      %2818 = vmatpush1.msra.mxu0 0.0
      %2819 = vmatprep.subr.mxu0 0.0
      %2820 = vmatpush1.msra.mxu0 0.0
      %2821 = vmatprep.subr.mxu0 0.0
      %2822 = vmatpush1.msra.mxu0 0.0
      %2823 = vmatprep.subr.mxu0 0.0
      %2824 = vmatpush1.msra.mxu0 0.0
      %2825 = vmatprep.subr.mxu0 0.0
      %2826 = vmatpush1.msra.mxu0 %v2792
      %2827 = vmatprep.subr.mxu0 0.0
      %2828 = vmatpush1.msra.mxu0 %v2791
      %2829 = vmatprep.subr.mxu0 0.0
      %2830 = vmatpush1.msra.mxu0 %v2790
      %2831 = vmatprep.subr.mxu0 0.0
      %2832 = vmatpush2.msra.mxu0 0.0
      %2833 = vmatprep.subr.mxu0 0.0
      %2834 = vmatpush2.msra.mxu0 0.0
      %2835 = vmatprep.subr.mxu0 0.0
      %2836 = vmatpush2.msra.mxu0 0.0
      %2837 = vmatprep.subr.mxu0 0.0
      %2838 = vmatpush2.msra.mxu0 0.0
      %2839 = vmatprep.subr.mxu0 0.0
      %2840 = vmatpush2.msra.mxu0 0.0
      %2841 = vmatprep.subr.mxu0 0.0
      %2842 = vmatpush2.msra.mxu0 0.0
      %2843 = vmatprep.subr.mxu0 0.0
      %2844 = vmatpush2.msra.mxu0 0.0
      %2845 = vmatprep.subr.mxu0 0.0
      %2846 = vmatpush2.msra.mxu0 0.0
      %2847 = vmatprep.subr.mxu0 0.0
      %2848 = vmatpush2.msra.mxu0 0.0
      %2849 = vmatprep.subr.mxu0 0.0
      %2850 = vmatpush2.msra.mxu0 0.0
      %2851 = vmatprep.subr.mxu0 0.0
      %2852 = vmatpush2.msra.mxu0 0.0
      %2853 = vmatprep.subr.mxu0 0.0
      %2854 = vmatpush2.msra.mxu0 0.0
      %2855 = vmatprep.subr.mxu0 0.0
      %2856 = vmatpush2.msra.mxu0 0.0
      %2857 = vmatprep.subr.mxu0 0.0
      %2858 = vmatpush2.msra.mxu0 0.0
      %2859 = vmatprep.subr.mxu0 0.0
      %2860 = vmatpush2.msra.mxu0 0.0
      %2861 = vmatprep.subr.mxu0 0.0
      %2862 = vmatpush2.msra.mxu0 0.0
      %2863 = vmatprep.mubr.f32.mxu0 0.0
      %2864 = vmatmul.mubr.f32.gmra.mxu0 %v2794
      %v2865 = vpop.f32.mrf.mxu0
      %v2866 = vadd.f32 0.0, %v2865
      %v2867 = vpop.f32.mrf.mxu0
      %2868 = vmatprep.mubr.f32.mxu0 0.0
      %2869 = vmatmul.mubr.f32.gmra.mxu0 %v2797
      %v2870 = vpop.f32.mrf.mxu0
      %v2871 = vadd.f32 0.0, %v2870
      %v2872 = vpop.f32.mrf.mxu0
      %2873 = vdwg.mxu0
      %v2874 = vadd.f32 %v2787, %v2866
      %v2875 = vadd.f32 %v2788, %v2871
      %2876 = vst.msk [vmem:[#allocation6] sm:$0xff] %vm1279, %v2874
      %2877 = vst.msk [vmem:[#allocation6 + $0x8] sm:$0xff] %vm1279, %v2875
      %v2878 = vld [vmem:[%s8] sm:$0xf]
      %v2879 = vld [vmem:[%s8 + $0x4] sm:$0xf]
      %v2880 = vld [vmem:[%s8 + $0x8] sm:$0xf]
      %v2881 = vld [vmem:[%s8 + $0xc] sm:$0xf]
      %v2882 = vld [vmem:[#allocation6] sm:$0xff]
      %v2883 = vld [vmem:[#allocation6 + $0x8] sm:$0xff]
      %2886 = vrot.lane.b32.xlu0 %v2882, 117
      %v2887 = vpop.permute.xlu0 %2886
      %2888 = vrot.lane.b32.xlu0 %v2883, 117
      %v2889 = vpop.permute.xlu0 %2888
      %2892 = vst.msk [vmem:[#allocation7] sm:$0xff] %vm1283, %v2887
      %2893 = vst.msk [vmem:[#allocation7 + $0x18] sm:$0xff] %vm1283, %v2889
      %v2894 = vld [vmem:[#allocation6] sm:$0xff]
      %v2895 = vld [vmem:[#allocation6 + $0x8] sm:$0xff]
      %2898 = vrot.lane.b32.xlu0 %v2894, 116
      %v2899 = vpop.permute.xlu0 %2898
      %2900 = vrot.lane.b32.xlu0 %v2895, 116
      %v2901 = vpop.permute.xlu0 %2900
      %2904 = vst.msk [vmem:[#allocation7 + $0x30] sm:$0xff] %vm1283, %v2899
      %2905 = vst.msk [vmem:[#allocation7 + $0x48] sm:$0xff] %vm1283, %v2901
      %v2906 = vld [vmem:[#allocation6] sm:$0xff]
      %v2907 = vld [vmem:[#allocation6 + $0x8] sm:$0xff]
      %2910 = vrot.lane.b32.xlu0 %v2906, 107
      %v2911 = vpop.permute.xlu0 %2910
      %2912 = vrot.lane.b32.xlu0 %v2907, 107
      %v2913 = vpop.permute.xlu0 %2912
      %2916 = vst.msk [vmem:[#allocation7 + $0x60] sm:$0xff] %vm1283, %v2911
      %2917 = vst.msk [vmem:[#allocation7 + $0x78] sm:$0xff] %vm1283, %v2913
      %v2918 = vld [vmem:[#allocation6] sm:$0xff]
      %v2919 = vld [vmem:[#allocation6 + $0x8] sm:$0xff]
      %2922 = vrot.lane.b32.xlu0 %v2918, 106
      %v2923 = vpop.permute.xlu0 %2922
      %2924 = vrot.lane.b32.xlu0 %v2919, 106
      %v2925 = vpop.permute.xlu0 %2924
      %2928 = vst.msk [vmem:[#allocation7 + $0x90] sm:$0xff] %vm1283, %v2923
      %2929 = vst.msk [vmem:[#allocation7 + $0xa8] sm:$0xff] %vm1283, %v2925
      %v2930 = vld [vmem:[#allocation7] sm:$0xff]
      %v2931 = vld [vmem:[#allocation7 + $0x18] sm:$0xff]
      %v2932 = vld [vmem:[#allocation7 + $0x30] sm:$0xff]
      %v2933 = vld [vmem:[#allocation7 + $0x48] sm:$0xff]
      %v2934 = vld [vmem:[#allocation7 + $0x60] sm:$0xff]
      %v2935 = vld [vmem:[#allocation7 + $0x78] sm:$0xff]
      %v2936 = vld [vmem:[#allocation7 + $0x90] sm:$0xff]
      %v2937 = vld [vmem:[#allocation7 + $0xa8] sm:$0xff]
      %v2938 = vpack.c.bf16 %v2931, %v2930
      %v2939 = vpack.c.bf16 %v2933, %v2932
      %v2940 = vpack.c.bf16 %v2935, %v2934
      %v2941 = vpack.c.bf16 %v2937, %v2936
      %v2946 = vunpack.c.l.b16 %v2878
      %v2947 = vunpack.c.l.b16 %v2879
      %v2948 = vunpack.c.l.b16 %v2880
      %v2949 = vunpack.c.l.b16 %v2881
      %v2950 = vpack.c.b16 %v2947, %v2946
      %v2951 = vpack.c.b16 %v2949, %v2948
      %v2953 = vsel %vm1477, %v2950, 0
      %v2956 = vsel %vm1477, %v2951, 0
      %2958 = vmatprep.subr.bf16.mxu0 0
      %2959 = vmatpush1.bf16.msra.mxu0 0
      %2960 = vmatprep.subr.bf16.mxu0 0
      %2961 = vmatpush1.bf16.msra.mxu0 0
      %2962 = vmatprep.subr.bf16.mxu0 0
      %2963 = vmatpush1.bf16.msra.mxu0 0
      %2964 = vmatprep.subr.bf16.mxu0 0
      %2965 = vmatpush1.bf16.msra.mxu0 0
      %2966 = vmatprep.subr.bf16.mxu0 0
      %2967 = vmatpush1.bf16.msra.mxu0 %v2941
      %2968 = vmatprep.subr.bf16.mxu0 0
      %2969 = vmatpush1.bf16.msra.mxu0 %v2940
      %2970 = vmatprep.subr.bf16.mxu0 0
      %2971 = vmatpush1.bf16.msra.mxu0 %v2939
      %2972 = vmatprep.subr.bf16.mxu0 0
      %2973 = vmatpush1.bf16.msra.mxu0 %v2938
      %2974 = vmatprep.subr.bf16.mxu0 0
      %2975 = vmatpush2.bf16.msra.mxu0 0
      %2976 = vmatprep.subr.bf16.mxu0 0
      %2977 = vmatpush2.bf16.msra.mxu0 0
      %2978 = vmatprep.subr.bf16.mxu0 0
      %2979 = vmatpush2.bf16.msra.mxu0 0
      %2980 = vmatprep.subr.bf16.mxu0 0
      %2981 = vmatpush2.bf16.msra.mxu0 0
      %2982 = vmatprep.subr.bf16.mxu0 0
      %2983 = vmatpush2.bf16.msra.mxu0 0
      %2984 = vmatprep.subr.bf16.mxu0 0
      %2985 = vmatpush2.bf16.msra.mxu0 0
      %2986 = vmatprep.subr.bf16.mxu0 0
      %2987 = vmatpush2.bf16.msra.mxu0 0
      %2988 = vmatprep.subr.bf16.mxu0 0
      %2989 = vmatpush2.bf16.msra.mxu0 0
      %2990 = vmatprep.mubr.bf16.mxu0 0
      %2991 = vmatmul.mubr.bf16.gmra.mxu0 %v2953
      %v2992 = vpop.f32.mrf.mxu0
      %v2993 = vadd.f32 0.0, %v2992
      %v2994 = vpop.f32.mrf.mxu0
      %v2995 = vpop.f32.mrf.mxu0
      %v2996 = vadd.f32 0.0, %v2995
      %v2997 = vpop.f32.mrf.mxu0
      %2998 = vmatprep.mubr.bf16.mxu0 0
      %2999 = vmatmul.mubr.bf16.gmra.mxu0 %v2956
      %v3000 = vpop.f32.mrf.mxu0
      %v3001 = vadd.f32 0.0, %v3000
      %v3002 = vpop.f32.mrf.mxu0
      %v3003 = vpop.f32.mrf.mxu0
      %v3004 = vadd.f32 0.0, %v3003
      %v3005 = vpop.f32.mrf.mxu0
      %3006 = vdwg.mxu0
      %v3007 = vld [vmem:[%s11] sm:$0xff]
      %v3008 = vld [vmem:[%s11 + $0x8] sm:$0xff]
      %v3009 = vld [vmem:[%s11 + $0x10] sm:$0xff]
      %v3010 = vld [vmem:[%s11 + $0x18] sm:$0xff]
      %3012 = vset.pattern.permute.xlu0 0
      %3013 = vperm.xlu0 %3012, %v3007
      %v3014 = vpop.permute.xlu0 %3013
      %3017 = vset.pattern.permute.xlu0 0
      %3018 = vperm.xlu0 %3017, %v3008
      %v3019 = vpop.permute.xlu0 %3018
      %3022 = vset.pattern.permute.xlu0 0
      %3023 = vperm.xlu0 %3022, %v3009
      %v3024 = vpop.permute.xlu0 %3023
      %3027 = vset.pattern.permute.xlu0 0
      %3028 = vperm.xlu0 %3027, %v3010
      %v3029 = vpop.permute.xlu0 %3028
      %v3031 = vmul.f32 %v2993, %v3014
      %v3032 = vmul.f32 %v2996, %v3019
      %v3033 = vmul.f32 %v3001, %v3024
      %v3034 = vmul.f32 %v3004, %v3029
      %v3035 = vld [vmem:[%s12] sm:$0xff]
      %v3036 = vld [vmem:[%s12 + $0x8] sm:$0xff]
      %v3037 = vld [vmem:[%s12 + $0x10] sm:$0xff]
      %v3038 = vld [vmem:[%s12 + $0x18] sm:$0xff]
      %3040 = vset.pattern.permute.xlu0 0
      %3041 = vperm.xlu0 %3040, %v3035
      %v3042 = vpop.permute.xlu0 %3041
      %3045 = vset.pattern.permute.xlu0 0
      %3046 = vperm.xlu0 %3045, %v3036
      %v3047 = vpop.permute.xlu0 %3046
      %3050 = vset.pattern.permute.xlu0 0
      %3051 = vperm.xlu0 %3050, %v3037
      %v3052 = vpop.permute.xlu0 %3051
      %3055 = vset.pattern.permute.xlu0 0
      %3056 = vperm.xlu0 %3055, %v3038
      %v3057 = vpop.permute.xlu0 %3056
      %v3059 = vadd.f32 %v3031, %v3042
      %v3060 = vadd.f32 %v3032, %v3047
      %v3061 = vadd.f32 %v3033, %v3052
      %v3062 = vadd.f32 %v3034, %v3057
      %v3063 = vld [vmem:[%s20] sm:$0xff]
      %v3064 = vld [vmem:[%s20 + $0x8] sm:$0xff]
      %v3065 = vld [vmem:[%s20 + $0x10] sm:$0xff]
      %v3066 = vld [vmem:[%s20 + $0x18] sm:$0xff]
      %v3067 = vld [vmem:[%s20 + $0x20] sm:$0xff]
      %v3068 = vld [vmem:[%s20 + $0x28] sm:$0xff]
      %v3069 = vld [vmem:[%s20 + $0x30] sm:$0xff]
      %v3070 = vld [vmem:[%s20 + $0x38] sm:$0xff]
      %v3071 = vld [vmem:[%s20 + $0x40] sm:$0xff]
      %v3072 = vld [vmem:[%s20 + $0x48] sm:$0xff]
      %v3073 = vld [vmem:[%s20 + $0x50] sm:$0xff]
      %v3074 = vld [vmem:[%s20 + $0x58] sm:$0xff]
      %v3075 = vld [vmem:[%s20 + $0x60] sm:$0xff]
      %v3076 = vld [vmem:[%s20 + $0x68] sm:$0xff]
      %v3077 = vld [vmem:[%s20 + $0x70] sm:$0xff]
      %v3078 = vld [vmem:[%s20 + $0x78] sm:$0xff]
      %v3079 = vld [vmem:[%s20 + $0x80] sm:$0xff]
      %v3080 = vld [vmem:[%s20 + $0x88] sm:$0xff]
      %v3081 = vld [vmem:[%s20 + $0x90] sm:$0xff]
      %v3082 = vld [vmem:[%s20 + $0x98] sm:$0xff]
      %s3083 = scalar_lea.vmem %s20, 160
      %v3084 = vld [vmem:[%s3083] sm:$0xff]
      %v3085 = vld [vmem:[%s3083 + $0x8] sm:$0xff]
      %v3086 = vld [vmem:[%s3083 + $0x10] sm:$0xff]
      %v3087 = vld [vmem:[%s3083 + $0x18] sm:$0xff]
      %v3088 = vld [vmem:[%s3083 + $0x20] sm:$0xff]
      %v3089 = vld [vmem:[%s3083 + $0x28] sm:$0xff]
      %v3090 = vld [vmem:[%s3083 + $0x30] sm:$0xff]
      %v3091 = vld [vmem:[%s3083 + $0x38] sm:$0xff]
      %v3092 = vld [vmem:[%s3083 + $0x40] sm:$0xff]
      %v3093 = vld [vmem:[%s3083 + $0x48] sm:$0xff]
      %v3094 = vld [vmem:[%s3083 + $0x50] sm:$0xff]
      %v3095 = vld [vmem:[%s3083 + $0x58] sm:$0xff]
      %v3096 = vld [vmem:[%s3083 + $0x60] sm:$0xff]
      %v3097 = vld [vmem:[%s3083 + $0x68] sm:$0xff]
      %v3098 = vld [vmem:[%s3083 + $0x70] sm:$0xff]
      %v3099 = vld [vmem:[%s3083 + $0x78] sm:$0xff]
      %v3100 = vld [vmem:[%s3083 + $0x80] sm:$0xff]
      %v3101 = vld [vmem:[%s3083 + $0x88] sm:$0xff]
      %v3102 = vld [vmem:[%s3083 + $0x90] sm:$0xff]
      %v3103 = vld [vmem:[%s3083 + $0x98] sm:$0xff]
      %v3105 = vsel %vm1283, %v3060, 0
      %3107 = vmatprep.subr.mxu0 0.0
      %3108 = vmatpush1.msra.mxu0 0.0
      %3109 = vmatprep.subr.mxu0 0.0
      %3110 = vmatpush1.msra.mxu0 0.0
      %3111 = vmatprep.subr.mxu0 0.0
      %3112 = vmatpush1.msra.mxu0 0.0
      %3113 = vmatprep.subr.mxu0 0.0
      %3114 = vmatpush1.msra.mxu0 0.0
      %3115 = vmatprep.subr.mxu0 0.0
      %3116 = vmatpush1.msra.mxu0 0.0
      %3117 = vmatprep.subr.mxu0 0.0
      %3118 = vmatpush1.msra.mxu0 0.0
      %3119 = vmatprep.subr.mxu0 %v3103
      %3120 = vmatpush1.msra.mxu0 %v3102
      %3121 = vmatprep.subr.mxu0 %v3101
      %3122 = vmatpush1.msra.mxu0 %v3100
      %3123 = vmatprep.subr.mxu0 %v3099
      %3124 = vmatpush1.msra.mxu0 %v3098
      %3125 = vmatprep.subr.mxu0 %v3097
      %3126 = vmatpush1.msra.mxu0 %v3096
      %3127 = vmatprep.subr.mxu0 %v3095
      %3128 = vmatpush1.msra.mxu0 %v3094
      %3129 = vmatprep.subr.mxu0 %v3093
      %3130 = vmatpush1.msra.mxu0 %v3092
      %3131 = vmatprep.subr.mxu0 %v3091
      %3132 = vmatpush1.msra.mxu0 %v3090
      %3133 = vmatprep.subr.mxu0 %v3089
      %3134 = vmatpush1.msra.mxu0 %v3088
      %3135 = vmatprep.subr.mxu0 %v3087
      %3136 = vmatpush1.msra.mxu0 %v3086
      %3137 = vmatprep.subr.mxu0 %v3085
      %3138 = vmatpush1.msra.mxu0 %v3084
      %3139 = vmatprep.subr.mxu0 0.0
      %3140 = vmatpush2.msra.mxu0 0.0
      %3141 = vmatprep.subr.mxu0 0.0
      %3142 = vmatpush2.msra.mxu0 0.0
      %3143 = vmatprep.subr.mxu0 0.0
      %3144 = vmatpush2.msra.mxu0 0.0
      %3145 = vmatprep.subr.mxu0 0.0
      %3146 = vmatpush2.msra.mxu0 0.0
      %3147 = vmatprep.subr.mxu0 0.0
      %3148 = vmatpush2.msra.mxu0 0.0
      %3149 = vmatprep.subr.mxu0 0.0
      %3150 = vmatpush2.msra.mxu0 0.0
      %3151 = vmatprep.subr.mxu0 0.0
      %3152 = vmatpush2.msra.mxu0 0.0
      %3153 = vmatprep.subr.mxu0 0.0
      %3154 = vmatpush2.msra.mxu0 0.0
      %3155 = vmatprep.subr.mxu0 0.0
      %3156 = vmatpush2.msra.mxu0 0.0
      %3157 = vmatprep.subr.mxu0 0.0
      %3158 = vmatpush2.msra.mxu0 0.0
      %3159 = vmatprep.subr.mxu0 0.0
      %3160 = vmatpush2.msra.mxu0 0.0
      %3161 = vmatprep.subr.mxu0 0.0
      %3162 = vmatpush2.msra.mxu0 0.0
      %3163 = vmatprep.subr.mxu0 0.0
      %3164 = vmatpush2.msra.mxu0 0.0
      %3165 = vmatprep.subr.mxu0 0.0
      %3166 = vmatpush2.msra.mxu0 0.0
      %3167 = vmatprep.subr.mxu0 0.0
      %3168 = vmatpush2.msra.mxu0 0.0
      %3169 = vmatprep.subr.mxu0 0.0
      %3170 = vmatpush2.msra.mxu0 0.0
      %3171 = vmatprep.mubr.f32.mxu0 0.0
      %3172 = vmatmul.mubr.f32.gmra.mxu0 %v3105
      %v3173 = vpop.f32.mrf.mxu0
      %v3174 = vadd.f32 0.0, %v3173
      %v3175 = vpop.f32.mrf.mxu0
      %v3176 = vadd.f32 0.0, %v3175
      %3177 = vdwg.mxu0
      %v3179 = vsel %vm1283, %v3059, 0
      %3181 = vmatprep.subr.mxu0 0.0
      %3182 = vmatpush1.msra.mxu0 0.0
      %3183 = vmatprep.subr.mxu0 0.0
      %3184 = vmatpush1.msra.mxu0 0.0
      %3185 = vmatprep.subr.mxu0 0.0
      %3186 = vmatpush1.msra.mxu0 0.0
      %3187 = vmatprep.subr.mxu0 0.0
      %3188 = vmatpush1.msra.mxu0 0.0
      %3189 = vmatprep.subr.mxu0 0.0
      %3190 = vmatpush1.msra.mxu0 0.0
      %3191 = vmatprep.subr.mxu0 0.0
      %3192 = vmatpush1.msra.mxu0 0.0
      %3193 = vmatprep.subr.mxu0 %v3082
      %3194 = vmatpush1.msra.mxu0 %v3081
      %3195 = vmatprep.subr.mxu0 %v3080
      %3196 = vmatpush1.msra.mxu0 %v3079
      %3197 = vmatprep.subr.mxu0 %v3078
      %3198 = vmatpush1.msra.mxu0 %v3077
      %3199 = vmatprep.subr.mxu0 %v3076
      %3200 = vmatpush1.msra.mxu0 %v3075
      %3201 = vmatprep.subr.mxu0 %v3074
      %3202 = vmatpush1.msra.mxu0 %v3073
      %3203 = vmatprep.subr.mxu0 %v3072
      %3204 = vmatpush1.msra.mxu0 %v3071
      %3205 = vmatprep.subr.mxu0 %v3070
      %3206 = vmatpush1.msra.mxu0 %v3069
      %3207 = vmatprep.subr.mxu0 %v3068
      %3208 = vmatpush1.msra.mxu0 %v3067
      %3209 = vmatprep.subr.mxu0 %v3066
      %3210 = vmatpush1.msra.mxu0 %v3065
      %3211 = vmatprep.subr.mxu0 %v3064
      %3212 = vmatpush1.msra.mxu0 %v3063
      %3213 = vmatprep.subr.mxu0 0.0
      %3214 = vmatpush2.msra.mxu0 0.0
      %3215 = vmatprep.subr.mxu0 0.0
      %3216 = vmatpush2.msra.mxu0 0.0
      %3217 = vmatprep.subr.mxu0 0.0
      %3218 = vmatpush2.msra.mxu0 0.0
      %3219 = vmatprep.subr.mxu0 0.0
      %3220 = vmatpush2.msra.mxu0 0.0
      %3221 = vmatprep.subr.mxu0 0.0
      %3222 = vmatpush2.msra.mxu0 0.0
      %3223 = vmatprep.subr.mxu0 0.0
      %3224 = vmatpush2.msra.mxu0 0.0
      %3225 = vmatprep.subr.mxu0 0.0
      %3226 = vmatpush2.msra.mxu0 0.0
      %3227 = vmatprep.subr.mxu0 0.0
      %3228 = vmatpush2.msra.mxu0 0.0
      %3229 = vmatprep.subr.mxu0 0.0
      %3230 = vmatpush2.msra.mxu0 0.0
      %3231 = vmatprep.subr.mxu0 0.0
      %3232 = vmatpush2.msra.mxu0 0.0
      %3233 = vmatprep.subr.mxu0 0.0
      %3234 = vmatpush2.msra.mxu0 0.0
      %3235 = vmatprep.subr.mxu0 0.0
      %3236 = vmatpush2.msra.mxu0 0.0
      %3237 = vmatprep.subr.mxu0 0.0
      %3238 = vmatpush2.msra.mxu0 0.0
      %3239 = vmatprep.subr.mxu0 0.0
      %3240 = vmatpush2.msra.mxu0 0.0
      %3241 = vmatprep.subr.mxu0 0.0
      %3242 = vmatpush2.msra.mxu0 0.0
      %3243 = vmatprep.subr.mxu0 0.0
      %3244 = vmatpush2.msra.mxu0 0.0
      %3245 = vmatprep.mubr.f32.mxu0 0.0
      %3246 = vmatmul.mubr.f32.gmra.mxu0 %v3179
      %v3247 = vpop.f32.mrf.mxu0
      %v3248 = vadd.f32 %v3174, %v3247
      %v3249 = vpop.f32.mrf.mxu0
      %v3250 = vadd.f32 %v3176, %v3249
      %3251 = vdwg.mxu0
      %s3252 = scalar_lea.vmem %s20, 320
      %v3253 = vld [vmem:[%s3252] sm:$0xff]
      %v3254 = vld [vmem:[%s3252 + $0x8] sm:$0xff]
      %v3255 = vld [vmem:[%s3252 + $0x10] sm:$0xff]
      %v3256 = vld [vmem:[%s3252 + $0x18] sm:$0xff]
      %v3257 = vld [vmem:[%s3252 + $0x20] sm:$0xff]
      %v3258 = vld [vmem:[%s3252 + $0x28] sm:$0xff]
      %v3259 = vld [vmem:[%s3252 + $0x30] sm:$0xff]
      %v3260 = vld [vmem:[%s3252 + $0x38] sm:$0xff]
      %v3261 = vld [vmem:[%s3252 + $0x40] sm:$0xff]
      %v3262 = vld [vmem:[%s3252 + $0x48] sm:$0xff]
      %v3263 = vld [vmem:[%s3252 + $0x50] sm:$0xff]
      %v3264 = vld [vmem:[%s3252 + $0x58] sm:$0xff]
      %v3265 = vld [vmem:[%s3252 + $0x60] sm:$0xff]
      %v3266 = vld [vmem:[%s3252 + $0x68] sm:$0xff]
      %v3267 = vld [vmem:[%s3252 + $0x70] sm:$0xff]
      %v3268 = vld [vmem:[%s3252 + $0x78] sm:$0xff]
      %v3269 = vld [vmem:[%s3252 + $0x80] sm:$0xff]
      %v3270 = vld [vmem:[%s3252 + $0x88] sm:$0xff]
      %v3271 = vld [vmem:[%s3252 + $0x90] sm:$0xff]
      %v3272 = vld [vmem:[%s3252 + $0x98] sm:$0xff]
      %v3274 = vsel %vm1283, %v3061, 0
      %3276 = vmatprep.subr.mxu0 0.0
      %3277 = vmatpush1.msra.mxu0 0.0
      %3278 = vmatprep.subr.mxu0 0.0
      %3279 = vmatpush1.msra.mxu0 0.0
      %3280 = vmatprep.subr.mxu0 0.0
      %3281 = vmatpush1.msra.mxu0 0.0
      %3282 = vmatprep.subr.mxu0 0.0
      %3283 = vmatpush1.msra.mxu0 0.0
      %3284 = vmatprep.subr.mxu0 0.0
      %3285 = vmatpush1.msra.mxu0 0.0
      %3286 = vmatprep.subr.mxu0 0.0
      %3287 = vmatpush1.msra.mxu0 0.0
      %3288 = vmatprep.subr.mxu0 %v3272
      %3289 = vmatpush1.msra.mxu0 %v3271
      %3290 = vmatprep.subr.mxu0 %v3270
      %3291 = vmatpush1.msra.mxu0 %v3269
      %3292 = vmatprep.subr.mxu0 %v3268
      %3293 = vmatpush1.msra.mxu0 %v3267
      %3294 = vmatprep.subr.mxu0 %v3266
      %3295 = vmatpush1.msra.mxu0 %v3265
      %3296 = vmatprep.subr.mxu0 %v3264
      %3297 = vmatpush1.msra.mxu0 %v3263
      %3298 = vmatprep.subr.mxu0 %v3262
      %3299 = vmatpush1.msra.mxu0 %v3261
      %3300 = vmatprep.subr.mxu0 %v3260
      %3301 = vmatpush1.msra.mxu0 %v3259
      %3302 = vmatprep.subr.mxu0 %v3258
      %3303 = vmatpush1.msra.mxu0 %v3257
      %3304 = vmatprep.subr.mxu0 %v3256
      %3305 = vmatpush1.msra.mxu0 %v3255
      %3306 = vmatprep.subr.mxu0 %v3254
      %3307 = vmatpush1.msra.mxu0 %v3253
      %3308 = vmatprep.subr.mxu0 0.0
      %3309 = vmatpush2.msra.mxu0 0.0
      %3310 = vmatprep.subr.mxu0 0.0
      %3311 = vmatpush2.msra.mxu0 0.0
      %3312 = vmatprep.subr.mxu0 0.0
      %3313 = vmatpush2.msra.mxu0 0.0
      %3314 = vmatprep.subr.mxu0 0.0
      %3315 = vmatpush2.msra.mxu0 0.0
      %3316 = vmatprep.subr.mxu0 0.0
      %3317 = vmatpush2.msra.mxu0 0.0
      %3318 = vmatprep.subr.mxu0 0.0
      %3319 = vmatpush2.msra.mxu0 0.0
      %3320 = vmatprep.subr.mxu0 0.0
      %3321 = vmatpush2.msra.mxu0 0.0
      %3322 = vmatprep.subr.mxu0 0.0
      %3323 = vmatpush2.msra.mxu0 0.0
      %3324 = vmatprep.subr.mxu0 0.0
      %3325 = vmatpush2.msra.mxu0 0.0
      %3326 = vmatprep.subr.mxu0 0.0
      %3327 = vmatpush2.msra.mxu0 0.0
      %3328 = vmatprep.subr.mxu0 0.0
      %3329 = vmatpush2.msra.mxu0 0.0
      %3330 = vmatprep.subr.mxu0 0.0
      %3331 = vmatpush2.msra.mxu0 0.0
      %3332 = vmatprep.subr.mxu0 0.0
      %3333 = vmatpush2.msra.mxu0 0.0
      %3334 = vmatprep.subr.mxu0 0.0
      %3335 = vmatpush2.msra.mxu0 0.0
      %3336 = vmatprep.subr.mxu0 0.0
      %3337 = vmatpush2.msra.mxu0 0.0
      %3338 = vmatprep.subr.mxu0 0.0
      %3339 = vmatpush2.msra.mxu0 0.0
      %3340 = vmatprep.mubr.f32.mxu0 0.0
      %3341 = vmatmul.mubr.f32.gmra.mxu0 %v3274
      %v3342 = vpop.f32.mrf.mxu0
      %v3343 = vadd.f32 0.0, %v3342
      %v3344 = vpop.f32.mrf.mxu0
      %v3345 = vadd.f32 0.0, %v3344
      %3346 = vdwg.mxu0
      %v3347 = vadd.f32 %v3248, %v3343
      %v3348 = vadd.f32 %v3250, %v3345
      %s3349 = scalar_lea.vmem %s20, 480
      %v3350 = vld [vmem:[%s3349] sm:$0xff]
      %v3351 = vld [vmem:[%s3349 + $0x8] sm:$0xff]
      %v3352 = vld [vmem:[%s3349 + $0x10] sm:$0xff]
      %v3353 = vld [vmem:[%s3349 + $0x18] sm:$0xff]
      %v3354 = vld [vmem:[%s3349 + $0x20] sm:$0xff]
      %v3355 = vld [vmem:[%s3349 + $0x28] sm:$0xff]
      %v3356 = vld [vmem:[%s3349 + $0x30] sm:$0xff]
      %v3357 = vld [vmem:[%s3349 + $0x38] sm:$0xff]
      %v3358 = vld [vmem:[%s3349 + $0x40] sm:$0xff]
      %v3359 = vld [vmem:[%s3349 + $0x48] sm:$0xff]
      %v3360 = vld [vmem:[%s3349 + $0x50] sm:$0xff]
      %v3361 = vld [vmem:[%s3349 + $0x58] sm:$0xff]
      %v3362 = vld [vmem:[%s3349 + $0x60] sm:$0xff]
      %v3363 = vld [vmem:[%s3349 + $0x68] sm:$0xff]
      %v3364 = vld [vmem:[%s3349 + $0x70] sm:$0xff]
      %v3365 = vld [vmem:[%s3349 + $0x78] sm:$0xff]
      %v3366 = vld [vmem:[%s3349 + $0x80] sm:$0xff]
      %v3367 = vld [vmem:[%s3349 + $0x88] sm:$0xff]
      %v3368 = vld [vmem:[%s3349 + $0x90] sm:$0xff]
      %v3369 = vld [vmem:[%s3349 + $0x98] sm:$0xff]
      %v3371 = vsel %vm1283, %v3062, 0
      %3373 = vmatprep.subr.mxu0 0.0
      %3374 = vmatpush1.msra.mxu0 0.0
      %3375 = vmatprep.subr.mxu0 0.0
      %3376 = vmatpush1.msra.mxu0 0.0
      %3377 = vmatprep.subr.mxu0 0.0
      %3378 = vmatpush1.msra.mxu0 0.0
      %3379 = vmatprep.subr.mxu0 0.0
      %3380 = vmatpush1.msra.mxu0 0.0
      %3381 = vmatprep.subr.mxu0 0.0
      %3382 = vmatpush1.msra.mxu0 0.0
      %3383 = vmatprep.subr.mxu0 0.0
      %3384 = vmatpush1.msra.mxu0 0.0
      %3385 = vmatprep.subr.mxu0 %v3369
      %3386 = vmatpush1.msra.mxu0 %v3368
      %3387 = vmatprep.subr.mxu0 %v3367
      %3388 = vmatpush1.msra.mxu0 %v3366
      %3389 = vmatprep.subr.mxu0 %v3365
      %3390 = vmatpush1.msra.mxu0 %v3364
      %3391 = vmatprep.subr.mxu0 %v3363
      %3392 = vmatpush1.msra.mxu0 %v3362
      %3393 = vmatprep.subr.mxu0 %v3361
      %3394 = vmatpush1.msra.mxu0 %v3360
      %3395 = vmatprep.subr.mxu0 %v3359
      %3396 = vmatpush1.msra.mxu0 %v3358
      %3397 = vmatprep.subr.mxu0 %v3357
      %3398 = vmatpush1.msra.mxu0 %v3356
      %3399 = vmatprep.subr.mxu0 %v3355
      %3400 = vmatpush1.msra.mxu0 %v3354
      %3401 = vmatprep.subr.mxu0 %v3353
      %3402 = vmatpush1.msra.mxu0 %v3352
      %3403 = vmatprep.subr.mxu0 %v3351
      %3404 = vmatpush1.msra.mxu0 %v3350
      %3405 = vmatprep.subr.mxu0 0.0
      %3406 = vmatpush2.msra.mxu0 0.0
      %3407 = vmatprep.subr.mxu0 0.0
      %3408 = vmatpush2.msra.mxu0 0.0
      %3409 = vmatprep.subr.mxu0 0.0
      %3410 = vmatpush2.msra.mxu0 0.0
      %3411 = vmatprep.subr.mxu0 0.0
      %3412 = vmatpush2.msra.mxu0 0.0
      %3413 = vmatprep.subr.mxu0 0.0
      %3414 = vmatpush2.msra.mxu0 0.0
      %3415 = vmatprep.subr.mxu0 0.0
      %3416 = vmatpush2.msra.mxu0 0.0
      %3417 = vmatprep.subr.mxu0 0.0
      %3418 = vmatpush2.msra.mxu0 0.0
      %3419 = vmatprep.subr.mxu0 0.0
      %3420 = vmatpush2.msra.mxu0 0.0
      %3421 = vmatprep.subr.mxu0 0.0
      %3422 = vmatpush2.msra.mxu0 0.0
      %3423 = vmatprep.subr.mxu0 0.0
      %3424 = vmatpush2.msra.mxu0 0.0
      %3425 = vmatprep.subr.mxu0 0.0
      %3426 = vmatpush2.msra.mxu0 0.0
      %3427 = vmatprep.subr.mxu0 0.0
      %3428 = vmatpush2.msra.mxu0 0.0
      %3429 = vmatprep.subr.mxu0 0.0
      %3430 = vmatpush2.msra.mxu0 0.0
      %3431 = vmatprep.subr.mxu0 0.0
      %3432 = vmatpush2.msra.mxu0 0.0
      %3433 = vmatprep.subr.mxu0 0.0
      %3434 = vmatpush2.msra.mxu0 0.0
      %3435 = vmatprep.subr.mxu0 0.0
      %3436 = vmatpush2.msra.mxu0 0.0
      %3437 = vmatprep.mubr.f32.mxu0 0.0
      %3438 = vmatmul.mubr.f32.gmra.mxu0 %v3371
      %v3439 = vpop.f32.mrf.mxu0
      %v3440 = vadd.f32 0.0, %v3439
      %v3441 = vpop.f32.mrf.mxu0
      %v3442 = vadd.f32 0.0, %v3441
      %3443 = vdwg.mxu0
      %v3444 = vadd.f32 %v3347, %v3440
      %v3445 = vadd.f32 %v3348, %v3442
      %3446 = vst [vmem:[%s770] sm:$0xff] %v3444
      %3447 = vst [vmem:[%s770 + $0x8] sm:$0xff] %v3445
      %p3448 = scmp.lt.s32.totalorder %s35, 1
      %s3449 = scalar_select %p3448, %s35, 1
      %s3450 = smul.addr %s3449, 8
      %s3451 = scalar_lea.vmem %s21, %s3450
      %p3452 = scmp.lt.s32.totalorder %s35, 1
      %s3453 = scalar_select %p3452, %s35, 1
      %s3454 = smul.addr %s3453, 2
      %s3455 = smul.addr %s3454, 8
      %s3456 = scalar_lea.vmem %s22, %s3455
      %p3457 = scmp.lt.s32.totalorder %s35, 1
      %s3458 = scalar_select %p3457, %s35, 1
      %s3459 = smul.addr %s3458, 2
      %s3460 = smul.addr %s3459, 8
      %s3461 = scalar_lea.vmem %s23, %s3460
      // Predicated region
      $region105: #{hourglass_1_forward.1} parent=103 // pred_check
        %p3462 = pneg %p509
      $region106: #{hourglass_1_forward.1} parent=103 // pred_check_branch
        %3464 = sbr.rel (%p3462) target = $region108
      $region107: #{hourglass_1_forward.1} parent=103 // pred_region
        _
      $region108: #{hourglass_1_forward.1} parent=103 // pred_fallthru
        _
      // Predicated region
      $region109: #{hourglass_1_forward.1} parent=103 // pred_check
        %p3465 = pneg %p535
      $region110: #{hourglass_1_forward.1} parent=103 // pred_check_branch
        %3467 = sbr.rel (%p3465) target = $region112
      $region111: #{hourglass_1_forward.1} parent=103 // pred_region
        _
      $region112: #{hourglass_1_forward.1} parent=103 // pred_fallthru
        _
      // Predicated region
      $region113: #{hourglass_1_forward.1} parent=103 // pred_check
        %p3468 = pneg %p561
      $region114: #{hourglass_1_forward.1} parent=103 // pred_check_branch
        %3470 = sbr.rel (%p3468) target = $region116
      $region115: #{hourglass_1_forward.1} parent=103 // pred_region
        _
      $region116: #{hourglass_1_forward.1} parent=103 // pred_fallthru
        _
    $region104: #{hourglass_1_forward.1} parent=5 // pred_fallthru
      _
    %p3471 = scmp.le.s32.totalorder 2, %s30
    // Predicated region
    $region117: #{hourglass_1_forward.1} parent=5 // pred_check
      %p3472 = pneg %p3471
    $region118: #{hourglass_1_forward.1} parent=5 // pred_check_branch
      %3474 = sbr.rel (%p3472) target = $region120
    $region119: #{hourglass_1_forward.1} parent=5 // pred_region
      %s3475 = ssub.s32 %s30, 2
      // Predicated region
      $region121: #{hourglass_1_forward.1} parent=119 // pred_check
        %p3476 = pneg %p515
      $region122: #{hourglass_1_forward.1} parent=119 // pred_check_branch
        %3478 = sbr.rel (%p3476) target = $region124
      $region123: #{hourglass_1_forward.1} parent=119 // pred_region
        %p3479 = scmp.lt.s32.totalorder %s36, 1
        %s3480 = scalar_select %p3479, %s36, 1
        %s3481 = smul.addr %s3480, 8
        %s3482 = scalar_lea.vmem %s21, %s3481
      $region124: #{hourglass_1_forward.1} parent=119 // pred_fallthru
        _
      // Predicated region
      $region125: #{hourglass_1_forward.1} parent=119 // pred_check
        %p3483 = pneg %p541
      $region126: #{hourglass_1_forward.1} parent=119 // pred_check_branch
        %3485 = sbr.rel (%p3483) target = $region128
      $region127: #{hourglass_1_forward.1} parent=119 // pred_region
        %p3486 = scmp.lt.s32.totalorder %s36, 1
        %s3487 = scalar_select %p3486, %s36, 1
        %s3488 = smul.addr %s3487, 2
        %s3489 = smul.addr %s3488, 8
        %s3490 = scalar_lea.vmem %s22, %s3489
      $region128: #{hourglass_1_forward.1} parent=119 // pred_fallthru
        _
      // Predicated region
      $region129: #{hourglass_1_forward.1} parent=119 // pred_check
        %p3491 = pneg %p567
      $region130: #{hourglass_1_forward.1} parent=119 // pred_check_branch
        %3493 = sbr.rel (%p3491) target = $region132
      $region131: #{hourglass_1_forward.1} parent=119 // pred_region
        %p3494 = scmp.lt.s32.totalorder %s36, 1
        %s3495 = scalar_select %p3494, %s36, 1
        %s3496 = smul.addr %s3495, 2
        %s3497 = smul.addr %s3496, 8
        %s3498 = scalar_lea.vmem %s23, %s3497
      $region132: #{hourglass_1_forward.1} parent=119 // pred_fallthru
        _
    $region120: #{hourglass_1_forward.1} parent=5 // pred_fallthru
      _
  $region6: #{hourglass_1_forward.1} parent=0 // loop_footer
    %s34 = sadd.s32 1, %s30
  $region7: #{hourglass_1_forward.1} parent=0 // loop_footer_branch
    %29 = sbr.rel target = $region3
  $region8: #{hourglass_1_forward.1} parent=0 // loop_exit
    _

</llo_original>
